<compile_context>
chip_gen: v6e
topology: v6e:2x2x1
jax: 0.10.0
libtpu: 0.0.40
codegen_flags: <defaults>
</compile_context>

<pallas_src>
import functools
import numpy as np

import jax
import jax.numpy as jnp
from jax.experimental import pallas as pl
from jax.experimental.pallas import tpu as pltpu


def _make_knots(grid_size, spline_order, grid_range):
    h = (grid_range[1] - grid_range[0]) / grid_size
    knots = (np.arange(-spline_order, grid_size + spline_order + 1, dtype=np.float64) * h
             + grid_range[0])
    return tuple(float(v) for v in knots)  # length grid_size + 2*spline_order + 1


def _bspline_bases(x, knots, grid_size, spline_order):
    """x: elementwise array -> list of basis arrays (same shape), len = grid_size+spline_order.

    Shared-t Cox-de Boor recursion (uniform knot grid):
        t_i            = (x - knots[i]) / (d*h)
        B_i^{d}(x)     = t_i * B_i^{d-1}(x) + (1 - t_{i+1}) * B_{i+1}^{d-1}(x)
    All knot constants and reciprocals are Python floats baked at trace time
    (multiplies / adds only, no divides).
    """
    k = spline_order
    n0 = grid_size + 2 * k
    bases = [
        jnp.logical_and(x >= knots[i], x < knots[i + 1]).astype(x.dtype)
        for i in range(n0)
    ]
    for d in range(1, k + 1):
        n = len(bases)
        # uniform grid: knots[i+d] - knots[i] == d*h for every i
        inv = 1.0 / (knots[d] - knots[0])
        x_scaled = x * inv                              # one mul per level
        t = [x_scaled - (knots[i] * inv) for i in range(n)]
        bases = [t[i] * bases[i] + (1.0 - t[i + 1]) * bases[i + 1]
                 for i in range(n - 1)]
    return bases  # len == grid_size + spline_order


def _kan_kernel(x_ref, w_ref, o_ref, *, cin, cout, n_basis, knots,
                grid_size, spline_order):
    # x_ref: (1, cin,  th, tw)
    # w_ref: (1, size, th, tw)   size = cin*cout*n_basis + 2*cin*cout
    # o_ref: (1, cout, th, tw)
    cc = cout * n_basis
    coef_len = cin * cc
    uw_off = coef_len
    rw_off = coef_len + cin * cout

    plane_shape = o_ref.shape[2:]
    acc = [jnp.zeros(plane_shape, jnp.float32) for _ in range(cout)]

    for i in range(cin):
        x_i = x_ref[0, i].astype(jnp.float32)                        # (th, tw)
        bases = _bspline_bases(x_i, knots, grid_size, spline_order)  # Kb planes
        silu_i = x_i * jax.nn.sigmoid(x_i)                           # sigmoid -> EUP
        for o in range(cout):
            ch = i * cc + o * n_basis
            # streamed k-accumulation: per-pixel coef planes * basis planes
            spline = w_ref[0, ch].astype(jnp.float32) * bases[0]
            for k in range(1, n_basis):
                spline = spline + w_ref[0, ch + k].astype(jnp.float32) * bases[k]
            uw = w_ref[0, uw_off + i * cout + o].astype(jnp.float32)
            rw = w_ref[0, rw_off + i * cout + o].astype(jnp.float32)
            acc[o] = acc[o] + uw * spline + rw * silu_i

    for o in range(cout):
        o_ref[0, o] = acc[o].astype(o_ref.dtype)


def _pick_tile(dim, unit, target):
    """Largest multiple of `unit` that divides `dim` and is <= target; else full dim."""
    best = None
    t = unit
    limit = min(dim, max(unit, target))
    while t <= limit:
        if dim % t == 0:
            best = t
        t += unit
    return best if best is not None else dim


class ConvSepKanCellPallas:
    """Pallas implementation of ConvSepKanCell.forward(x, w)."""

    def __init__(self, in_channels, out_channels, grid_size, spline_order,
                 residual_std, grid_range):
        self.in_channels = in_channels
        self.out_channels = out_channels
        self.grid_size = grid_size
        self.spline_order = spline_order
        self.residual_std = residual_std  # only used for torch-side init; params arrive via `w`
        self.grid_range = grid_range

        self.n_basis = grid_size + spline_order
        self.coef_shape = (in_channels, out_channels, self.n_basis)
        self.univariate_weight_shape = (in_channels, out_channels)
        self.residual_weight_shape = (in_channels, out_channels)

        idx = [0,
               int(np.prod(self.coef_shape)),
               int(np.prod(self.univariate_weight_shape)),
               int(np.prod(self.residual_weight_shape))]
        self._kan_params_indices = np.cumsum(idx)
        self.size = int(self._kan_params_indices[-1])

        self.knots = _make_knots(grid_size, spline_order, grid_range)

    def __call__(self, x, w, *, target_pixels=4096, vmem_limit_bytes=32 * 1024 * 1024):
        # vmem_limit_bytes / target_pixels are the per-generation knobs
        # (v7x has 64 MiB VMEM, v5e/v6e 128 MiB) — defaults are safe everywhere.
        B, C, H, W = x.shape
        assert C == self.in_channels
        assert w.shape == (B, self.size, H, W)
        Cout = self.out_channels

        # Lane (W) tile: prefer a multiple of 128 dividing W, else full W.
        tw = _pick_tile(W, 128, 256)
        # Cap the pixel tile so the double-buffered working set stays well
        # inside the VMEM budget (factor 4 ~= double-buffered in + out).
        per_pixel_bytes = (self.size * w.dtype.itemsize
                           + C * x.dtype.itemsize
                           + Cout * x.dtype.itemsize)
        max_pixels = max(tw, int(vmem_limit_bytes // (4 * per_pixel_bytes)))
        tp_target = min(target_pixels, max_pixels)
        # Sublane (H) tile: multiple of 8 dividing H, else full H.
        th = _pick_tile(H, 8, max(8, tp_target // tw))

        grid = (B, H // th, W // tw)

        kernel = functools.partial(
            _kan_kernel, cin=C, cout=Cout, n_basis=self.n_basis,
            knots=self.knots, grid_size=self.grid_size,
            spline_order=self.spline_order)

        n_pix = B * H * W
        cost = pl.CostEstimate(
            flops=int(n_pix * C * (5 * (self.n_basis + self.spline_order) * self.spline_order
                                   + Cout * (2 * self.n_basis + 4))),
            transcendentals=int(n_pix * C),
            bytes_accessed=int(x.size * x.dtype.itemsize
                               + w.size * w.dtype.itemsize
                               + n_pix * Cout * x.dtype.itemsize))

        out = pl.pallas_call(
            kernel,
            out_shape=jax.ShapeDtypeStruct((B, Cout, H, W), x.dtype),
            grid_spec=pltpu.PrefetchScalarGridSpec(
                num_scalar_prefetch=0,
                grid=grid,
                in_specs=[
                    pl.BlockSpec((1, C, th, tw), lambda b, hi, wi: (b, 0, hi, wi)),
                    pl.BlockSpec((1, self.size, th, tw),
                                 lambda b, hi, wi: (b, 0, hi, wi)),
                ],
                out_specs=pl.BlockSpec((1, Cout, th, tw),
                                       lambda b, hi, wi: (b, 0, hi, wi)),
            ),
            compiler_params=pltpu.CompilerParams(
                dimension_semantics=("parallel", "parallel", "parallel"),
                vmem_limit_bytes=int(vmem_limit_bytes)),
            cost_estimate=cost,
        )(x, w)
        return out

    # Pure-JAX reference (same math, no Pallas) for verification.
    def reference(self, x, w):
        B, C, H, W = x.shape
        N = B * H * W
        xf = jnp.transpose(x, (0, 2, 3, 1)).reshape(N, C).astype(jnp.float32)
        wf = jnp.transpose(w, (0, 2, 3, 1)).reshape(N, self.size).astype(jnp.float32)
        i0, i1, i2, i3 = self._kan_params_indices
        coef = wf[:, i0:i1].reshape(N, *self.coef_shape)
        uw = wf[:, i1:i2].reshape(N, *self.univariate_weight_shape)
        rw = wf[:, i2:i3].reshape(N, *self.residual_weight_shape)
        bases = _bspline_bases(xf, self.knots, self.grid_size, self.spline_order)
        basis = jnp.stack(bases, axis=-1)                       # (N, Cin, Kb)
        spline = jnp.einsum('niok,nik->nio', coef, basis)       # (N, Cin, Cout)
        silu = xf * jax.nn.sigmoid(xf)
        y = jnp.sum(uw * spline + rw * silu[:, :, None], axis=1).astype(x.dtype)
        return jnp.transpose(y.reshape(B, H, W, self.out_channels), (0, 3, 1, 2))


if __name__ == "__main__":
    # Small deterministic example consistent with the module's forward.
    B, Cin, H, W = 2, 4, 16, 16
    Cout = 4
    grid_size, spline_order = 5, 3
    residual_std, grid_range = 0.1, (-1.0, 1.0)

    cell = ConvSepKanCellPallas(Cin, Cout, grid_size, spline_order,
                                residual_std, grid_range)

    key = jax.random.PRNGKey(0)
    kx, kw = jax.random.split(key)
    x = jax.random.normal(kx, (B, Cin, H, W), dtype=jnp.float32)
    # per-pixel KAN parameters (normally produced by a conv hypernetwork)
    w = 0.1 * jax.random.normal(kw, (B, cell.size, H, W), dtype=jnp.float32)

    out = jax.block_until_ready(cell(x, w))
    ref = jax.block_until_ready(cell.reference(x, w))

    assert out.shape == (B, Cout, H, W)
    np.testing.assert_allclose(np.asarray(out), np.asarray(ref),
                               rtol=1e-5, atol=1e-5)

    print("KERNEL_OK")
</pallas_src>

<mosaic_0001>
module attributes {stable_mosaic.version = 11 : i64} {
  func.func @_kan_kernel(%arg0: i32, %arg1: i32, %arg2: i32, %arg3: memref<1x4x16x16xf32, #tpu.memory_space<vmem>>, %arg4: memref<1x160x16x16xf32, #tpu.memory_space<vmem>>, %arg5: memref<1x4x16x16xf32, #tpu.memory_space<vmem>>) attributes {dimension_semantics = [#tpu.dimension_semantics<parallel>, #tpu.dimension_semantics<parallel>, #tpu.dimension_semantics<parallel>], iteration_bounds = array<i64: 2, 1, 1>, scalar_prefetch = 0 : i64, scratch_operands = 0 : i64, tpu.core_type = #tpu.core_type<tc>, window_params = [{transform_indices = @transform_0, window_bounds = array<i64: 1, 4, 16, 16>}, {transform_indices = @transform_1, window_bounds = array<i64: 1, 160, 16, 16>}, {transform_indices = @transform_2, window_bounds = array<i64: 1, 4, 16, 16>}]} {
    %cst = arith.constant 0.000000e+00 : f32
    %0 = vector.broadcast %cst : f32 to vector<16x16xf32>
    %cst_0 = arith.constant 0.000000e+00 : f32
    %1 = vector.broadcast %cst_0 : f32 to vector<16x16xf32>
    %cst_1 = arith.constant 0.000000e+00 : f32
    %2 = vector.broadcast %cst_1 : f32 to vector<16x16xf32>
    %cst_2 = arith.constant 0.000000e+00 : f32
    %3 = vector.broadcast %cst_2 : f32 to vector<16x16xf32>
    %c0 = arith.constant 0 : index
    %c0_3 = arith.constant 0 : index
    %c0_4 = arith.constant 0 : index
    %c0_5 = arith.constant 0 : index
    %4 = vector.load %arg3[%c0, %c0_3, %c0_4, %c0_5] : memref<1x4x16x16xf32, #tpu.memory_space<vmem>>, vector<1x1x16x16xf32>
    %5 = vector.shape_cast %4 : vector<1x1x16x16xf32> to vector<16x16xf32>
    %cst_6 = arith.constant -2.200000e+00 : f32
    %6 = vector.broadcast %cst_6 : f32 to vector<16x16xf32>
    %7 = arith.cmpf oge, %5, %6 : vector<16x16xf32>
    %cst_7 = arith.constant -1.800000e+00 : f32
    %8 = vector.broadcast %cst_7 : f32 to vector<16x16xf32>
    %9 = arith.cmpf olt, %5, %8 : vector<16x16xf32>
    %10 = arith.andi %7, %9 : vector<16x16xi1>
    %11 = arith.extui %10 : vector<16x16xi1> to vector<16x16xi32>
    %12 = arith.sitofp %11 : vector<16x16xi32> to vector<16x16xf32>
    %cst_8 = arith.constant -1.800000e+00 : f32
    %13 = vector.broadcast %cst_8 : f32 to vector<16x16xf32>
    %14 = arith.cmpf oge, %5, %13 : vector<16x16xf32>
    %cst_9 = arith.constant -1.400000e+00 : f32
    %15 = vector.broadcast %cst_9 : f32 to vector<16x16xf32>
    %16 = arith.cmpf olt, %5, %15 : vector<16x16xf32>
    %17 = arith.andi %14, %16 : vector<16x16xi1>
    %18 = arith.extui %17 : vector<16x16xi1> to vector<16x16xi32>
    %19 = arith.sitofp %18 : vector<16x16xi32> to vector<16x16xf32>
    %cst_10 = arith.constant -1.400000e+00 : f32
    %20 = vector.broadcast %cst_10 : f32 to vector<16x16xf32>
    %21 = arith.cmpf oge, %5, %20 : vector<16x16xf32>
    %cst_11 = arith.constant -1.000000e+00 : f32
    %22 = vector.broadcast %cst_11 : f32 to vector<16x16xf32>
    %23 = arith.cmpf olt, %5, %22 : vector<16x16xf32>
    %24 = arith.andi %21, %23 : vector<16x16xi1>
    %25 = arith.extui %24 : vector<16x16xi1> to vector<16x16xi32>
    %26 = arith.sitofp %25 : vector<16x16xi32> to vector<16x16xf32>
    %cst_12 = arith.constant -1.000000e+00 : f32
    %27 = vector.broadcast %cst_12 : f32 to vector<16x16xf32>
    %28 = arith.cmpf oge, %5, %27 : vector<16x16xf32>
    %cst_13 = arith.constant -6.000000e-01 : f32
    %29 = vector.broadcast %cst_13 : f32 to vector<16x16xf32>
    %30 = arith.cmpf olt, %5, %29 : vector<16x16xf32>
    %31 = arith.andi %28, %30 : vector<16x16xi1>
    %32 = arith.extui %31 : vector<16x16xi1> to vector<16x16xi32>
    %33 = arith.sitofp %32 : vector<16x16xi32> to vector<16x16xf32>
    %cst_14 = arith.constant -6.000000e-01 : f32
    %34 = vector.broadcast %cst_14 : f32 to vector<16x16xf32>
    %35 = arith.cmpf oge, %5, %34 : vector<16x16xf32>
    %cst_15 = arith.constant -2.000000e-01 : f32
    %36 = vector.broadcast %cst_15 : f32 to vector<16x16xf32>
    %37 = arith.cmpf olt, %5, %36 : vector<16x16xf32>
    %38 = arith.andi %35, %37 : vector<16x16xi1>
    %39 = arith.extui %38 : vector<16x16xi1> to vector<16x16xi32>
    %40 = arith.sitofp %39 : vector<16x16xi32> to vector<16x16xf32>
    %cst_16 = arith.constant -2.000000e-01 : f32
    %41 = vector.broadcast %cst_16 : f32 to vector<16x16xf32>
    %42 = arith.cmpf oge, %5, %41 : vector<16x16xf32>
    %cst_17 = arith.constant 2.000000e-01 : f32
    %43 = vector.broadcast %cst_17 : f32 to vector<16x16xf32>
    %44 = arith.cmpf olt, %5, %43 : vector<16x16xf32>
    %45 = arith.andi %42, %44 : vector<16x16xi1>
    %46 = arith.extui %45 : vector<16x16xi1> to vector<16x16xi32>
    %47 = arith.sitofp %46 : vector<16x16xi32> to vector<16x16xf32>
    %cst_18 = arith.constant 2.000000e-01 : f32
    %48 = vector.broadcast %cst_18 : f32 to vector<16x16xf32>
    %49 = arith.cmpf oge, %5, %48 : vector<16x16xf32>
    %cst_19 = arith.constant 6.000000e-01 : f32
    %50 = vector.broadcast %cst_19 : f32 to vector<16x16xf32>
    %51 = arith.cmpf olt, %5, %50 : vector<16x16xf32>
    %52 = arith.andi %49, %51 : vector<16x16xi1>
    %53 = arith.extui %52 : vector<16x16xi1> to vector<16x16xi32>
    %54 = arith.sitofp %53 : vector<16x16xi32> to vector<16x16xf32>
    %cst_20 = arith.constant 6.000000e-01 : f32
    %55 = vector.broadcast %cst_20 : f32 to vector<16x16xf32>
    %56 = arith.cmpf oge, %5, %55 : vector<16x16xf32>
    %cst_21 = arith.constant 1.000000e+00 : f32
    %57 = vector.broadcast %cst_21 : f32 to vector<16x16xf32>
    %58 = arith.cmpf olt, %5, %57 : vector<16x16xf32>
    %59 = arith.andi %56, %58 : vector<16x16xi1>
    %60 = arith.extui %59 : vector<16x16xi1> to vector<16x16xi32>
    %61 = arith.sitofp %60 : vector<16x16xi32> to vector<16x16xf32>
    %cst_22 = arith.constant 1.000000e+00 : f32
    %62 = vector.broadcast %cst_22 : f32 to vector<16x16xf32>
    %63 = arith.cmpf oge, %5, %62 : vector<16x16xf32>
    %cst_23 = arith.constant 1.400000e+00 : f32
    %64 = vector.broadcast %cst_23 : f32 to vector<16x16xf32>
    %65 = arith.cmpf olt, %5, %64 : vector<16x16xf32>
    %66 = arith.andi %63, %65 : vector<16x16xi1>
    %67 = arith.extui %66 : vector<16x16xi1> to vector<16x16xi32>
    %68 = arith.sitofp %67 : vector<16x16xi32> to vector<16x16xf32>
    %cst_24 = arith.constant 1.400000e+00 : f32
    %69 = vector.broadcast %cst_24 : f32 to vector<16x16xf32>
    %70 = arith.cmpf oge, %5, %69 : vector<16x16xf32>
    %cst_25 = arith.constant 1.800000e+00 : f32
    %71 = vector.broadcast %cst_25 : f32 to vector<16x16xf32>
    %72 = arith.cmpf olt, %5, %71 : vector<16x16xf32>
    %73 = arith.andi %70, %72 : vector<16x16xi1>
    %74 = arith.extui %73 : vector<16x16xi1> to vector<16x16xi32>
    %75 = arith.sitofp %74 : vector<16x16xi32> to vector<16x16xf32>
    %cst_26 = arith.constant 1.800000e+00 : f32
    %76 = vector.broadcast %cst_26 : f32 to vector<16x16xf32>
    %77 = arith.cmpf oge, %5, %76 : vector<16x16xf32>
    %cst_27 = arith.constant 2.200000e+00 : f32
    %78 = vector.broadcast %cst_27 : f32 to vector<16x16xf32>
    %79 = arith.cmpf olt, %5, %78 : vector<16x16xf32>
    %80 = arith.andi %77, %79 : vector<16x16xi1>
    %81 = arith.extui %80 : vector<16x16xi1> to vector<16x16xi32>
    %82 = arith.sitofp %81 : vector<16x16xi32> to vector<16x16xf32>
    %cst_28 = arith.constant 2.500000e+00 : f32
    %83 = vector.broadcast %cst_28 : f32 to vector<16x16xf32>
    %84 = arith.mulf %5, %83 : vector<16x16xf32>
    %cst_29 = arith.constant -5.500000e+00 : f32
    %85 = vector.broadcast %cst_29 : f32 to vector<16x16xf32>
    %86 = arith.subf %84, %85 : vector<16x16xf32>
    %cst_30 = arith.constant -4.500000e+00 : f32
    %87 = vector.broadcast %cst_30 : f32 to vector<16x16xf32>
    %88 = arith.subf %84, %87 : vector<16x16xf32>
    %cst_31 = arith.constant -3.500000e+00 : f32
    %89 = vector.broadcast %cst_31 : f32 to vector<16x16xf32>
    %90 = arith.subf %84, %89 : vector<16x16xf32>
    %cst_32 = arith.constant -2.500000e+00 : f32
    %91 = vector.broadcast %cst_32 : f32 to vector<16x16xf32>
    %92 = arith.subf %84, %91 : vector<16x16xf32>
    %cst_33 = arith.constant -1.500000e+00 : f32
    %93 = vector.broadcast %cst_33 : f32 to vector<16x16xf32>
    %94 = arith.subf %84, %93 : vector<16x16xf32>
    %cst_34 = arith.constant -5.000000e-01 : f32
    %95 = vector.broadcast %cst_34 : f32 to vector<16x16xf32>
    %96 = arith.subf %84, %95 : vector<16x16xf32>
    %cst_35 = arith.constant 5.000000e-01 : f32
    %97 = vector.broadcast %cst_35 : f32 to vector<16x16xf32>
    %98 = arith.subf %84, %97 : vector<16x16xf32>
    %cst_36 = arith.constant 1.500000e+00 : f32
    %99 = vector.broadcast %cst_36 : f32 to vector<16x16xf32>
    %100 = arith.subf %84, %99 : vector<16x16xf32>
    %cst_37 = arith.constant 2.500000e+00 : f32
    %101 = vector.broadcast %cst_37 : f32 to vector<16x16xf32>
    %102 = arith.subf %84, %101 : vector<16x16xf32>
    %cst_38 = arith.constant 3.500000e+00 : f32
    %103 = vector.broadcast %cst_38 : f32 to vector<16x16xf32>
    %104 = arith.subf %84, %103 : vector<16x16xf32>
    %cst_39 = arith.constant 4.500000e+00 : f32
    %105 = vector.broadcast %cst_39 : f32 to vector<16x16xf32>
    %106 = arith.subf %84, %105 : vector<16x16xf32>
    %107 = arith.mulf %86, %12 : vector<16x16xf32>
    %cst_40 = arith.constant 1.000000e+00 : f32
    %108 = vector.broadcast %cst_40 : f32 to vector<16x16xf32>
    %109 = arith.subf %108, %88 : vector<16x16xf32>
    %110 = arith.mulf %109, %19 : vector<16x16xf32>
    %111 = arith.addf %107, %110 : vector<16x16xf32>
    %112 = arith.mulf %88, %19 : vector<16x16xf32>
    %cst_41 = arith.constant 1.000000e+00 : f32
    %113 = vector.broadcast %cst_41 : f32 to vector<16x16xf32>
    %114 = arith.subf %113, %90 : vector<16x16xf32>
    %115 = arith.mulf %114, %26 : vector<16x16xf32>
    %116 = arith.addf %112, %115 : vector<16x16xf32>
    %117 = arith.mulf %90, %26 : vector<16x16xf32>
    %cst_42 = arith.constant 1.000000e+00 : f32
    %118 = vector.broadcast %cst_42 : f32 to vector<16x16xf32>
    %119 = arith.subf %118, %92 : vector<16x16xf32>
    %120 = arith.mulf %119, %33 : vector<16x16xf32>
    %121 = arith.addf %117, %120 : vector<16x16xf32>
    %122 = arith.mulf %92, %33 : vector<16x16xf32>
    %cst_43 = arith.constant 1.000000e+00 : f32
    %123 = vector.broadcast %cst_43 : f32 to vector<16x16xf32>
    %124 = arith.subf %123, %94 : vector<16x16xf32>
    %125 = arith.mulf %124, %40 : vector<16x16xf32>
    %126 = arith.addf %122, %125 : vector<16x16xf32>
    %127 = arith.mulf %94, %40 : vector<16x16xf32>
    %cst_44 = arith.constant 1.000000e+00 : f32
    %128 = vector.broadcast %cst_44 : f32 to vector<16x16xf32>
    %129 = arith.subf %128, %96 : vector<16x16xf32>
    %130 = arith.mulf %129, %47 : vector<16x16xf32>
    %131 = arith.addf %127, %130 : vector<16x16xf32>
    %132 = arith.mulf %96, %47 : vector<16x16xf32>
    %cst_45 = arith.constant 1.000000e+00 : f32
    %133 = vector.broadcast %cst_45 : f32 to vector<16x16xf32>
    %134 = arith.subf %133, %98 : vector<16x16xf32>
    %135 = arith.mulf %134, %54 : vector<16x16xf32>
    %136 = arith.addf %132, %135 : vector<16x16xf32>
    %137 = arith.mulf %98, %54 : vector<16x16xf32>
    %cst_46 = arith.constant 1.000000e+00 : f32
    %138 = vector.broadcast %cst_46 : f32 to vector<16x16xf32>
    %139 = arith.subf %138, %100 : vector<16x16xf32>
    %140 = arith.mulf %139, %61 : vector<16x16xf32>
    %141 = arith.addf %137, %140 : vector<16x16xf32>
    %142 = arith.mulf %100, %61 : vector<16x16xf32>
    %cst_47 = arith.constant 1.000000e+00 : f32
    %143 = vector.broadcast %cst_47 : f32 to vector<16x16xf32>
    %144 = arith.subf %143, %102 : vector<16x16xf32>
    %145 = arith.mulf %144, %68 : vector<16x16xf32>
    %146 = arith.addf %142, %145 : vector<16x16xf32>
    %147 = arith.mulf %102, %68 : vector<16x16xf32>
    %cst_48 = arith.constant 1.000000e+00 : f32
    %148 = vector.broadcast %cst_48 : f32 to vector<16x16xf32>
    %149 = arith.subf %148, %104 : vector<16x16xf32>
    %150 = arith.mulf %149, %75 : vector<16x16xf32>
    %151 = arith.addf %147, %150 : vector<16x16xf32>
    %152 = arith.mulf %104, %75 : vector<16x16xf32>
    %cst_49 = arith.constant 1.000000e+00 : f32
    %153 = vector.broadcast %cst_49 : f32 to vector<16x16xf32>
    %154 = arith.subf %153, %106 : vector<16x16xf32>
    %155 = arith.mulf %154, %82 : vector<16x16xf32>
    %156 = arith.addf %152, %155 : vector<16x16xf32>
    %cst_50 = arith.constant 1.250000e+00 : f32
    %157 = vector.broadcast %cst_50 : f32 to vector<16x16xf32>
    %158 = arith.mulf %5, %157 : vector<16x16xf32>
    %cst_51 = arith.constant -2.750000e+00 : f32
    %159 = vector.broadcast %cst_51 : f32 to vector<16x16xf32>
    %160 = arith.subf %158, %159 : vector<16x16xf32>
    %cst_52 = arith.constant -2.250000e+00 : f32
    %161 = vector.broadcast %cst_52 : f32 to vector<16x16xf32>
    %162 = arith.subf %158, %161 : vector<16x16xf32>
    %cst_53 = arith.constant -1.750000e+00 : f32
    %163 = vector.broadcast %cst_53 : f32 to vector<16x16xf32>
    %164 = arith.subf %158, %163 : vector<16x16xf32>
    %cst_54 = arith.constant -1.250000e+00 : f32
    %165 = vector.broadcast %cst_54 : f32 to vector<16x16xf32>
    %166 = arith.subf %158, %165 : vector<16x16xf32>
    %cst_55 = arith.constant -7.500000e-01 : f32
    %167 = vector.broadcast %cst_55 : f32 to vector<16x16xf32>
    %168 = arith.subf %158, %167 : vector<16x16xf32>
    %cst_56 = arith.constant -2.500000e-01 : f32
    %169 = vector.broadcast %cst_56 : f32 to vector<16x16xf32>
    %170 = arith.subf %158, %169 : vector<16x16xf32>
    %cst_57 = arith.constant 2.500000e-01 : f32
    %171 = vector.broadcast %cst_57 : f32 to vector<16x16xf32>
    %172 = arith.subf %158, %171 : vector<16x16xf32>
    %cst_58 = arith.constant 7.500000e-01 : f32
    %173 = vector.broadcast %cst_58 : f32 to vector<16x16xf32>
    %174 = arith.subf %158, %173 : vector<16x16xf32>
    %cst_59 = arith.constant 1.250000e+00 : f32
    %175 = vector.broadcast %cst_59 : f32 to vector<16x16xf32>
    %176 = arith.subf %158, %175 : vector<16x16xf32>
    %cst_60 = arith.constant 1.750000e+00 : f32
    %177 = vector.broadcast %cst_60 : f32 to vector<16x16xf32>
    %178 = arith.subf %158, %177 : vector<16x16xf32>
    %179 = arith.mulf %160, %111 : vector<16x16xf32>
    %cst_61 = arith.constant 1.000000e+00 : f32
    %180 = vector.broadcast %cst_61 : f32 to vector<16x16xf32>
    %181 = arith.subf %180, %162 : vector<16x16xf32>
    %182 = arith.mulf %181, %116 : vector<16x16xf32>
    %183 = arith.addf %179, %182 : vector<16x16xf32>
    %184 = arith.mulf %162, %116 : vector<16x16xf32>
    %cst_62 = arith.constant 1.000000e+00 : f32
    %185 = vector.broadcast %cst_62 : f32 to vector<16x16xf32>
    %186 = arith.subf %185, %164 : vector<16x16xf32>
    %187 = arith.mulf %186, %121 : vector<16x16xf32>
    %188 = arith.addf %184, %187 : vector<16x16xf32>
    %189 = arith.mulf %164, %121 : vector<16x16xf32>
    %cst_63 = arith.constant 1.000000e+00 : f32
    %190 = vector.broadcast %cst_63 : f32 to vector<16x16xf32>
    %191 = arith.subf %190, %166 : vector<16x16xf32>
    %192 = arith.mulf %191, %126 : vector<16x16xf32>
    %193 = arith.addf %189, %192 : vector<16x16xf32>
    %194 = arith.mulf %166, %126 : vector<16x16xf32>
    %cst_64 = arith.constant 1.000000e+00 : f32
    %195 = vector.broadcast %cst_64 : f32 to vector<16x16xf32>
    %196 = arith.subf %195, %168 : vector<16x16xf32>
    %197 = arith.mulf %196, %131 : vector<16x16xf32>
    %198 = arith.addf %194, %197 : vector<16x16xf32>
    %199 = arith.mulf %168, %131 : vector<16x16xf32>
    %cst_65 = arith.constant 1.000000e+00 : f32
    %200 = vector.broadcast %cst_65 : f32 to vector<16x16xf32>
    %201 = arith.subf %200, %170 : vector<16x16xf32>
    %202 = arith.mulf %201, %136 : vector<16x16xf32>
    %203 = arith.addf %199, %202 : vector<16x16xf32>
    %204 = arith.mulf %170, %136 : vector<16x16xf32>
    %cst_66 = arith.constant 1.000000e+00 : f32
    %205 = vector.broadcast %cst_66 : f32 to vector<16x16xf32>
    %206 = arith.subf %205, %172 : vector<16x16xf32>
    %207 = arith.mulf %206, %141 : vector<16x16xf32>
    %208 = arith.addf %204, %207 : vector<16x16xf32>
    %209 = arith.mulf %172, %141 : vector<16x16xf32>
    %cst_67 = arith.constant 1.000000e+00 : f32
    %210 = vector.broadcast %cst_67 : f32 to vector<16x16xf32>
    %211 = arith.subf %210, %174 : vector<16x16xf32>
    %212 = arith.mulf %211, %146 : vector<16x16xf32>
    %213 = arith.addf %209, %212 : vector<16x16xf32>
    %214 = arith.mulf %174, %146 : vector<16x16xf32>
    %cst_68 = arith.constant 1.000000e+00 : f32
    %215 = vector.broadcast %cst_68 : f32 to vector<16x16xf32>
    %216 = arith.subf %215, %176 : vector<16x16xf32>
    %217 = arith.mulf %216, %151 : vector<16x16xf32>
    %218 = arith.addf %214, %217 : vector<16x16xf32>
    %219 = arith.mulf %176, %151 : vector<16x16xf32>
    %cst_69 = arith.constant 1.000000e+00 : f32
    %220 = vector.broadcast %cst_69 : f32 to vector<16x16xf32>
    %221 = arith.subf %220, %178 : vector<16x16xf32>
    %222 = arith.mulf %221, %156 : vector<16x16xf32>
    %223 = arith.addf %219, %222 : vector<16x16xf32>
    %cst_70 = arith.constant 0.833333313 : f32
    %224 = vector.broadcast %cst_70 : f32 to vector<16x16xf32>
    %225 = arith.mulf %5, %224 : vector<16x16xf32>
    %cst_71 = arith.constant -1.83333337 : f32
    %226 = vector.broadcast %cst_71 : f32 to vector<16x16xf32>
    %227 = arith.subf %225, %226 : vector<16x16xf32>
    %cst_72 = arith.constant -1.500000e+00 : f32
    %228 = vector.broadcast %cst_72 : f32 to vector<16x16xf32>
    %229 = arith.subf %225, %228 : vector<16x16xf32>
    %cst_73 = arith.constant -1.16666663 : f32
    %230 = vector.broadcast %cst_73 : f32 to vector<16x16xf32>
    %231 = arith.subf %225, %230 : vector<16x16xf32>
    %cst_74 = arith.constant -0.833333313 : f32
    %232 = vector.broadcast %cst_74 : f32 to vector<16x16xf32>
    %233 = arith.subf %225, %232 : vector<16x16xf32>
    %cst_75 = arith.constant -5.000000e-01 : f32
    %234 = vector.broadcast %cst_75 : f32 to vector<16x16xf32>
    %235 = arith.subf %225, %234 : vector<16x16xf32>
    %cst_76 = arith.constant -0.166666672 : f32
    %236 = vector.broadcast %cst_76 : f32 to vector<16x16xf32>
    %237 = arith.subf %225, %236 : vector<16x16xf32>
    %cst_77 = arith.constant 0.166666672 : f32
    %238 = vector.broadcast %cst_77 : f32 to vector<16x16xf32>
    %239 = arith.subf %225, %238 : vector<16x16xf32>
    %cst_78 = arith.constant 5.000000e-01 : f32
    %240 = vector.broadcast %cst_78 : f32 to vector<16x16xf32>
    %241 = arith.subf %225, %240 : vector<16x16xf32>
    %cst_79 = arith.constant 0.833333313 : f32
    %242 = vector.broadcast %cst_79 : f32 to vector<16x16xf32>
    %243 = arith.subf %225, %242 : vector<16x16xf32>
    %244 = arith.mulf %227, %183 : vector<16x16xf32>
    %cst_80 = arith.constant 1.000000e+00 : f32
    %245 = vector.broadcast %cst_80 : f32 to vector<16x16xf32>
    %246 = arith.subf %245, %229 : vector<16x16xf32>
    %247 = arith.mulf %246, %188 : vector<16x16xf32>
    %248 = arith.addf %244, %247 : vector<16x16xf32>
    %249 = arith.mulf %229, %188 : vector<16x16xf32>
    %cst_81 = arith.constant 1.000000e+00 : f32
    %250 = vector.broadcast %cst_81 : f32 to vector<16x16xf32>
    %251 = arith.subf %250, %231 : vector<16x16xf32>
    %252 = arith.mulf %251, %193 : vector<16x16xf32>
    %253 = arith.addf %249, %252 : vector<16x16xf32>
    %254 = arith.mulf %231, %193 : vector<16x16xf32>
    %cst_82 = arith.constant 1.000000e+00 : f32
    %255 = vector.broadcast %cst_82 : f32 to vector<16x16xf32>
    %256 = arith.subf %255, %233 : vector<16x16xf32>
    %257 = arith.mulf %256, %198 : vector<16x16xf32>
    %258 = arith.addf %254, %257 : vector<16x16xf32>
    %259 = arith.mulf %233, %198 : vector<16x16xf32>
    %cst_83 = arith.constant 1.000000e+00 : f32
    %260 = vector.broadcast %cst_83 : f32 to vector<16x16xf32>
    %261 = arith.subf %260, %235 : vector<16x16xf32>
    %262 = arith.mulf %261, %203 : vector<16x16xf32>
    %263 = arith.addf %259, %262 : vector<16x16xf32>
    %264 = arith.mulf %235, %203 : vector<16x16xf32>
    %cst_84 = arith.constant 1.000000e+00 : f32
    %265 = vector.broadcast %cst_84 : f32 to vector<16x16xf32>
    %266 = arith.subf %265, %237 : vector<16x16xf32>
    %267 = arith.mulf %266, %208 : vector<16x16xf32>
    %268 = arith.addf %264, %267 : vector<16x16xf32>
    %269 = arith.mulf %237, %208 : vector<16x16xf32>
    %cst_85 = arith.constant 1.000000e+00 : f32
    %270 = vector.broadcast %cst_85 : f32 to vector<16x16xf32>
    %271 = arith.subf %270, %239 : vector<16x16xf32>
    %272 = arith.mulf %271, %213 : vector<16x16xf32>
    %273 = arith.addf %269, %272 : vector<16x16xf32>
    %274 = arith.mulf %239, %213 : vector<16x16xf32>
    %cst_86 = arith.constant 1.000000e+00 : f32
    %275 = vector.broadcast %cst_86 : f32 to vector<16x16xf32>
    %276 = arith.subf %275, %241 : vector<16x16xf32>
    %277 = arith.mulf %276, %218 : vector<16x16xf32>
    %278 = arith.addf %274, %277 : vector<16x16xf32>
    %279 = arith.mulf %241, %218 : vector<16x16xf32>
    %cst_87 = arith.constant 1.000000e+00 : f32
    %280 = vector.broadcast %cst_87 : f32 to vector<16x16xf32>
    %281 = arith.subf %280, %243 : vector<16x16xf32>
    %282 = arith.mulf %281, %223 : vector<16x16xf32>
    %283 = arith.addf %279, %282 : vector<16x16xf32>
    %284 = arith.negf %5 : vector<16x16xf32>
    %285 = math.exp %284 : vector<16x16xf32>
    %cst_88 = arith.constant 1.000000e+00 : f32
    %286 = vector.broadcast %cst_88 : f32 to vector<16x16xf32>
    %287 = arith.addf %286, %285 : vector<16x16xf32>
    %288 = arith.divf %286, %287 : vector<16x16xf32>
    %289 = arith.mulf %5, %288 : vector<16x16xf32>
    %c0_89 = arith.constant 0 : index
    %c0_90 = arith.constant 0 : index
    %c0_91 = arith.constant 0 : index
    %c0_92 = arith.constant 0 : index
    %290 = vector.load %arg4[%c0_89, %c0_90, %c0_91, %c0_92] : memref<1x160x16x16xf32, #tpu.memory_space<vmem>>, vector<1x1x16x16xf32>
    %291 = vector.shape_cast %290 : vector<1x1x16x16xf32> to vector<16x16xf32>
    %292 = arith.mulf %291, %248 : vector<16x16xf32>
    %c0_93 = arith.constant 0 : index
    %c1 = arith.constant 1 : index
    %c0_94 = arith.constant 0 : index
    %c0_95 = arith.constant 0 : index
    %293 = vector.load %arg4[%c0_93, %c1, %c0_94, %c0_95] : memref<1x160x16x16xf32, #tpu.memory_space<vmem>>, vector<1x1x16x16xf32>
    %294 = vector.shape_cast %293 : vector<1x1x16x16xf32> to vector<16x16xf32>
    %295 = arith.mulf %294, %253 : vector<16x16xf32>
    %296 = arith.addf %292, %295 : vector<16x16xf32>
    %c0_96 = arith.constant 0 : index
    %c2 = arith.constant 2 : index
    %c0_97 = arith.constant 0 : index
    %c0_98 = arith.constant 0 : index
    %297 = vector.load %arg4[%c0_96, %c2, %c0_97, %c0_98] : memref<1x160x16x16xf32, #tpu.memory_space<vmem>>, vector<1x1x16x16xf32>
    %298 = vector.shape_cast %297 : vector<1x1x16x16xf32> to vector<16x16xf32>
    %299 = arith.mulf %298, %258 : vector<16x16xf32>
    %300 = arith.addf %296, %299 : vector<16x16xf32>
    %c0_99 = arith.constant 0 : index
    %c3 = arith.constant 3 : index
    %c0_100 = arith.constant 0 : index
    %c0_101 = arith.constant 0 : index
    %301 = vector.load %arg4[%c0_99, %c3, %c0_100, %c0_101] : memref<1x160x16x16xf32, #tpu.memory_space<vmem>>, vector<1x1x16x16xf32>
    %302 = vector.shape_cast %301 : vector<1x1x16x16xf32> to vector<16x16xf32>
    %303 = arith.mulf %302, %263 : vector<16x16xf32>
    %304 = arith.addf %300, %303 : vector<16x16xf32>
    %c0_102 = arith.constant 0 : index
    %c4 = arith.constant 4 : index
    %c0_103 = arith.constant 0 : index
    %c0_104 = arith.constant 0 : index
    %305 = vector.load %arg4[%c0_102, %c4, %c0_103, %c0_104] : memref<1x160x16x16xf32, #tpu.memory_space<vmem>>, vector<1x1x16x16xf32>
    %306 = vector.shape_cast %305 : vector<1x1x16x16xf32> to vector<16x16xf32>
    %307 = arith.mulf %306, %268 : vector<16x16xf32>
    %308 = arith.addf %304, %307 : vector<16x16xf32>
    %c0_105 = arith.constant 0 : index
    %c5 = arith.constant 5 : index
    %c0_106 = arith.constant 0 : index
    %c0_107 = arith.constant 0 : index
    %309 = vector.load %arg4[%c0_105, %c5, %c0_106, %c0_107] : memref<1x160x16x16xf32, #tpu.memory_space<vmem>>, vector<1x1x16x16xf32>
    %310 = vector.shape_cast %309 : vector<1x1x16x16xf32> to vector<16x16xf32>
    %311 = arith.mulf %310, %273 : vector<16x16xf32>
    %312 = arith.addf %308, %311 : vector<16x16xf32>
    %c0_108 = arith.constant 0 : index
    %c6 = arith.constant 6 : index
    %c0_109 = arith.constant 0 : index
    %c0_110 = arith.constant 0 : index
    %313 = vector.load %arg4[%c0_108, %c6, %c0_109, %c0_110] : memref<1x160x16x16xf32, #tpu.memory_space<vmem>>, vector<1x1x16x16xf32>
    %314 = vector.shape_cast %313 : vector<1x1x16x16xf32> to vector<16x16xf32>
    %315 = arith.mulf %314, %278 : vector<16x16xf32>
    %316 = arith.addf %312, %315 : vector<16x16xf32>
    %c0_111 = arith.constant 0 : index
    %c7 = arith.constant 7 : index
    %c0_112 = arith.constant 0 : index
    %c0_113 = arith.constant 0 : index
    %317 = vector.load %arg4[%c0_111, %c7, %c0_112, %c0_113] : memref<1x160x16x16xf32, #tpu.memory_space<vmem>>, vector<1x1x16x16xf32>
    %318 = vector.shape_cast %317 : vector<1x1x16x16xf32> to vector<16x16xf32>
    %319 = arith.mulf %318, %283 : vector<16x16xf32>
    %320 = arith.addf %316, %319 : vector<16x16xf32>
    %c0_114 = arith.constant 0 : index
    %c128 = arith.constant 128 : index
    %c0_115 = arith.constant 0 : index
    %c0_116 = arith.constant 0 : index
    %321 = vector.load %arg4[%c0_114, %c128, %c0_115, %c0_116] : memref<1x160x16x16xf32, #tpu.memory_space<vmem>>, vector<1x1x16x16xf32>
    %322 = vector.shape_cast %321 : vector<1x1x16x16xf32> to vector<16x16xf32>
    %c0_117 = arith.constant 0 : index
    %c144 = arith.constant 144 : index
    %c0_118 = arith.constant 0 : index
    %c0_119 = arith.constant 0 : index
    %323 = vector.load %arg4[%c0_117, %c144, %c0_118, %c0_119] : memref<1x160x16x16xf32, #tpu.memory_space<vmem>>, vector<1x1x16x16xf32>
    %324 = vector.shape_cast %323 : vector<1x1x16x16xf32> to vector<16x16xf32>
    %325 = arith.mulf %322, %320 : vector<16x16xf32>
    %326 = arith.addf %0, %325 : vector<16x16xf32>
    %327 = arith.mulf %324, %289 : vector<16x16xf32>
    %328 = arith.addf %326, %327 : vector<16x16xf32>
    %c0_120 = arith.constant 0 : index
    %c8 = arith.constant 8 : index
    %c0_121 = arith.constant 0 : index
    %c0_122 = arith.constant 0 : index
    %329 = vector.load %arg4[%c0_120, %c8, %c0_121, %c0_122] : memref<1x160x16x16xf32, #tpu.memory_space<vmem>>, vector<1x1x16x16xf32>
    %330 = vector.shape_cast %329 : vector<1x1x16x16xf32> to vector<16x16xf32>
    %331 = arith.mulf %330, %248 : vector<16x16xf32>
    %c0_123 = arith.constant 0 : index
    %c9 = arith.constant 9 : index
    %c0_124 = arith.constant 0 : index
    %c0_125 = arith.constant 0 : index
    %332 = vector.load %arg4[%c0_123, %c9, %c0_124, %c0_125] : memref<1x160x16x16xf32, #tpu.memory_space<vmem>>, vector<1x1x16x16xf32>
    %333 = vector.shape_cast %332 : vector<1x1x16x16xf32> to vector<16x16xf32>
    %334 = arith.mulf %333, %253 : vector<16x16xf32>
    %335 = arith.addf %331, %334 : vector<16x16xf32>
    %c0_126 = arith.constant 0 : index
    %c10 = arith.constant 10 : index
    %c0_127 = arith.constant 0 : index
    %c0_128 = arith.constant 0 : index
    %336 = vector.load %arg4[%c0_126, %c10, %c0_127, %c0_128] : memref<1x160x16x16xf32, #tpu.memory_space<vmem>>, vector<1x1x16x16xf32>
    %337 = vector.shape_cast %336 : vector<1x1x16x16xf32> to vector<16x16xf32>
    %338 = arith.mulf %337, %258 : vector<16x16xf32>
    %339 = arith.addf %335, %338 : vector<16x16xf32>
    %c0_129 = arith.constant 0 : index
    %c11 = arith.constant 11 : index
    %c0_130 = arith.constant 0 : index
    %c0_131 = arith.constant 0 : index
    %340 = vector.load %arg4[%c0_129, %c11, %c0_130, %c0_131] : memref<1x160x16x16xf32, #tpu.memory_space<vmem>>, vector<1x1x16x16xf32>
    %341 = vector.shape_cast %340 : vector<1x1x16x16xf32> to vector<16x16xf32>
    %342 = arith.mulf %341, %263 : vector<16x16xf32>
    %343 = arith.addf %339, %342 : vector<16x16xf32>
    %c0_132 = arith.constant 0 : index
    %c12 = arith.constant 12 : index
    %c0_133 = arith.constant 0 : index
    %c0_134 = arith.constant 0 : index
    %344 = vector.load %arg4[%c0_132, %c12, %c0_133, %c0_134] : memref<1x160x16x16xf32, #tpu.memory_space<vmem>>, vector<1x1x16x16xf32>
    %345 = vector.shape_cast %344 : vector<1x1x16x16xf32> to vector<16x16xf32>
    %346 = arith.mulf %345, %268 : vector<16x16xf32>
    %347 = arith.addf %343, %346 : vector<16x16xf32>
    %c0_135 = arith.constant 0 : index
    %c13 = arith.constant 13 : index
    %c0_136 = arith.constant 0 : index
    %c0_137 = arith.constant 0 : index
    %348 = vector.load %arg4[%c0_135, %c13, %c0_136, %c0_137] : memref<1x160x16x16xf32, #tpu.memory_space<vmem>>, vector<1x1x16x16xf32>
    %349 = vector.shape_cast %348 : vector<1x1x16x16xf32> to vector<16x16xf32>
    %350 = arith.mulf %349, %273 : vector<16x16xf32>
    %351 = arith.addf %347, %350 : vector<16x16xf32>
    %c0_138 = arith.constant 0 : index
    %c14 = arith.constant 14 : index
    %c0_139 = arith.constant 0 : index
    %c0_140 = arith.constant 0 : index
    %352 = vector.load %arg4[%c0_138, %c14, %c0_139, %c0_140] : memref<1x160x16x16xf32, #tpu.memory_space<vmem>>, vector<1x1x16x16xf32>
    %353 = vector.shape_cast %352 : vector<1x1x16x16xf32> to vector<16x16xf32>
    %354 = arith.mulf %353, %278 : vector<16x16xf32>
    %355 = arith.addf %351, %354 : vector<16x16xf32>
    %c0_141 = arith.constant 0 : index
    %c15 = arith.constant 15 : index
    %c0_142 = arith.constant 0 : index
    %c0_143 = arith.constant 0 : index
    %356 = vector.load %arg4[%c0_141, %c15, %c0_142, %c0_143] : memref<1x160x16x16xf32, #tpu.memory_space<vmem>>, vector<1x1x16x16xf32>
    %357 = vector.shape_cast %356 : vector<1x1x16x16xf32> to vector<16x16xf32>
    %358 = arith.mulf %357, %283 : vector<16x16xf32>
    %359 = arith.addf %355, %358 : vector<16x16xf32>
    %c0_144 = arith.constant 0 : index
    %c129 = arith.constant 129 : index
    %c0_145 = arith.constant 0 : index
    %c0_146 = arith.constant 0 : index
    %360 = vector.load %arg4[%c0_144, %c129, %c0_145, %c0_146] : memref<1x160x16x16xf32, #tpu.memory_space<vmem>>, vector<1x1x16x16xf32>
    %361 = vector.shape_cast %360 : vector<1x1x16x16xf32> to vector<16x16xf32>
    %c0_147 = arith.constant 0 : index
    %c145 = arith.constant 145 : index
    %c0_148 = arith.constant 0 : index
    %c0_149 = arith.constant 0 : index
    %362 = vector.load %arg4[%c0_147, %c145, %c0_148, %c0_149] : memref<1x160x16x16xf32, #tpu.memory_space<vmem>>, vector<1x1x16x16xf32>
    %363 = vector.shape_cast %362 : vector<1x1x16x16xf32> to vector<16x16xf32>
    %364 = arith.mulf %361, %359 : vector<16x16xf32>
    %365 = arith.addf %1, %364 : vector<16x16xf32>
    %366 = arith.mulf %363, %289 : vector<16x16xf32>
    %367 = arith.addf %365, %366 : vector<16x16xf32>
    %c0_150 = arith.constant 0 : index
    %c16 = arith.constant 16 : index
    %c0_151 = arith.constant 0 : index
    %c0_152 = arith.constant 0 : index
    %368 = vector.load %arg4[%c0_150, %c16, %c0_151, %c0_152] : memref<1x160x16x16xf32, #tpu.memory_space<vmem>>, vector<1x1x16x16xf32>
    %369 = vector.shape_cast %368 : vector<1x1x16x16xf32> to vector<16x16xf32>
    %370 = arith.mulf %369, %248 : vector<16x16xf32>
    %c0_153 = arith.constant 0 : index
    %c17 = arith.constant 17 : index
    %c0_154 = arith.constant 0 : index
    %c0_155 = arith.constant 0 : index
    %371 = vector.load %arg4[%c0_153, %c17, %c0_154, %c0_155] : memref<1x160x16x16xf32, #tpu.memory_space<vmem>>, vector<1x1x16x16xf32>
    %372 = vector.shape_cast %371 : vector<1x1x16x16xf32> to vector<16x16xf32>
    %373 = arith.mulf %372, %253 : vector<16x16xf32>
    %374 = arith.addf %370, %373 : vector<16x16xf32>
    %c0_156 = arith.constant 0 : index
    %c18 = arith.constant 18 : index
    %c0_157 = arith.constant 0 : index
    %c0_158 = arith.constant 0 : index
    %375 = vector.load %arg4[%c0_156, %c18, %c0_157, %c0_158] : memref<1x160x16x16xf32, #tpu.memory_space<vmem>>, vector<1x1x16x16xf32>
    %376 = vector.shape_cast %375 : vector<1x1x16x16xf32> to vector<16x16xf32>
    %377 = arith.mulf %376, %258 : vector<16x16xf32>
    %378 = arith.addf %374, %377 : vector<16x16xf32>
    %c0_159 = arith.constant 0 : index
    %c19 = arith.constant 19 : index
    %c0_160 = arith.constant 0 : index
    %c0_161 = arith.constant 0 : index
    %379 = vector.load %arg4[%c0_159, %c19, %c0_160, %c0_161] : memref<1x160x16x16xf32, #tpu.memory_space<vmem>>, vector<1x1x16x16xf32>
    %380 = vector.shape_cast %379 : vector<1x1x16x16xf32> to vector<16x16xf32>
    %381 = arith.mulf %380, %263 : vector<16x16xf32>
    %382 = arith.addf %378, %381 : vector<16x16xf32>
    %c0_162 = arith.constant 0 : index
    %c20 = arith.constant 20 : index
    %c0_163 = arith.constant 0 : index
    %c0_164 = arith.constant 0 : index
    %383 = vector.load %arg4[%c0_162, %c20, %c0_163, %c0_164] : memref<1x160x16x16xf32, #tpu.memory_space<vmem>>, vector<1x1x16x16xf32>
    %384 = vector.shape_cast %383 : vector<1x1x16x16xf32> to vector<16x16xf32>
    %385 = arith.mulf %384, %268 : vector<16x16xf32>
    %386 = arith.addf %382, %385 : vector<16x16xf32>
    %c0_165 = arith.constant 0 : index
    %c21 = arith.constant 21 : index
    %c0_166 = arith.constant 0 : index
    %c0_167 = arith.constant 0 : index
    %387 = vector.load %arg4[%c0_165, %c21, %c0_166, %c0_167] : memref<1x160x16x16xf32, #tpu.memory_space<vmem>>, vector<1x1x16x16xf32>
    %388 = vector.shape_cast %387 : vector<1x1x16x16xf32> to vector<16x16xf32>
    %389 = arith.mulf %388, %273 : vector<16x16xf32>
    %390 = arith.addf %386, %389 : vector<16x16xf32>
    %c0_168 = arith.constant 0 : index
    %c22 = arith.constant 22 : index
    %c0_169 = arith.constant 0 : index
    %c0_170 = arith.constant 0 : index
    %391 = vector.load %arg4[%c0_168, %c22, %c0_169, %c0_170] : memref<1x160x16x16xf32, #tpu.memory_space<vmem>>, vector<1x1x16x16xf32>
    %392 = vector.shape_cast %391 : vector<1x1x16x16xf32> to vector<16x16xf32>
    %393 = arith.mulf %392, %278 : vector<16x16xf32>
    %394 = arith.addf %390, %393 : vector<16x16xf32>
    %c0_171 = arith.constant 0 : index
    %c23 = arith.constant 23 : index
    %c0_172 = arith.constant 0 : index
    %c0_173 = arith.constant 0 : index
    %395 = vector.load %arg4[%c0_171, %c23, %c0_172, %c0_173] : memref<1x160x16x16xf32, #tpu.memory_space<vmem>>, vector<1x1x16x16xf32>
    %396 = vector.shape_cast %395 : vector<1x1x16x16xf32> to vector<16x16xf32>
    %397 = arith.mulf %396, %283 : vector<16x16xf32>
    %398 = arith.addf %394, %397 : vector<16x16xf32>
    %c0_174 = arith.constant 0 : index
    %c130 = arith.constant 130 : index
    %c0_175 = arith.constant 0 : index
    %c0_176 = arith.constant 0 : index
    %399 = vector.load %arg4[%c0_174, %c130, %c0_175, %c0_176] : memref<1x160x16x16xf32, #tpu.memory_space<vmem>>, vector<1x1x16x16xf32>
    %400 = vector.shape_cast %399 : vector<1x1x16x16xf32> to vector<16x16xf32>
    %c0_177 = arith.constant 0 : index
    %c146 = arith.constant 146 : index
    %c0_178 = arith.constant 0 : index
    %c0_179 = arith.constant 0 : index
    %401 = vector.load %arg4[%c0_177, %c146, %c0_178, %c0_179] : memref<1x160x16x16xf32, #tpu.memory_space<vmem>>, vector<1x1x16x16xf32>
    %402 = vector.shape_cast %401 : vector<1x1x16x16xf32> to vector<16x16xf32>
    %403 = arith.mulf %400, %398 : vector<16x16xf32>
    %404 = arith.addf %2, %403 : vector<16x16xf32>
    %405 = arith.mulf %402, %289 : vector<16x16xf32>
    %406 = arith.addf %404, %405 : vector<16x16xf32>
    %c0_180 = arith.constant 0 : index
    %c24 = arith.constant 24 : index
    %c0_181 = arith.constant 0 : index
    %c0_182 = arith.constant 0 : index
    %407 = vector.load %arg4[%c0_180, %c24, %c0_181, %c0_182] : memref<1x160x16x16xf32, #tpu.memory_space<vmem>>, vector<1x1x16x16xf32>
    %408 = vector.shape_cast %407 : vector<1x1x16x16xf32> to vector<16x16xf32>
    %409 = arith.mulf %408, %248 : vector<16x16xf32>
    %c0_183 = arith.constant 0 : index
    %c25 = arith.constant 25 : index
    %c0_184 = arith.constant 0 : index
    %c0_185 = arith.constant 0 : index
    %410 = vector.load %arg4[%c0_183, %c25, %c0_184, %c0_185] : memref<1x160x16x16xf32, #tpu.memory_space<vmem>>, vector<1x1x16x16xf32>
    %411 = vector.shape_cast %410 : vector<1x1x16x16xf32> to vector<16x16xf32>
    %412 = arith.mulf %411, %253 : vector<16x16xf32>
    %413 = arith.addf %409, %412 : vector<16x16xf32>
    %c0_186 = arith.constant 0 : index
    %c26 = arith.constant 26 : index
    %c0_187 = arith.constant 0 : index
    %c0_188 = arith.constant 0 : index
    %414 = vector.load %arg4[%c0_186, %c26, %c0_187, %c0_188] : memref<1x160x16x16xf32, #tpu.memory_space<vmem>>, vector<1x1x16x16xf32>
    %415 = vector.shape_cast %414 : vector<1x1x16x16xf32> to vector<16x16xf32>
    %416 = arith.mulf %415, %258 : vector<16x16xf32>
    %417 = arith.addf %413, %416 : vector<16x16xf32>
    %c0_189 = arith.constant 0 : index
    %c27 = arith.constant 27 : index
    %c0_190 = arith.constant 0 : index
    %c0_191 = arith.constant 0 : index
    %418 = vector.load %arg4[%c0_189, %c27, %c0_190, %c0_191] : memref<1x160x16x16xf32, #tpu.memory_space<vmem>>, vector<1x1x16x16xf32>
    %419 = vector.shape_cast %418 : vector<1x1x16x16xf32> to vector<16x16xf32>
    %420 = arith.mulf %419, %263 : vector<16x16xf32>
    %421 = arith.addf %417, %420 : vector<16x16xf32>
    %c0_192 = arith.constant 0 : index
    %c28 = arith.constant 28 : index
    %c0_193 = arith.constant 0 : index
    %c0_194 = arith.constant 0 : index
    %422 = vector.load %arg4[%c0_192, %c28, %c0_193, %c0_194] : memref<1x160x16x16xf32, #tpu.memory_space<vmem>>, vector<1x1x16x16xf32>
    %423 = vector.shape_cast %422 : vector<1x1x16x16xf32> to vector<16x16xf32>
    %424 = arith.mulf %423, %268 : vector<16x16xf32>
    %425 = arith.addf %421, %424 : vector<16x16xf32>
    %c0_195 = arith.constant 0 : index
    %c29 = arith.constant 29 : index
    %c0_196 = arith.constant 0 : index
    %c0_197 = arith.constant 0 : index
    %426 = vector.load %arg4[%c0_195, %c29, %c0_196, %c0_197] : memref<1x160x16x16xf32, #tpu.memory_space<vmem>>, vector<1x1x16x16xf32>
    %427 = vector.shape_cast %426 : vector<1x1x16x16xf32> to vector<16x16xf32>
    %428 = arith.mulf %427, %273 : vector<16x16xf32>
    %429 = arith.addf %425, %428 : vector<16x16xf32>
    %c0_198 = arith.constant 0 : index
    %c30 = arith.constant 30 : index
    %c0_199 = arith.constant 0 : index
    %c0_200 = arith.constant 0 : index
    %430 = vector.load %arg4[%c0_198, %c30, %c0_199, %c0_200] : memref<1x160x16x16xf32, #tpu.memory_space<vmem>>, vector<1x1x16x16xf32>
    %431 = vector.shape_cast %430 : vector<1x1x16x16xf32> to vector<16x16xf32>
    %432 = arith.mulf %431, %278 : vector<16x16xf32>
    %433 = arith.addf %429, %432 : vector<16x16xf32>
    %c0_201 = arith.constant 0 : index
    %c31 = arith.constant 31 : index
    %c0_202 = arith.constant 0 : index
    %c0_203 = arith.constant 0 : index
    %434 = vector.load %arg4[%c0_201, %c31, %c0_202, %c0_203] : memref<1x160x16x16xf32, #tpu.memory_space<vmem>>, vector<1x1x16x16xf32>
    %435 = vector.shape_cast %434 : vector<1x1x16x16xf32> to vector<16x16xf32>
    %436 = arith.mulf %435, %283 : vector<16x16xf32>
    %437 = arith.addf %433, %436 : vector<16x16xf32>
    %c0_204 = arith.constant 0 : index
    %c131 = arith.constant 131 : index
    %c0_205 = arith.constant 0 : index
    %c0_206 = arith.constant 0 : index
    %438 = vector.load %arg4[%c0_204, %c131, %c0_205, %c0_206] : memref<1x160x16x16xf32, #tpu.memory_space<vmem>>, vector<1x1x16x16xf32>
    %439 = vector.shape_cast %438 : vector<1x1x16x16xf32> to vector<16x16xf32>
    %c0_207 = arith.constant 0 : index
    %c147 = arith.constant 147 : index
    %c0_208 = arith.constant 0 : index
    %c0_209 = arith.constant 0 : index
    %440 = vector.load %arg4[%c0_207, %c147, %c0_208, %c0_209] : memref<1x160x16x16xf32, #tpu.memory_space<vmem>>, vector<1x1x16x16xf32>
    %441 = vector.shape_cast %440 : vector<1x1x16x16xf32> to vector<16x16xf32>
    %442 = arith.mulf %439, %437 : vector<16x16xf32>
    %443 = arith.addf %3, %442 : vector<16x16xf32>
    %444 = arith.mulf %441, %289 : vector<16x16xf32>
    %445 = arith.addf %443, %444 : vector<16x16xf32>
    %c0_210 = arith.constant 0 : index
    %c1_211 = arith.constant 1 : index
    %c0_212 = arith.constant 0 : index
    %c0_213 = arith.constant 0 : index
    %446 = vector.load %arg3[%c0_210, %c1_211, %c0_212, %c0_213] : memref<1x4x16x16xf32, #tpu.memory_space<vmem>>, vector<1x1x16x16xf32>
    %447 = vector.shape_cast %446 : vector<1x1x16x16xf32> to vector<16x16xf32>
    %cst_214 = arith.constant -2.200000e+00 : f32
    %448 = vector.broadcast %cst_214 : f32 to vector<16x16xf32>
    %449 = arith.cmpf oge, %447, %448 : vector<16x16xf32>
    %cst_215 = arith.constant -1.800000e+00 : f32
    %450 = vector.broadcast %cst_215 : f32 to vector<16x16xf32>
    %451 = arith.cmpf olt, %447, %450 : vector<16x16xf32>
    %452 = arith.andi %449, %451 : vector<16x16xi1>
    %453 = arith.extui %452 : vector<16x16xi1> to vector<16x16xi32>
    %454 = arith.sitofp %453 : vector<16x16xi32> to vector<16x16xf32>
    %cst_216 = arith.constant -1.800000e+00 : f32
    %455 = vector.broadcast %cst_216 : f32 to vector<16x16xf32>
    %456 = arith.cmpf oge, %447, %455 : vector<16x16xf32>
    %cst_217 = arith.constant -1.400000e+00 : f32
    %457 = vector.broadcast %cst_217 : f32 to vector<16x16xf32>
    %458 = arith.cmpf olt, %447, %457 : vector<16x16xf32>
    %459 = arith.andi %456, %458 : vector<16x16xi1>
    %460 = arith.extui %459 : vector<16x16xi1> to vector<16x16xi32>
    %461 = arith.sitofp %460 : vector<16x16xi32> to vector<16x16xf32>
    %cst_218 = arith.constant -1.400000e+00 : f32
    %462 = vector.broadcast %cst_218 : f32 to vector<16x16xf32>
    %463 = arith.cmpf oge, %447, %462 : vector<16x16xf32>
    %cst_219 = arith.constant -1.000000e+00 : f32
    %464 = vector.broadcast %cst_219 : f32 to vector<16x16xf32>
    %465 = arith.cmpf olt, %447, %464 : vector<16x16xf32>
    %466 = arith.andi %463, %465 : vector<16x16xi1>
    %467 = arith.extui %466 : vector<16x16xi1> to vector<16x16xi32>
    %468 = arith.sitofp %467 : vector<16x16xi32> to vector<16x16xf32>
    %cst_220 = arith.constant -1.000000e+00 : f32
    %469 = vector.broadcast %cst_220 : f32 to vector<16x16xf32>
    %470 = arith.cmpf oge, %447, %469 : vector<16x16xf32>
    %cst_221 = arith.constant -6.000000e-01 : f32
    %471 = vector.broadcast %cst_221 : f32 to vector<16x16xf32>
    %472 = arith.cmpf olt, %447, %471 : vector<16x16xf32>
    %473 = arith.andi %470, %472 : vector<16x16xi1>
    %474 = arith.extui %473 : vector<16x16xi1> to vector<16x16xi32>
    %475 = arith.sitofp %474 : vector<16x16xi32> to vector<16x16xf32>
    %cst_222 = arith.constant -6.000000e-01 : f32
    %476 = vector.broadcast %cst_222 : f32 to vector<16x16xf32>
    %477 = arith.cmpf oge, %447, %476 : vector<16x16xf32>
    %cst_223 = arith.constant -2.000000e-01 : f32
    %478 = vector.broadcast %cst_223 : f32 to vector<16x16xf32>
    %479 = arith.cmpf olt, %447, %478 : vector<16x16xf32>
    %480 = arith.andi %477, %479 : vector<16x16xi1>
    %481 = arith.extui %480 : vector<16x16xi1> to vector<16x16xi32>
    %482 = arith.sitofp %481 : vector<16x16xi32> to vector<16x16xf32>
    %cst_224 = arith.constant -2.000000e-01 : f32
    %483 = vector.broadcast %cst_224 : f32 to vector<16x16xf32>
    %484 = arith.cmpf oge, %447, %483 : vector<16x16xf32>
    %cst_225 = arith.constant 2.000000e-01 : f32
    %485 = vector.broadcast %cst_225 : f32 to vector<16x16xf32>
    %486 = arith.cmpf olt, %447, %485 : vector<16x16xf32>
    %487 = arith.andi %484, %486 : vector<16x16xi1>
    %488 = arith.extui %487 : vector<16x16xi1> to vector<16x16xi32>
    %489 = arith.sitofp %488 : vector<16x16xi32> to vector<16x16xf32>
    %cst_226 = arith.constant 2.000000e-01 : f32
    %490 = vector.broadcast %cst_226 : f32 to vector<16x16xf32>
    %491 = arith.cmpf oge, %447, %490 : vector<16x16xf32>
    %cst_227 = arith.constant 6.000000e-01 : f32
    %492 = vector.broadcast %cst_227 : f32 to vector<16x16xf32>
    %493 = arith.cmpf olt, %447, %492 : vector<16x16xf32>
    %494 = arith.andi %491, %493 : vector<16x16xi1>
    %495 = arith.extui %494 : vector<16x16xi1> to vector<16x16xi32>
    %496 = arith.sitofp %495 : vector<16x16xi32> to vector<16x16xf32>
    %cst_228 = arith.constant 6.000000e-01 : f32
    %497 = vector.broadcast %cst_228 : f32 to vector<16x16xf32>
    %498 = arith.cmpf oge, %447, %497 : vector<16x16xf32>
    %cst_229 = arith.constant 1.000000e+00 : f32
    %499 = vector.broadcast %cst_229 : f32 to vector<16x16xf32>
    %500 = arith.cmpf olt, %447, %499 : vector<16x16xf32>
    %501 = arith.andi %498, %500 : vector<16x16xi1>
    %502 = arith.extui %501 : vector<16x16xi1> to vector<16x16xi32>
    %503 = arith.sitofp %502 : vector<16x16xi32> to vector<16x16xf32>
    %cst_230 = arith.constant 1.000000e+00 : f32
    %504 = vector.broadcast %cst_230 : f32 to vector<16x16xf32>
    %505 = arith.cmpf oge, %447, %504 : vector<16x16xf32>
    %cst_231 = arith.constant 1.400000e+00 : f32
    %506 = vector.broadcast %cst_231 : f32 to vector<16x16xf32>
    %507 = arith.cmpf olt, %447, %506 : vector<16x16xf32>
    %508 = arith.andi %505, %507 : vector<16x16xi1>
    %509 = arith.extui %508 : vector<16x16xi1> to vector<16x16xi32>
    %510 = arith.sitofp %509 : vector<16x16xi32> to vector<16x16xf32>
    %cst_232 = arith.constant 1.400000e+00 : f32
    %511 = vector.broadcast %cst_232 : f32 to vector<16x16xf32>
    %512 = arith.cmpf oge, %447, %511 : vector<16x16xf32>
    %cst_233 = arith.constant 1.800000e+00 : f32
    %513 = vector.broadcast %cst_233 : f32 to vector<16x16xf32>
    %514 = arith.cmpf olt, %447, %513 : vector<16x16xf32>
    %515 = arith.andi %512, %514 : vector<16x16xi1>
    %516 = arith.extui %515 : vector<16x16xi1> to vector<16x16xi32>
    %517 = arith.sitofp %516 : vector<16x16xi32> to vector<16x16xf32>
    %cst_234 = arith.constant 1.800000e+00 : f32
    %518 = vector.broadcast %cst_234 : f32 to vector<16x16xf32>
    %519 = arith.cmpf oge, %447, %518 : vector<16x16xf32>
    %cst_235 = arith.constant 2.200000e+00 : f32
    %520 = vector.broadcast %cst_235 : f32 to vector<16x16xf32>
    %521 = arith.cmpf olt, %447, %520 : vector<16x16xf32>
    %522 = arith.andi %519, %521 : vector<16x16xi1>
    %523 = arith.extui %522 : vector<16x16xi1> to vector<16x16xi32>
    %524 = arith.sitofp %523 : vector<16x16xi32> to vector<16x16xf32>
    %cst_236 = arith.constant 2.500000e+00 : f32
    %525 = vector.broadcast %cst_236 : f32 to vector<16x16xf32>
    %526 = arith.mulf %447, %525 : vector<16x16xf32>
    %cst_237 = arith.constant -5.500000e+00 : f32
    %527 = vector.broadcast %cst_237 : f32 to vector<16x16xf32>
    %528 = arith.subf %526, %527 : vector<16x16xf32>
    %cst_238 = arith.constant -4.500000e+00 : f32
    %529 = vector.broadcast %cst_238 : f32 to vector<16x16xf32>
    %530 = arith.subf %526, %529 : vector<16x16xf32>
    %cst_239 = arith.constant -3.500000e+00 : f32
    %531 = vector.broadcast %cst_239 : f32 to vector<16x16xf32>
    %532 = arith.subf %526, %531 : vector<16x16xf32>
    %cst_240 = arith.constant -2.500000e+00 : f32
    %533 = vector.broadcast %cst_240 : f32 to vector<16x16xf32>
    %534 = arith.subf %526, %533 : vector<16x16xf32>
    %cst_241 = arith.constant -1.500000e+00 : f32
    %535 = vector.broadcast %cst_241 : f32 to vector<16x16xf32>
    %536 = arith.subf %526, %535 : vector<16x16xf32>
    %cst_242 = arith.constant -5.000000e-01 : f32
    %537 = vector.broadcast %cst_242 : f32 to vector<16x16xf32>
    %538 = arith.subf %526, %537 : vector<16x16xf32>
    %cst_243 = arith.constant 5.000000e-01 : f32
    %539 = vector.broadcast %cst_243 : f32 to vector<16x16xf32>
    %540 = arith.subf %526, %539 : vector<16x16xf32>
    %cst_244 = arith.constant 1.500000e+00 : f32
    %541 = vector.broadcast %cst_244 : f32 to vector<16x16xf32>
    %542 = arith.subf %526, %541 : vector<16x16xf32>
    %cst_245 = arith.constant 2.500000e+00 : f32
    %543 = vector.broadcast %cst_245 : f32 to vector<16x16xf32>
    %544 = arith.subf %526, %543 : vector<16x16xf32>
    %cst_246 = arith.constant 3.500000e+00 : f32
    %545 = vector.broadcast %cst_246 : f32 to vector<16x16xf32>
    %546 = arith.subf %526, %545 : vector<16x16xf32>
    %cst_247 = arith.constant 4.500000e+00 : f32
    %547 = vector.broadcast %cst_247 : f32 to vector<16x16xf32>
    %548 = arith.subf %526, %547 : vector<16x16xf32>
    %549 = arith.mulf %528, %454 : vector<16x16xf32>
    %cst_248 = arith.constant 1.000000e+00 : f32
    %550 = vector.broadcast %cst_248 : f32 to vector<16x16xf32>
    %551 = arith.subf %550, %530 : vector<16x16xf32>
    %552 = arith.mulf %551, %461 : vector<16x16xf32>
    %553 = arith.addf %549, %552 : vector<16x16xf32>
    %554 = arith.mulf %530, %461 : vector<16x16xf32>
    %cst_249 = arith.constant 1.000000e+00 : f32
    %555 = vector.broadcast %cst_249 : f32 to vector<16x16xf32>
    %556 = arith.subf %555, %532 : vector<16x16xf32>
    %557 = arith.mulf %556, %468 : vector<16x16xf32>
    %558 = arith.addf %554, %557 : vector<16x16xf32>
    %559 = arith.mulf %532, %468 : vector<16x16xf32>
    %cst_250 = arith.constant 1.000000e+00 : f32
    %560 = vector.broadcast %cst_250 : f32 to vector<16x16xf32>
    %561 = arith.subf %560, %534 : vector<16x16xf32>
    %562 = arith.mulf %561, %475 : vector<16x16xf32>
    %563 = arith.addf %559, %562 : vector<16x16xf32>
    %564 = arith.mulf %534, %475 : vector<16x16xf32>
    %cst_251 = arith.constant 1.000000e+00 : f32
    %565 = vector.broadcast %cst_251 : f32 to vector<16x16xf32>
    %566 = arith.subf %565, %536 : vector<16x16xf32>
    %567 = arith.mulf %566, %482 : vector<16x16xf32>
    %568 = arith.addf %564, %567 : vector<16x16xf32>
    %569 = arith.mulf %536, %482 : vector<16x16xf32>
    %cst_252 = arith.constant 1.000000e+00 : f32
    %570 = vector.broadcast %cst_252 : f32 to vector<16x16xf32>
    %571 = arith.subf %570, %538 : vector<16x16xf32>
    %572 = arith.mulf %571, %489 : vector<16x16xf32>
    %573 = arith.addf %569, %572 : vector<16x16xf32>
    %574 = arith.mulf %538, %489 : vector<16x16xf32>
    %cst_253 = arith.constant 1.000000e+00 : f32
    %575 = vector.broadcast %cst_253 : f32 to vector<16x16xf32>
    %576 = arith.subf %575, %540 : vector<16x16xf32>
    %577 = arith.mulf %576, %496 : vector<16x16xf32>
    %578 = arith.addf %574, %577 : vector<16x16xf32>
    %579 = arith.mulf %540, %496 : vector<16x16xf32>
    %cst_254 = arith.constant 1.000000e+00 : f32
    %580 = vector.broadcast %cst_254 : f32 to vector<16x16xf32>
    %581 = arith.subf %580, %542 : vector<16x16xf32>
    %582 = arith.mulf %581, %503 : vector<16x16xf32>
    %583 = arith.addf %579, %582 : vector<16x16xf32>
    %584 = arith.mulf %542, %503 : vector<16x16xf32>
    %cst_255 = arith.constant 1.000000e+00 : f32
    %585 = vector.broadcast %cst_255 : f32 to vector<16x16xf32>
    %586 = arith.subf %585, %544 : vector<16x16xf32>
    %587 = arith.mulf %586, %510 : vector<16x16xf32>
    %588 = arith.addf %584, %587 : vector<16x16xf32>
    %589 = arith.mulf %544, %510 : vector<16x16xf32>
    %cst_256 = arith.constant 1.000000e+00 : f32
    %590 = vector.broadcast %cst_256 : f32 to vector<16x16xf32>
    %591 = arith.subf %590, %546 : vector<16x16xf32>
    %592 = arith.mulf %591, %517 : vector<16x16xf32>
    %593 = arith.addf %589, %592 : vector<16x16xf32>
    %594 = arith.mulf %546, %517 : vector<16x16xf32>
    %cst_257 = arith.constant 1.000000e+00 : f32
    %595 = vector.broadcast %cst_257 : f32 to vector<16x16xf32>
    %596 = arith.subf %595, %548 : vector<16x16xf32>
    %597 = arith.mulf %596, %524 : vector<16x16xf32>
    %598 = arith.addf %594, %597 : vector<16x16xf32>
    %cst_258 = arith.constant 1.250000e+00 : f32
    %599 = vector.broadcast %cst_258 : f32 to vector<16x16xf32>
    %600 = arith.mulf %447, %599 : vector<16x16xf32>
    %cst_259 = arith.constant -2.750000e+00 : f32
    %601 = vector.broadcast %cst_259 : f32 to vector<16x16xf32>
    %602 = arith.subf %600, %601 : vector<16x16xf32>
    %cst_260 = arith.constant -2.250000e+00 : f32
    %603 = vector.broadcast %cst_260 : f32 to vector<16x16xf32>
    %604 = arith.subf %600, %603 : vector<16x16xf32>
    %cst_261 = arith.constant -1.750000e+00 : f32
    %605 = vector.broadcast %cst_261 : f32 to vector<16x16xf32>
    %606 = arith.subf %600, %605 : vector<16x16xf32>
    %cst_262 = arith.constant -1.250000e+00 : f32
    %607 = vector.broadcast %cst_262 : f32 to vector<16x16xf32>
    %608 = arith.subf %600, %607 : vector<16x16xf32>
    %cst_263 = arith.constant -7.500000e-01 : f32
    %609 = vector.broadcast %cst_263 : f32 to vector<16x16xf32>
    %610 = arith.subf %600, %609 : vector<16x16xf32>
    %cst_264 = arith.constant -2.500000e-01 : f32
    %611 = vector.broadcast %cst_264 : f32 to vector<16x16xf32>
    %612 = arith.subf %600, %611 : vector<16x16xf32>
    %cst_265 = arith.constant 2.500000e-01 : f32
    %613 = vector.broadcast %cst_265 : f32 to vector<16x16xf32>
    %614 = arith.subf %600, %613 : vector<16x16xf32>
    %cst_266 = arith.constant 7.500000e-01 : f32
    %615 = vector.broadcast %cst_266 : f32 to vector<16x16xf32>
    %616 = arith.subf %600, %615 : vector<16x16xf32>
    %cst_267 = arith.constant 1.250000e+00 : f32
    %617 = vector.broadcast %cst_267 : f32 to vector<16x16xf32>
    %618 = arith.subf %600, %617 : vector<16x16xf32>
    %cst_268 = arith.constant 1.750000e+00 : f32
    %619 = vector.broadcast %cst_268 : f32 to vector<16x16xf32>
    %620 = arith.subf %600, %619 : vector<16x16xf32>
    %621 = arith.mulf %602, %553 : vector<16x16xf32>
    %cst_269 = arith.constant 1.000000e+00 : f32
    %622 = vector.broadcast %cst_269 : f32 to vector<16x16xf32>
    %623 = arith.subf %622, %604 : vector<16x16xf32>
    %624 = arith.mulf %623, %558 : vector<16x16xf32>
    %625 = arith.addf %621, %624 : vector<16x16xf32>
    %626 = arith.mulf %604, %558 : vector<16x16xf32>
    %cst_270 = arith.constant 1.000000e+00 : f32
    %627 = vector.broadcast %cst_270 : f32 to vector<16x16xf32>
    %628 = arith.subf %627, %606 : vector<16x16xf32>
    %629 = arith.mulf %628, %563 : vector<16x16xf32>
    %630 = arith.addf %626, %629 : vector<16x16xf32>
    %631 = arith.mulf %606, %563 : vector<16x16xf32>
    %cst_271 = arith.constant 1.000000e+00 : f32
    %632 = vector.broadcast %cst_271 : f32 to vector<16x16xf32>
    %633 = arith.subf %632, %608 : vector<16x16xf32>
    %634 = arith.mulf %633, %568 : vector<16x16xf32>
    %635 = arith.addf %631, %634 : vector<16x16xf32>
    %636 = arith.mulf %608, %568 : vector<16x16xf32>
    %cst_272 = arith.constant 1.000000e+00 : f32
    %637 = vector.broadcast %cst_272 : f32 to vector<16x16xf32>
    %638 = arith.subf %637, %610 : vector<16x16xf32>
    %639 = arith.mulf %638, %573 : vector<16x16xf32>
    %640 = arith.addf %636, %639 : vector<16x16xf32>
    %641 = arith.mulf %610, %573 : vector<16x16xf32>
    %cst_273 = arith.constant 1.000000e+00 : f32
    %642 = vector.broadcast %cst_273 : f32 to vector<16x16xf32>
    %643 = arith.subf %642, %612 : vector<16x16xf32>
    %644 = arith.mulf %643, %578 : vector<16x16xf32>
    %645 = arith.addf %641, %644 : vector<16x16xf32>
    %646 = arith.mulf %612, %578 : vector<16x16xf32>
    %cst_274 = arith.constant 1.000000e+00 : f32
    %647 = vector.broadcast %cst_274 : f32 to vector<16x16xf32>
    %648 = arith.subf %647, %614 : vector<16x16xf32>
    %649 = arith.mulf %648, %583 : vector<16x16xf32>
    %650 = arith.addf %646, %649 : vector<16x16xf32>
    %651 = arith.mulf %614, %583 : vector<16x16xf32>
    %cst_275 = arith.constant 1.000000e+00 : f32
    %652 = vector.broadcast %cst_275 : f32 to vector<16x16xf32>
    %653 = arith.subf %652, %616 : vector<16x16xf32>
    %654 = arith.mulf %653, %588 : vector<16x16xf32>
    %655 = arith.addf %651, %654 : vector<16x16xf32>
    %656 = arith.mulf %616, %588 : vector<16x16xf32>
    %cst_276 = arith.constant 1.000000e+00 : f32
    %657 = vector.broadcast %cst_276 : f32 to vector<16x16xf32>
    %658 = arith.subf %657, %618 : vector<16x16xf32>
    %659 = arith.mulf %658, %593 : vector<16x16xf32>
    %660 = arith.addf %656, %659 : vector<16x16xf32>
    %661 = arith.mulf %618, %593 : vector<16x16xf32>
    %cst_277 = arith.constant 1.000000e+00 : f32
    %662 = vector.broadcast %cst_277 : f32 to vector<16x16xf32>
    %663 = arith.subf %662, %620 : vector<16x16xf32>
    %664 = arith.mulf %663, %598 : vector<16x16xf32>
    %665 = arith.addf %661, %664 : vector<16x16xf32>
    %cst_278 = arith.constant 0.833333313 : f32
    %666 = vector.broadcast %cst_278 : f32 to vector<16x16xf32>
    %667 = arith.mulf %447, %666 : vector<16x16xf32>
    %cst_279 = arith.constant -1.83333337 : f32
    %668 = vector.broadcast %cst_279 : f32 to vector<16x16xf32>
    %669 = arith.subf %667, %668 : vector<16x16xf32>
    %cst_280 = arith.constant -1.500000e+00 : f32
    %670 = vector.broadcast %cst_280 : f32 to vector<16x16xf32>
    %671 = arith.subf %667, %670 : vector<16x16xf32>
    %cst_281 = arith.constant -1.16666663 : f32
    %672 = vector.broadcast %cst_281 : f32 to vector<16x16xf32>
    %673 = arith.subf %667, %672 : vector<16x16xf32>
    %cst_282 = arith.constant -0.833333313 : f32
    %674 = vector.broadcast %cst_282 : f32 to vector<16x16xf32>
    %675 = arith.subf %667, %674 : vector<16x16xf32>
    %cst_283 = arith.constant -5.000000e-01 : f32
    %676 = vector.broadcast %cst_283 : f32 to vector<16x16xf32>
    %677 = arith.subf %667, %676 : vector<16x16xf32>
    %cst_284 = arith.constant -0.166666672 : f32
    %678 = vector.broadcast %cst_284 : f32 to vector<16x16xf32>
    %679 = arith.subf %667, %678 : vector<16x16xf32>
    %cst_285 = arith.constant 0.166666672 : f32
    %680 = vector.broadcast %cst_285 : f32 to vector<16x16xf32>
    %681 = arith.subf %667, %680 : vector<16x16xf32>
    %cst_286 = arith.constant 5.000000e-01 : f32
    %682 = vector.broadcast %cst_286 : f32 to vector<16x16xf32>
    %683 = arith.subf %667, %682 : vector<16x16xf32>
    %cst_287 = arith.constant 0.833333313 : f32
    %684 = vector.broadcast %cst_287 : f32 to vector<16x16xf32>
    %685 = arith.subf %667, %684 : vector<16x16xf32>
    %686 = arith.mulf %669, %625 : vector<16x16xf32>
    %cst_288 = arith.constant 1.000000e+00 : f32
    %687 = vector.broadcast %cst_288 : f32 to vector<16x16xf32>
    %688 = arith.subf %687, %671 : vector<16x16xf32>
    %689 = arith.mulf %688, %630 : vector<16x16xf32>
    %690 = arith.addf %686, %689 : vector<16x16xf32>
    %691 = arith.mulf %671, %630 : vector<16x16xf32>
    %cst_289 = arith.constant 1.000000e+00 : f32
    %692 = vector.broadcast %cst_289 : f32 to vector<16x16xf32>
    %693 = arith.subf %692, %673 : vector<16x16xf32>
    %694 = arith.mulf %693, %635 : vector<16x16xf32>
    %695 = arith.addf %691, %694 : vector<16x16xf32>
    %696 = arith.mulf %673, %635 : vector<16x16xf32>
    %cst_290 = arith.constant 1.000000e+00 : f32
    %697 = vector.broadcast %cst_290 : f32 to vector<16x16xf32>
    %698 = arith.subf %697, %675 : vector<16x16xf32>
    %699 = arith.mulf %698, %640 : vector<16x16xf32>
    %700 = arith.addf %696, %699 : vector<16x16xf32>
    %701 = arith.mulf %675, %640 : vector<16x16xf32>
    %cst_291 = arith.constant 1.000000e+00 : f32
    %702 = vector.broadcast %cst_291 : f32 to vector<16x16xf32>
    %703 = arith.subf %702, %677 : vector<16x16xf32>
    %704 = arith.mulf %703, %645 : vector<16x16xf32>
    %705 = arith.addf %701, %704 : vector<16x16xf32>
    %706 = arith.mulf %677, %645 : vector<16x16xf32>
    %cst_292 = arith.constant 1.000000e+00 : f32
    %707 = vector.broadcast %cst_292 : f32 to vector<16x16xf32>
    %708 = arith.subf %707, %679 : vector<16x16xf32>
    %709 = arith.mulf %708, %650 : vector<16x16xf32>
    %710 = arith.addf %706, %709 : vector<16x16xf32>
    %711 = arith.mulf %679, %650 : vector<16x16xf32>
    %cst_293 = arith.constant 1.000000e+00 : f32
    %712 = vector.broadcast %cst_293 : f32 to vector<16x16xf32>
    %713 = arith.subf %712, %681 : vector<16x16xf32>
    %714 = arith.mulf %713, %655 : vector<16x16xf32>
    %715 = arith.addf %711, %714 : vector<16x16xf32>
    %716 = arith.mulf %681, %655 : vector<16x16xf32>
    %cst_294 = arith.constant 1.000000e+00 : f32
    %717 = vector.broadcast %cst_294 : f32 to vector<16x16xf32>
    %718 = arith.subf %717, %683 : vector<16x16xf32>
    %719 = arith.mulf %718, %660 : vector<16x16xf32>
    %720 = arith.addf %716, %719 : vector<16x16xf32>
    %721 = arith.mulf %683, %660 : vector<16x16xf32>
    %cst_295 = arith.constant 1.000000e+00 : f32
    %722 = vector.broadcast %cst_295 : f32 to vector<16x16xf32>
    %723 = arith.subf %722, %685 : vector<16x16xf32>
    %724 = arith.mulf %723, %665 : vector<16x16xf32>
    %725 = arith.addf %721, %724 : vector<16x16xf32>
    %726 = arith.negf %447 : vector<16x16xf32>
    %727 = math.exp %726 : vector<16x16xf32>
    %cst_296 = arith.constant 1.000000e+00 : f32
    %728 = vector.broadcast %cst_296 : f32 to vector<16x16xf32>
    %729 = arith.addf %728, %727 : vector<16x16xf32>
    %730 = arith.divf %728, %729 : vector<16x16xf32>
    %731 = arith.mulf %447, %730 : vector<16x16xf32>
    %c0_297 = arith.constant 0 : index
    %c32 = arith.constant 32 : index
    %c0_298 = arith.constant 0 : index
    %c0_299 = arith.constant 0 : index
    %732 = vector.load %arg4[%c0_297, %c32, %c0_298, %c0_299] : memref<1x160x16x16xf32, #tpu.memory_space<vmem>>, vector<1x1x16x16xf32>
    %733 = vector.shape_cast %732 : vector<1x1x16x16xf32> to vector<16x16xf32>
    %734 = arith.mulf %733, %690 : vector<16x16xf32>
    %c0_300 = arith.constant 0 : index
    %c33 = arith.constant 33 : index
    %c0_301 = arith.constant 0 : index
    %c0_302 = arith.constant 0 : index
    %735 = vector.load %arg4[%c0_300, %c33, %c0_301, %c0_302] : memref<1x160x16x16xf32, #tpu.memory_space<vmem>>, vector<1x1x16x16xf32>
    %736 = vector.shape_cast %735 : vector<1x1x16x16xf32> to vector<16x16xf32>
    %737 = arith.mulf %736, %695 : vector<16x16xf32>
    %738 = arith.addf %734, %737 : vector<16x16xf32>
    %c0_303 = arith.constant 0 : index
    %c34 = arith.constant 34 : index
    %c0_304 = arith.constant 0 : index
    %c0_305 = arith.constant 0 : index
    %739 = vector.load %arg4[%c0_303, %c34, %c0_304, %c0_305] : memref<1x160x16x16xf32, #tpu.memory_space<vmem>>, vector<1x1x16x16xf32>
    %740 = vector.shape_cast %739 : vector<1x1x16x16xf32> to vector<16x16xf32>
    %741 = arith.mulf %740, %700 : vector<16x16xf32>
    %742 = arith.addf %738, %741 : vector<16x16xf32>
    %c0_306 = arith.constant 0 : index
    %c35 = arith.constant 35 : index
    %c0_307 = arith.constant 0 : index
    %c0_308 = arith.constant 0 : index
    %743 = vector.load %arg4[%c0_306, %c35, %c0_307, %c0_308] : memref<1x160x16x16xf32, #tpu.memory_space<vmem>>, vector<1x1x16x16xf32>
    %744 = vector.shape_cast %743 : vector<1x1x16x16xf32> to vector<16x16xf32>
    %745 = arith.mulf %744, %705 : vector<16x16xf32>
    %746 = arith.addf %742, %745 : vector<16x16xf32>
    %c0_309 = arith.constant 0 : index
    %c36 = arith.constant 36 : index
    %c0_310 = arith.constant 0 : index
    %c0_311 = arith.constant 0 : index
    %747 = vector.load %arg4[%c0_309, %c36, %c0_310, %c0_311] : memref<1x160x16x16xf32, #tpu.memory_space<vmem>>, vector<1x1x16x16xf32>
    %748 = vector.shape_cast %747 : vector<1x1x16x16xf32> to vector<16x16xf32>
    %749 = arith.mulf %748, %710 : vector<16x16xf32>
    %750 = arith.addf %746, %749 : vector<16x16xf32>
    %c0_312 = arith.constant 0 : index
    %c37 = arith.constant 37 : index
    %c0_313 = arith.constant 0 : index
    %c0_314 = arith.constant 0 : index
    %751 = vector.load %arg4[%c0_312, %c37, %c0_313, %c0_314] : memref<1x160x16x16xf32, #tpu.memory_space<vmem>>, vector<1x1x16x16xf32>
    %752 = vector.shape_cast %751 : vector<1x1x16x16xf32> to vector<16x16xf32>
    %753 = arith.mulf %752, %715 : vector<16x16xf32>
    %754 = arith.addf %750, %753 : vector<16x16xf32>
    %c0_315 = arith.constant 0 : index
    %c38 = arith.constant 38 : index
    %c0_316 = arith.constant 0 : index
    %c0_317 = arith.constant 0 : index
    %755 = vector.load %arg4[%c0_315, %c38, %c0_316, %c0_317] : memref<1x160x16x16xf32, #tpu.memory_space<vmem>>, vector<1x1x16x16xf32>
    %756 = vector.shape_cast %755 : vector<1x1x16x16xf32> to vector<16x16xf32>
    %757 = arith.mulf %756, %720 : vector<16x16xf32>
    %758 = arith.addf %754, %757 : vector<16x16xf32>
    %c0_318 = arith.constant 0 : index
    %c39 = arith.constant 39 : index
    %c0_319 = arith.constant 0 : index
    %c0_320 = arith.constant 0 : index
    %759 = vector.load %arg4[%c0_318, %c39, %c0_319, %c0_320] : memref<1x160x16x16xf32, #tpu.memory_space<vmem>>, vector<1x1x16x16xf32>
    %760 = vector.shape_cast %759 : vector<1x1x16x16xf32> to vector<16x16xf32>
    %761 = arith.mulf %760, %725 : vector<16x16xf32>
    %762 = arith.addf %758, %761 : vector<16x16xf32>
    %c0_321 = arith.constant 0 : index
    %c132 = arith.constant 132 : index
    %c0_322 = arith.constant 0 : index
    %c0_323 = arith.constant 0 : index
    %763 = vector.load %arg4[%c0_321, %c132, %c0_322, %c0_323] : memref<1x160x16x16xf32, #tpu.memory_space<vmem>>, vector<1x1x16x16xf32>
    %764 = vector.shape_cast %763 : vector<1x1x16x16xf32> to vector<16x16xf32>
    %c0_324 = arith.constant 0 : index
    %c148 = arith.constant 148 : index
    %c0_325 = arith.constant 0 : index
    %c0_326 = arith.constant 0 : index
    %765 = vector.load %arg4[%c0_324, %c148, %c0_325, %c0_326] : memref<1x160x16x16xf32, #tpu.memory_space<vmem>>, vector<1x1x16x16xf32>
    %766 = vector.shape_cast %765 : vector<1x1x16x16xf32> to vector<16x16xf32>
    %767 = arith.mulf %764, %762 : vector<16x16xf32>
    %768 = arith.addf %328, %767 : vector<16x16xf32>
    %769 = arith.mulf %766, %731 : vector<16x16xf32>
    %770 = arith.addf %768, %769 : vector<16x16xf32>
    %c0_327 = arith.constant 0 : index
    %c40 = arith.constant 40 : index
    %c0_328 = arith.constant 0 : index
    %c0_329 = arith.constant 0 : index
    %771 = vector.load %arg4[%c0_327, %c40, %c0_328, %c0_329] : memref<1x160x16x16xf32, #tpu.memory_space<vmem>>, vector<1x1x16x16xf32>
    %772 = vector.shape_cast %771 : vector<1x1x16x16xf32> to vector<16x16xf32>
    %773 = arith.mulf %772, %690 : vector<16x16xf32>
    %c0_330 = arith.constant 0 : index
    %c41 = arith.constant 41 : index
    %c0_331 = arith.constant 0 : index
    %c0_332 = arith.constant 0 : index
    %774 = vector.load %arg4[%c0_330, %c41, %c0_331, %c0_332] : memref<1x160x16x16xf32, #tpu.memory_space<vmem>>, vector<1x1x16x16xf32>
    %775 = vector.shape_cast %774 : vector<1x1x16x16xf32> to vector<16x16xf32>
    %776 = arith.mulf %775, %695 : vector<16x16xf32>
    %777 = arith.addf %773, %776 : vector<16x16xf32>
    %c0_333 = arith.constant 0 : index
    %c42 = arith.constant 42 : index
    %c0_334 = arith.constant 0 : index
    %c0_335 = arith.constant 0 : index
    %778 = vector.load %arg4[%c0_333, %c42, %c0_334, %c0_335] : memref<1x160x16x16xf32, #tpu.memory_space<vmem>>, vector<1x1x16x16xf32>
    %779 = vector.shape_cast %778 : vector<1x1x16x16xf32> to vector<16x16xf32>
    %780 = arith.mulf %779, %700 : vector<16x16xf32>
    %781 = arith.addf %777, %780 : vector<16x16xf32>
    %c0_336 = arith.constant 0 : index
    %c43 = arith.constant 43 : index
    %c0_337 = arith.constant 0 : index
    %c0_338 = arith.constant 0 : index
    %782 = vector.load %arg4[%c0_336, %c43, %c0_337, %c0_338] : memref<1x160x16x16xf32, #tpu.memory_space<vmem>>, vector<1x1x16x16xf32>
    %783 = vector.shape_cast %782 : vector<1x1x16x16xf32> to vector<16x16xf32>
    %784 = arith.mulf %783, %705 : vector<16x16xf32>
    %785 = arith.addf %781, %784 : vector<16x16xf32>
    %c0_339 = arith.constant 0 : index
    %c44 = arith.constant 44 : index
    %c0_340 = arith.constant 0 : index
    %c0_341 = arith.constant 0 : index
    %786 = vector.load %arg4[%c0_339, %c44, %c0_340, %c0_341] : memref<1x160x16x16xf32, #tpu.memory_space<vmem>>, vector<1x1x16x16xf32>
    %787 = vector.shape_cast %786 : vector<1x1x16x16xf32> to vector<16x16xf32>
    %788 = arith.mulf %787, %710 : vector<16x16xf32>
    %789 = arith.addf %785, %788 : vector<16x16xf32>
    %c0_342 = arith.constant 0 : index
    %c45 = arith.constant 45 : index
    %c0_343 = arith.constant 0 : index
    %c0_344 = arith.constant 0 : index
    %790 = vector.load %arg4[%c0_342, %c45, %c0_343, %c0_344] : memref<1x160x16x16xf32, #tpu.memory_space<vmem>>, vector<1x1x16x16xf32>
    %791 = vector.shape_cast %790 : vector<1x1x16x16xf32> to vector<16x16xf32>
    %792 = arith.mulf %791, %715 : vector<16x16xf32>
    %793 = arith.addf %789, %792 : vector<16x16xf32>
    %c0_345 = arith.constant 0 : index
    %c46 = arith.constant 46 : index
    %c0_346 = arith.constant 0 : index
    %c0_347 = arith.constant 0 : index
    %794 = vector.load %arg4[%c0_345, %c46, %c0_346, %c0_347] : memref<1x160x16x16xf32, #tpu.memory_space<vmem>>, vector<1x1x16x16xf32>
    %795 = vector.shape_cast %794 : vector<1x1x16x16xf32> to vector<16x16xf32>
    %796 = arith.mulf %795, %720 : vector<16x16xf32>
    %797 = arith.addf %793, %796 : vector<16x16xf32>
    %c0_348 = arith.constant 0 : index
    %c47 = arith.constant 47 : index
    %c0_349 = arith.constant 0 : index
    %c0_350 = arith.constant 0 : index
    %798 = vector.load %arg4[%c0_348, %c47, %c0_349, %c0_350] : memref<1x160x16x16xf32, #tpu.memory_space<vmem>>, vector<1x1x16x16xf32>
    %799 = vector.shape_cast %798 : vector<1x1x16x16xf32> to vector<16x16xf32>
    %800 = arith.mulf %799, %725 : vector<16x16xf32>
    %801 = arith.addf %797, %800 : vector<16x16xf32>
    %c0_351 = arith.constant 0 : index
    %c133 = arith.constant 133 : index
    %c0_352 = arith.constant 0 : index
    %c0_353 = arith.constant 0 : index
    %802 = vector.load %arg4[%c0_351, %c133, %c0_352, %c0_353] : memref<1x160x16x16xf32, #tpu.memory_space<vmem>>, vector<1x1x16x16xf32>
    %803 = vector.shape_cast %802 : vector<1x1x16x16xf32> to vector<16x16xf32>
    %c0_354 = arith.constant 0 : index
    %c149 = arith.constant 149 : index
    %c0_355 = arith.constant 0 : index
    %c0_356 = arith.constant 0 : index
    %804 = vector.load %arg4[%c0_354, %c149, %c0_355, %c0_356] : memref<1x160x16x16xf32, #tpu.memory_space<vmem>>, vector<1x1x16x16xf32>
    %805 = vector.shape_cast %804 : vector<1x1x16x16xf32> to vector<16x16xf32>
    %806 = arith.mulf %803, %801 : vector<16x16xf32>
    %807 = arith.addf %367, %806 : vector<16x16xf32>
    %808 = arith.mulf %805, %731 : vector<16x16xf32>
    %809 = arith.addf %807, %808 : vector<16x16xf32>
    %c0_357 = arith.constant 0 : index
    %c48 = arith.constant 48 : index
    %c0_358 = arith.constant 0 : index
    %c0_359 = arith.constant 0 : index
    %810 = vector.load %arg4[%c0_357, %c48, %c0_358, %c0_359] : memref<1x160x16x16xf32, #tpu.memory_space<vmem>>, vector<1x1x16x16xf32>
    %811 = vector.shape_cast %810 : vector<1x1x16x16xf32> to vector<16x16xf32>
    %812 = arith.mulf %811, %690 : vector<16x16xf32>
    %c0_360 = arith.constant 0 : index
    %c49 = arith.constant 49 : index
    %c0_361 = arith.constant 0 : index
    %c0_362 = arith.constant 0 : index
    %813 = vector.load %arg4[%c0_360, %c49, %c0_361, %c0_362] : memref<1x160x16x16xf32, #tpu.memory_space<vmem>>, vector<1x1x16x16xf32>
    %814 = vector.shape_cast %813 : vector<1x1x16x16xf32> to vector<16x16xf32>
    %815 = arith.mulf %814, %695 : vector<16x16xf32>
    %816 = arith.addf %812, %815 : vector<16x16xf32>
    %c0_363 = arith.constant 0 : index
    %c50 = arith.constant 50 : index
    %c0_364 = arith.constant 0 : index
    %c0_365 = arith.constant 0 : index
    %817 = vector.load %arg4[%c0_363, %c50, %c0_364, %c0_365] : memref<1x160x16x16xf32, #tpu.memory_space<vmem>>, vector<1x1x16x16xf32>
    %818 = vector.shape_cast %817 : vector<1x1x16x16xf32> to vector<16x16xf32>
    %819 = arith.mulf %818, %700 : vector<16x16xf32>
    %820 = arith.addf %816, %819 : vector<16x16xf32>
    %c0_366 = arith.constant 0 : index
    %c51 = arith.constant 51 : index
    %c0_367 = arith.constant 0 : index
    %c0_368 = arith.constant 0 : index
    %821 = vector.load %arg4[%c0_366, %c51, %c0_367, %c0_368] : memref<1x160x16x16xf32, #tpu.memory_space<vmem>>, vector<1x1x16x16xf32>
    %822 = vector.shape_cast %821 : vector<1x1x16x16xf32> to vector<16x16xf32>
    %823 = arith.mulf %822, %705 : vector<16x16xf32>
    %824 = arith.addf %820, %823 : vector<16x16xf32>
    %c0_369 = arith.constant 0 : index
    %c52 = arith.constant 52 : index
    %c0_370 = arith.constant 0 : index
    %c0_371 = arith.constant 0 : index
    %825 = vector.load %arg4[%c0_369, %c52, %c0_370, %c0_371] : memref<1x160x16x16xf32, #tpu.memory_space<vmem>>, vector<1x1x16x16xf32>
    %826 = vector.shape_cast %825 : vector<1x1x16x16xf32> to vector<16x16xf32>
    %827 = arith.mulf %826, %710 : vector<16x16xf32>
    %828 = arith.addf %824, %827 : vector<16x16xf32>
    %c0_372 = arith.constant 0 : index
    %c53 = arith.constant 53 : index
    %c0_373 = arith.constant 0 : index
    %c0_374 = arith.constant 0 : index
    %829 = vector.load %arg4[%c0_372, %c53, %c0_373, %c0_374] : memref<1x160x16x16xf32, #tpu.memory_space<vmem>>, vector<1x1x16x16xf32>
    %830 = vector.shape_cast %829 : vector<1x1x16x16xf32> to vector<16x16xf32>
    %831 = arith.mulf %830, %715 : vector<16x16xf32>
    %832 = arith.addf %828, %831 : vector<16x16xf32>
    %c0_375 = arith.constant 0 : index
    %c54 = arith.constant 54 : index
    %c0_376 = arith.constant 0 : index
    %c0_377 = arith.constant 0 : index
    %833 = vector.load %arg4[%c0_375, %c54, %c0_376, %c0_377] : memref<1x160x16x16xf32, #tpu.memory_space<vmem>>, vector<1x1x16x16xf32>
    %834 = vector.shape_cast %833 : vector<1x1x16x16xf32> to vector<16x16xf32>
    %835 = arith.mulf %834, %720 : vector<16x16xf32>
    %836 = arith.addf %832, %835 : vector<16x16xf32>
    %c0_378 = arith.constant 0 : index
    %c55 = arith.constant 55 : index
    %c0_379 = arith.constant 0 : index
    %c0_380 = arith.constant 0 : index
    %837 = vector.load %arg4[%c0_378, %c55, %c0_379, %c0_380] : memref<1x160x16x16xf32, #tpu.memory_space<vmem>>, vector<1x1x16x16xf32>
    %838 = vector.shape_cast %837 : vector<1x1x16x16xf32> to vector<16x16xf32>
    %839 = arith.mulf %838, %725 : vector<16x16xf32>
    %840 = arith.addf %836, %839 : vector<16x16xf32>
    %c0_381 = arith.constant 0 : index
    %c134 = arith.constant 134 : index
    %c0_382 = arith.constant 0 : index
    %c0_383 = arith.constant 0 : index
    %841 = vector.load %arg4[%c0_381, %c134, %c0_382, %c0_383] : memref<1x160x16x16xf32, #tpu.memory_space<vmem>>, vector<1x1x16x16xf32>
    %842 = vector.shape_cast %841 : vector<1x1x16x16xf32> to vector<16x16xf32>
    %c0_384 = arith.constant 0 : index
    %c150 = arith.constant 150 : index
    %c0_385 = arith.constant 0 : index
    %c0_386 = arith.constant 0 : index
    %843 = vector.load %arg4[%c0_384, %c150, %c0_385, %c0_386] : memref<1x160x16x16xf32, #tpu.memory_space<vmem>>, vector<1x1x16x16xf32>
    %844 = vector.shape_cast %843 : vector<1x1x16x16xf32> to vector<16x16xf32>
    %845 = arith.mulf %842, %840 : vector<16x16xf32>
    %846 = arith.addf %406, %845 : vector<16x16xf32>
    %847 = arith.mulf %844, %731 : vector<16x16xf32>
    %848 = arith.addf %846, %847 : vector<16x16xf32>
    %c0_387 = arith.constant 0 : index
    %c56 = arith.constant 56 : index
    %c0_388 = arith.constant 0 : index
    %c0_389 = arith.constant 0 : index
    %849 = vector.load %arg4[%c0_387, %c56, %c0_388, %c0_389] : memref<1x160x16x16xf32, #tpu.memory_space<vmem>>, vector<1x1x16x16xf32>
    %850 = vector.shape_cast %849 : vector<1x1x16x16xf32> to vector<16x16xf32>
    %851 = arith.mulf %850, %690 : vector<16x16xf32>
    %c0_390 = arith.constant 0 : index
    %c57 = arith.constant 57 : index
    %c0_391 = arith.constant 0 : index
    %c0_392 = arith.constant 0 : index
    %852 = vector.load %arg4[%c0_390, %c57, %c0_391, %c0_392] : memref<1x160x16x16xf32, #tpu.memory_space<vmem>>, vector<1x1x16x16xf32>
    %853 = vector.shape_cast %852 : vector<1x1x16x16xf32> to vector<16x16xf32>
    %854 = arith.mulf %853, %695 : vector<16x16xf32>
    %855 = arith.addf %851, %854 : vector<16x16xf32>
    %c0_393 = arith.constant 0 : index
    %c58 = arith.constant 58 : index
    %c0_394 = arith.constant 0 : index
    %c0_395 = arith.constant 0 : index
    %856 = vector.load %arg4[%c0_393, %c58, %c0_394, %c0_395] : memref<1x160x16x16xf32, #tpu.memory_space<vmem>>, vector<1x1x16x16xf32>
    %857 = vector.shape_cast %856 : vector<1x1x16x16xf32> to vector<16x16xf32>
    %858 = arith.mulf %857, %700 : vector<16x16xf32>
    %859 = arith.addf %855, %858 : vector<16x16xf32>
    %c0_396 = arith.constant 0 : index
    %c59 = arith.constant 59 : index
    %c0_397 = arith.constant 0 : index
    %c0_398 = arith.constant 0 : index
    %860 = vector.load %arg4[%c0_396, %c59, %c0_397, %c0_398] : memref<1x160x16x16xf32, #tpu.memory_space<vmem>>, vector<1x1x16x16xf32>
    %861 = vector.shape_cast %860 : vector<1x1x16x16xf32> to vector<16x16xf32>
    %862 = arith.mulf %861, %705 : vector<16x16xf32>
    %863 = arith.addf %859, %862 : vector<16x16xf32>
    %c0_399 = arith.constant 0 : index
    %c60 = arith.constant 60 : index
    %c0_400 = arith.constant 0 : index
    %c0_401 = arith.constant 0 : index
    %864 = vector.load %arg4[%c0_399, %c60, %c0_400, %c0_401] : memref<1x160x16x16xf32, #tpu.memory_space<vmem>>, vector<1x1x16x16xf32>
    %865 = vector.shape_cast %864 : vector<1x1x16x16xf32> to vector<16x16xf32>
    %866 = arith.mulf %865, %710 : vector<16x16xf32>
    %867 = arith.addf %863, %866 : vector<16x16xf32>
    %c0_402 = arith.constant 0 : index
    %c61 = arith.constant 61 : index
    %c0_403 = arith.constant 0 : index
    %c0_404 = arith.constant 0 : index
    %868 = vector.load %arg4[%c0_402, %c61, %c0_403, %c0_404] : memref<1x160x16x16xf32, #tpu.memory_space<vmem>>, vector<1x1x16x16xf32>
    %869 = vector.shape_cast %868 : vector<1x1x16x16xf32> to vector<16x16xf32>
    %870 = arith.mulf %869, %715 : vector<16x16xf32>
    %871 = arith.addf %867, %870 : vector<16x16xf32>
    %c0_405 = arith.constant 0 : index
    %c62 = arith.constant 62 : index
    %c0_406 = arith.constant 0 : index
    %c0_407 = arith.constant 0 : index
    %872 = vector.load %arg4[%c0_405, %c62, %c0_406, %c0_407] : memref<1x160x16x16xf32, #tpu.memory_space<vmem>>, vector<1x1x16x16xf32>
    %873 = vector.shape_cast %872 : vector<1x1x16x16xf32> to vector<16x16xf32>
    %874 = arith.mulf %873, %720 : vector<16x16xf32>
    %875 = arith.addf %871, %874 : vector<16x16xf32>
    %c0_408 = arith.constant 0 : index
    %c63 = arith.constant 63 : index
    %c0_409 = arith.constant 0 : index
    %c0_410 = arith.constant 0 : index
    %876 = vector.load %arg4[%c0_408, %c63, %c0_409, %c0_410] : memref<1x160x16x16xf32, #tpu.memory_space<vmem>>, vector<1x1x16x16xf32>
    %877 = vector.shape_cast %876 : vector<1x1x16x16xf32> to vector<16x16xf32>
    %878 = arith.mulf %877, %725 : vector<16x16xf32>
    %879 = arith.addf %875, %878 : vector<16x16xf32>
    %c0_411 = arith.constant 0 : index
    %c135 = arith.constant 135 : index
    %c0_412 = arith.constant 0 : index
    %c0_413 = arith.constant 0 : index
    %880 = vector.load %arg4[%c0_411, %c135, %c0_412, %c0_413] : memref<1x160x16x16xf32, #tpu.memory_space<vmem>>, vector<1x1x16x16xf32>
    %881 = vector.shape_cast %880 : vector<1x1x16x16xf32> to vector<16x16xf32>
    %c0_414 = arith.constant 0 : index
    %c151 = arith.constant 151 : index
    %c0_415 = arith.constant 0 : index
    %c0_416 = arith.constant 0 : index
    %882 = vector.load %arg4[%c0_414, %c151, %c0_415, %c0_416] : memref<1x160x16x16xf32, #tpu.memory_space<vmem>>, vector<1x1x16x16xf32>
    %883 = vector.shape_cast %882 : vector<1x1x16x16xf32> to vector<16x16xf32>
    %884 = arith.mulf %881, %879 : vector<16x16xf32>
    %885 = arith.addf %445, %884 : vector<16x16xf32>
    %886 = arith.mulf %883, %731 : vector<16x16xf32>
    %887 = arith.addf %885, %886 : vector<16x16xf32>
    %c0_417 = arith.constant 0 : index
    %c2_418 = arith.constant 2 : index
    %c0_419 = arith.constant 0 : index
    %c0_420 = arith.constant 0 : index
    %888 = vector.load %arg3[%c0_417, %c2_418, %c0_419, %c0_420] : memref<1x4x16x16xf32, #tpu.memory_space<vmem>>, vector<1x1x16x16xf32>
    %889 = vector.shape_cast %888 : vector<1x1x16x16xf32> to vector<16x16xf32>
    %cst_421 = arith.constant -2.200000e+00 : f32
    %890 = vector.broadcast %cst_421 : f32 to vector<16x16xf32>
    %891 = arith.cmpf oge, %889, %890 : vector<16x16xf32>
    %cst_422 = arith.constant -1.800000e+00 : f32
    %892 = vector.broadcast %cst_422 : f32 to vector<16x16xf32>
    %893 = arith.cmpf olt, %889, %892 : vector<16x16xf32>
    %894 = arith.andi %891, %893 : vector<16x16xi1>
    %895 = arith.extui %894 : vector<16x16xi1> to vector<16x16xi32>
    %896 = arith.sitofp %895 : vector<16x16xi32> to vector<16x16xf32>
    %cst_423 = arith.constant -1.800000e+00 : f32
    %897 = vector.broadcast %cst_423 : f32 to vector<16x16xf32>
    %898 = arith.cmpf oge, %889, %897 : vector<16x16xf32>
    %cst_424 = arith.constant -1.400000e+00 : f32
    %899 = vector.broadcast %cst_424 : f32 to vector<16x16xf32>
    %900 = arith.cmpf olt, %889, %899 : vector<16x16xf32>
    %901 = arith.andi %898, %900 : vector<16x16xi1>
    %902 = arith.extui %901 : vector<16x16xi1> to vector<16x16xi32>
    %903 = arith.sitofp %902 : vector<16x16xi32> to vector<16x16xf32>
    %cst_425 = arith.constant -1.400000e+00 : f32
    %904 = vector.broadcast %cst_425 : f32 to vector<16x16xf32>
    %905 = arith.cmpf oge, %889, %904 : vector<16x16xf32>
    %cst_426 = arith.constant -1.000000e+00 : f32
    %906 = vector.broadcast %cst_426 : f32 to vector<16x16xf32>
    %907 = arith.cmpf olt, %889, %906 : vector<16x16xf32>
    %908 = arith.andi %905, %907 : vector<16x16xi1>
    %909 = arith.extui %908 : vector<16x16xi1> to vector<16x16xi32>
    %910 = arith.sitofp %909 : vector<16x16xi32> to vector<16x16xf32>
    %cst_427 = arith.constant -1.000000e+00 : f32
    %911 = vector.broadcast %cst_427 : f32 to vector<16x16xf32>
    %912 = arith.cmpf oge, %889, %911 : vector<16x16xf32>
    %cst_428 = arith.constant -6.000000e-01 : f32
    %913 = vector.broadcast %cst_428 : f32 to vector<16x16xf32>
    %914 = arith.cmpf olt, %889, %913 : vector<16x16xf32>
    %915 = arith.andi %912, %914 : vector<16x16xi1>
    %916 = arith.extui %915 : vector<16x16xi1> to vector<16x16xi32>
    %917 = arith.sitofp %916 : vector<16x16xi32> to vector<16x16xf32>
    %cst_429 = arith.constant -6.000000e-01 : f32
    %918 = vector.broadcast %cst_429 : f32 to vector<16x16xf32>
    %919 = arith.cmpf oge, %889, %918 : vector<16x16xf32>
    %cst_430 = arith.constant -2.000000e-01 : f32
    %920 = vector.broadcast %cst_430 : f32 to vector<16x16xf32>
    %921 = arith.cmpf olt, %889, %920 : vector<16x16xf32>
    %922 = arith.andi %919, %921 : vector<16x16xi1>
    %923 = arith.extui %922 : vector<16x16xi1> to vector<16x16xi32>
    %924 = arith.sitofp %923 : vector<16x16xi32> to vector<16x16xf32>
    %cst_431 = arith.constant -2.000000e-01 : f32
    %925 = vector.broadcast %cst_431 : f32 to vector<16x16xf32>
    %926 = arith.cmpf oge, %889, %925 : vector<16x16xf32>
    %cst_432 = arith.constant 2.000000e-01 : f32
    %927 = vector.broadcast %cst_432 : f32 to vector<16x16xf32>
    %928 = arith.cmpf olt, %889, %927 : vector<16x16xf32>
    %929 = arith.andi %926, %928 : vector<16x16xi1>
    %930 = arith.extui %929 : vector<16x16xi1> to vector<16x16xi32>
    %931 = arith.sitofp %930 : vector<16x16xi32> to vector<16x16xf32>
    %cst_433 = arith.constant 2.000000e-01 : f32
    %932 = vector.broadcast %cst_433 : f32 to vector<16x16xf32>
    %933 = arith.cmpf oge, %889, %932 : vector<16x16xf32>
    %cst_434 = arith.constant 6.000000e-01 : f32
    %934 = vector.broadcast %cst_434 : f32 to vector<16x16xf32>
    %935 = arith.cmpf olt, %889, %934 : vector<16x16xf32>
    %936 = arith.andi %933, %935 : vector<16x16xi1>
    %937 = arith.extui %936 : vector<16x16xi1> to vector<16x16xi32>
    %938 = arith.sitofp %937 : vector<16x16xi32> to vector<16x16xf32>
    %cst_435 = arith.constant 6.000000e-01 : f32
    %939 = vector.broadcast %cst_435 : f32 to vector<16x16xf32>
    %940 = arith.cmpf oge, %889, %939 : vector<16x16xf32>
    %cst_436 = arith.constant 1.000000e+00 : f32
    %941 = vector.broadcast %cst_436 : f32 to vector<16x16xf32>
    %942 = arith.cmpf olt, %889, %941 : vector<16x16xf32>
    %943 = arith.andi %940, %942 : vector<16x16xi1>
    %944 = arith.extui %943 : vector<16x16xi1> to vector<16x16xi32>
    %945 = arith.sitofp %944 : vector<16x16xi32> to vector<16x16xf32>
    %cst_437 = arith.constant 1.000000e+00 : f32
    %946 = vector.broadcast %cst_437 : f32 to vector<16x16xf32>
    %947 = arith.cmpf oge, %889, %946 : vector<16x16xf32>
    %cst_438 = arith.constant 1.400000e+00 : f32
    %948 = vector.broadcast %cst_438 : f32 to vector<16x16xf32>
    %949 = arith.cmpf olt, %889, %948 : vector<16x16xf32>
    %950 = arith.andi %947, %949 : vector<16x16xi1>
    %951 = arith.extui %950 : vector<16x16xi1> to vector<16x16xi32>
    %952 = arith.sitofp %951 : vector<16x16xi32> to vector<16x16xf32>
    %cst_439 = arith.constant 1.400000e+00 : f32
    %953 = vector.broadcast %cst_439 : f32 to vector<16x16xf32>
    %954 = arith.cmpf oge, %889, %953 : vector<16x16xf32>
    %cst_440 = arith.constant 1.800000e+00 : f32
    %955 = vector.broadcast %cst_440 : f32 to vector<16x16xf32>
    %956 = arith.cmpf olt, %889, %955 : vector<16x16xf32>
    %957 = arith.andi %954, %956 : vector<16x16xi1>
    %958 = arith.extui %957 : vector<16x16xi1> to vector<16x16xi32>
    %959 = arith.sitofp %958 : vector<16x16xi32> to vector<16x16xf32>
    %cst_441 = arith.constant 1.800000e+00 : f32
    %960 = vector.broadcast %cst_441 : f32 to vector<16x16xf32>
    %961 = arith.cmpf oge, %889, %960 : vector<16x16xf32>
    %cst_442 = arith.constant 2.200000e+00 : f32
    %962 = vector.broadcast %cst_442 : f32 to vector<16x16xf32>
    %963 = arith.cmpf olt, %889, %962 : vector<16x16xf32>
    %964 = arith.andi %961, %963 : vector<16x16xi1>
    %965 = arith.extui %964 : vector<16x16xi1> to vector<16x16xi32>
    %966 = arith.sitofp %965 : vector<16x16xi32> to vector<16x16xf32>
    %cst_443 = arith.constant 2.500000e+00 : f32
    %967 = vector.broadcast %cst_443 : f32 to vector<16x16xf32>
    %968 = arith.mulf %889, %967 : vector<16x16xf32>
    %cst_444 = arith.constant -5.500000e+00 : f32
    %969 = vector.broadcast %cst_444 : f32 to vector<16x16xf32>
    %970 = arith.subf %968, %969 : vector<16x16xf32>
    %cst_445 = arith.constant -4.500000e+00 : f32
    %971 = vector.broadcast %cst_445 : f32 to vector<16x16xf32>
    %972 = arith.subf %968, %971 : vector<16x16xf32>
    %cst_446 = arith.constant -3.500000e+00 : f32
    %973 = vector.broadcast %cst_446 : f32 to vector<16x16xf32>
    %974 = arith.subf %968, %973 : vector<16x16xf32>
    %cst_447 = arith.constant -2.500000e+00 : f32
    %975 = vector.broadcast %cst_447 : f32 to vector<16x16xf32>
    %976 = arith.subf %968, %975 : vector<16x16xf32>
    %cst_448 = arith.constant -1.500000e+00 : f32
    %977 = vector.broadcast %cst_448 : f32 to vector<16x16xf32>
    %978 = arith.subf %968, %977 : vector<16x16xf32>
    %cst_449 = arith.constant -5.000000e-01 : f32
    %979 = vector.broadcast %cst_449 : f32 to vector<16x16xf32>
    %980 = arith.subf %968, %979 : vector<16x16xf32>
    %cst_450 = arith.constant 5.000000e-01 : f32
    %981 = vector.broadcast %cst_450 : f32 to vector<16x16xf32>
    %982 = arith.subf %968, %981 : vector<16x16xf32>
    %cst_451 = arith.constant 1.500000e+00 : f32
    %983 = vector.broadcast %cst_451 : f32 to vector<16x16xf32>
    %984 = arith.subf %968, %983 : vector<16x16xf32>
    %cst_452 = arith.constant 2.500000e+00 : f32
    %985 = vector.broadcast %cst_452 : f32 to vector<16x16xf32>
    %986 = arith.subf %968, %985 : vector<16x16xf32>
    %cst_453 = arith.constant 3.500000e+00 : f32
    %987 = vector.broadcast %cst_453 : f32 to vector<16x16xf32>
    %988 = arith.subf %968, %987 : vector<16x16xf32>
    %cst_454 = arith.constant 4.500000e+00 : f32
    %989 = vector.broadcast %cst_454 : f32 to vector<16x16xf32>
    %990 = arith.subf %968, %989 : vector<16x16xf32>
    %991 = arith.mulf %970, %896 : vector<16x16xf32>
    %cst_455 = arith.constant 1.000000e+00 : f32
    %992 = vector.broadcast %cst_455 : f32 to vector<16x16xf32>
    %993 = arith.subf %992, %972 : vector<16x16xf32>
    %994 = arith.mulf %993, %903 : vector<16x16xf32>
    %995 = arith.addf %991, %994 : vector<16x16xf32>
    %996 = arith.mulf %972, %903 : vector<16x16xf32>
    %cst_456 = arith.constant 1.000000e+00 : f32
    %997 = vector.broadcast %cst_456 : f32 to vector<16x16xf32>
    %998 = arith.subf %997, %974 : vector<16x16xf32>
    %999 = arith.mulf %998, %910 : vector<16x16xf32>
    %1000 = arith.addf %996, %999 : vector<16x16xf32>
    %1001 = arith.mulf %974, %910 : vector<16x16xf32>
    %cst_457 = arith.constant 1.000000e+00 : f32
    %1002 = vector.broadcast %cst_457 : f32 to vector<16x16xf32>
    %1003 = arith.subf %1002, %976 : vector<16x16xf32>
    %1004 = arith.mulf %1003, %917 : vector<16x16xf32>
    %1005 = arith.addf %1001, %1004 : vector<16x16xf32>
    %1006 = arith.mulf %976, %917 : vector<16x16xf32>
    %cst_458 = arith.constant 1.000000e+00 : f32
    %1007 = vector.broadcast %cst_458 : f32 to vector<16x16xf32>
    %1008 = arith.subf %1007, %978 : vector<16x16xf32>
    %1009 = arith.mulf %1008, %924 : vector<16x16xf32>
    %1010 = arith.addf %1006, %1009 : vector<16x16xf32>
    %1011 = arith.mulf %978, %924 : vector<16x16xf32>
    %cst_459 = arith.constant 1.000000e+00 : f32
    %1012 = vector.broadcast %cst_459 : f32 to vector<16x16xf32>
    %1013 = arith.subf %1012, %980 : vector<16x16xf32>
    %1014 = arith.mulf %1013, %931 : vector<16x16xf32>
    %1015 = arith.addf %1011, %1014 : vector<16x16xf32>
    %1016 = arith.mulf %980, %931 : vector<16x16xf32>
    %cst_460 = arith.constant 1.000000e+00 : f32
    %1017 = vector.broadcast %cst_460 : f32 to vector<16x16xf32>
    %1018 = arith.subf %1017, %982 : vector<16x16xf32>
    %1019 = arith.mulf %1018, %938 : vector<16x16xf32>
    %1020 = arith.addf %1016, %1019 : vector<16x16xf32>
    %1021 = arith.mulf %982, %938 : vector<16x16xf32>
    %cst_461 = arith.constant 1.000000e+00 : f32
    %1022 = vector.broadcast %cst_461 : f32 to vector<16x16xf32>
    %1023 = arith.subf %1022, %984 : vector<16x16xf32>
    %1024 = arith.mulf %1023, %945 : vector<16x16xf32>
    %1025 = arith.addf %1021, %1024 : vector<16x16xf32>
    %1026 = arith.mulf %984, %945 : vector<16x16xf32>
    %cst_462 = arith.constant 1.000000e+00 : f32
    %1027 = vector.broadcast %cst_462 : f32 to vector<16x16xf32>
    %1028 = arith.subf %1027, %986 : vector<16x16xf32>
    %1029 = arith.mulf %1028, %952 : vector<16x16xf32>
    %1030 = arith.addf %1026, %1029 : vector<16x16xf32>
    %1031 = arith.mulf %986, %952 : vector<16x16xf32>
    %cst_463 = arith.constant 1.000000e+00 : f32
    %1032 = vector.broadcast %cst_463 : f32 to vector<16x16xf32>
    %1033 = arith.subf %1032, %988 : vector<16x16xf32>
    %1034 = arith.mulf %1033, %959 : vector<16x16xf32>
    %1035 = arith.addf %1031, %1034 : vector<16x16xf32>
    %1036 = arith.mulf %988, %959 : vector<16x16xf32>
    %cst_464 = arith.constant 1.000000e+00 : f32
    %1037 = vector.broadcast %cst_464 : f32 to vector<16x16xf32>
    %1038 = arith.subf %1037, %990 : vector<16x16xf32>
    %1039 = arith.mulf %1038, %966 : vector<16x16xf32>
    %1040 = arith.addf %1036, %1039 : vector<16x16xf32>
    %cst_465 = arith.constant 1.250000e+00 : f32
    %1041 = vector.broadcast %cst_465 : f32 to vector<16x16xf32>
    %1042 = arith.mulf %889, %1041 : vector<16x16xf32>
    %cst_466 = arith.constant -2.750000e+00 : f32
    %1043 = vector.broadcast %cst_466 : f32 to vector<16x16xf32>
    %1044 = arith.subf %1042, %1043 : vector<16x16xf32>
    %cst_467 = arith.constant -2.250000e+00 : f32
    %1045 = vector.broadcast %cst_467 : f32 to vector<16x16xf32>
    %1046 = arith.subf %1042, %1045 : vector<16x16xf32>
    %cst_468 = arith.constant -1.750000e+00 : f32
    %1047 = vector.broadcast %cst_468 : f32 to vector<16x16xf32>
    %1048 = arith.subf %1042, %1047 : vector<16x16xf32>
    %cst_469 = arith.constant -1.250000e+00 : f32
    %1049 = vector.broadcast %cst_469 : f32 to vector<16x16xf32>
    %1050 = arith.subf %1042, %1049 : vector<16x16xf32>
    %cst_470 = arith.constant -7.500000e-01 : f32
    %1051 = vector.broadcast %cst_470 : f32 to vector<16x16xf32>
    %1052 = arith.subf %1042, %1051 : vector<16x16xf32>
    %cst_471 = arith.constant -2.500000e-01 : f32
    %1053 = vector.broadcast %cst_471 : f32 to vector<16x16xf32>
    %1054 = arith.subf %1042, %1053 : vector<16x16xf32>
    %cst_472 = arith.constant 2.500000e-01 : f32
    %1055 = vector.broadcast %cst_472 : f32 to vector<16x16xf32>
    %1056 = arith.subf %1042, %1055 : vector<16x16xf32>
    %cst_473 = arith.constant 7.500000e-01 : f32
    %1057 = vector.broadcast %cst_473 : f32 to vector<16x16xf32>
    %1058 = arith.subf %1042, %1057 : vector<16x16xf32>
    %cst_474 = arith.constant 1.250000e+00 : f32
    %1059 = vector.broadcast %cst_474 : f32 to vector<16x16xf32>
    %1060 = arith.subf %1042, %1059 : vector<16x16xf32>
    %cst_475 = arith.constant 1.750000e+00 : f32
    %1061 = vector.broadcast %cst_475 : f32 to vector<16x16xf32>
    %1062 = arith.subf %1042, %1061 : vector<16x16xf32>
    %1063 = arith.mulf %1044, %995 : vector<16x16xf32>
    %cst_476 = arith.constant 1.000000e+00 : f32
    %1064 = vector.broadcast %cst_476 : f32 to vector<16x16xf32>
    %1065 = arith.subf %1064, %1046 : vector<16x16xf32>
    %1066 = arith.mulf %1065, %1000 : vector<16x16xf32>
    %1067 = arith.addf %1063, %1066 : vector<16x16xf32>
    %1068 = arith.mulf %1046, %1000 : vector<16x16xf32>
    %cst_477 = arith.constant 1.000000e+00 : f32
    %1069 = vector.broadcast %cst_477 : f32 to vector<16x16xf32>
    %1070 = arith.subf %1069, %1048 : vector<16x16xf32>
    %1071 = arith.mulf %1070, %1005 : vector<16x16xf32>
    %1072 = arith.addf %1068, %1071 : vector<16x16xf32>
    %1073 = arith.mulf %1048, %1005 : vector<16x16xf32>
    %cst_478 = arith.constant 1.000000e+00 : f32
    %1074 = vector.broadcast %cst_478 : f32 to vector<16x16xf32>
    %1075 = arith.subf %1074, %1050 : vector<16x16xf32>
    %1076 = arith.mulf %1075, %1010 : vector<16x16xf32>
    %1077 = arith.addf %1073, %1076 : vector<16x16xf32>
    %1078 = arith.mulf %1050, %1010 : vector<16x16xf32>
    %cst_479 = arith.constant 1.000000e+00 : f32
    %1079 = vector.broadcast %cst_479 : f32 to vector<16x16xf32>
    %1080 = arith.subf %1079, %1052 : vector<16x16xf32>
    %1081 = arith.mulf %1080, %1015 : vector<16x16xf32>
    %1082 = arith.addf %1078, %1081 : vector<16x16xf32>
    %1083 = arith.mulf %1052, %1015 : vector<16x16xf32>
    %cst_480 = arith.constant 1.000000e+00 : f32
    %1084 = vector.broadcast %cst_480 : f32 to vector<16x16xf32>
    %1085 = arith.subf %1084, %1054 : vector<16x16xf32>
    %1086 = arith.mulf %1085, %1020 : vector<16x16xf32>
    %1087 = arith.addf %1083, %1086 : vector<16x16xf32>
    %1088 = arith.mulf %1054, %1020 : vector<16x16xf32>
    %cst_481 = arith.constant 1.000000e+00 : f32
    %1089 = vector.broadcast %cst_481 : f32 to vector<16x16xf32>
    %1090 = arith.subf %1089, %1056 : vector<16x16xf32>
    %1091 = arith.mulf %1090, %1025 : vector<16x16xf32>
    %1092 = arith.addf %1088, %1091 : vector<16x16xf32>
    %1093 = arith.mulf %1056, %1025 : vector<16x16xf32>
    %cst_482 = arith.constant 1.000000e+00 : f32
    %1094 = vector.broadcast %cst_482 : f32 to vector<16x16xf32>
    %1095 = arith.subf %1094, %1058 : vector<16x16xf32>
    %1096 = arith.mulf %1095, %1030 : vector<16x16xf32>
    %1097 = arith.addf %1093, %1096 : vector<16x16xf32>
    %1098 = arith.mulf %1058, %1030 : vector<16x16xf32>
    %cst_483 = arith.constant 1.000000e+00 : f32
    %1099 = vector.broadcast %cst_483 : f32 to vector<16x16xf32>
    %1100 = arith.subf %1099, %1060 : vector<16x16xf32>
    %1101 = arith.mulf %1100, %1035 : vector<16x16xf32>
    %1102 = arith.addf %1098, %1101 : vector<16x16xf32>
    %1103 = arith.mulf %1060, %1035 : vector<16x16xf32>
    %cst_484 = arith.constant 1.000000e+00 : f32
    %1104 = vector.broadcast %cst_484 : f32 to vector<16x16xf32>
    %1105 = arith.subf %1104, %1062 : vector<16x16xf32>
    %1106 = arith.mulf %1105, %1040 : vector<16x16xf32>
    %1107 = arith.addf %1103, %1106 : vector<16x16xf32>
    %cst_485 = arith.constant 0.833333313 : f32
    %1108 = vector.broadcast %cst_485 : f32 to vector<16x16xf32>
    %1109 = arith.mulf %889, %1108 : vector<16x16xf32>
    %cst_486 = arith.constant -1.83333337 : f32
    %1110 = vector.broadcast %cst_486 : f32 to vector<16x16xf32>
    %1111 = arith.subf %1109, %1110 : vector<16x16xf32>
    %cst_487 = arith.constant -1.500000e+00 : f32
    %1112 = vector.broadcast %cst_487 : f32 to vector<16x16xf32>
    %1113 = arith.subf %1109, %1112 : vector<16x16xf32>
    %cst_488 = arith.constant -1.16666663 : f32
    %1114 = vector.broadcast %cst_488 : f32 to vector<16x16xf32>
    %1115 = arith.subf %1109, %1114 : vector<16x16xf32>
    %cst_489 = arith.constant -0.833333313 : f32
    %1116 = vector.broadcast %cst_489 : f32 to vector<16x16xf32>
    %1117 = arith.subf %1109, %1116 : vector<16x16xf32>
    %cst_490 = arith.constant -5.000000e-01 : f32
    %1118 = vector.broadcast %cst_490 : f32 to vector<16x16xf32>
    %1119 = arith.subf %1109, %1118 : vector<16x16xf32>
    %cst_491 = arith.constant -0.166666672 : f32
    %1120 = vector.broadcast %cst_491 : f32 to vector<16x16xf32>
    %1121 = arith.subf %1109, %1120 : vector<16x16xf32>
    %cst_492 = arith.constant 0.166666672 : f32
    %1122 = vector.broadcast %cst_492 : f32 to vector<16x16xf32>
    %1123 = arith.subf %1109, %1122 : vector<16x16xf32>
    %cst_493 = arith.constant 5.000000e-01 : f32
    %1124 = vector.broadcast %cst_493 : f32 to vector<16x16xf32>
    %1125 = arith.subf %1109, %1124 : vector<16x16xf32>
    %cst_494 = arith.constant 0.833333313 : f32
    %1126 = vector.broadcast %cst_494 : f32 to vector<16x16xf32>
    %1127 = arith.subf %1109, %1126 : vector<16x16xf32>
    %1128 = arith.mulf %1111, %1067 : vector<16x16xf32>
    %cst_495 = arith.constant 1.000000e+00 : f32
    %1129 = vector.broadcast %cst_495 : f32 to vector<16x16xf32>
    %1130 = arith.subf %1129, %1113 : vector<16x16xf32>
    %1131 = arith.mulf %1130, %1072 : vector<16x16xf32>
    %1132 = arith.addf %1128, %1131 : vector<16x16xf32>
    %1133 = arith.mulf %1113, %1072 : vector<16x16xf32>
    %cst_496 = arith.constant 1.000000e+00 : f32
    %1134 = vector.broadcast %cst_496 : f32 to vector<16x16xf32>
    %1135 = arith.subf %1134, %1115 : vector<16x16xf32>
    %1136 = arith.mulf %1135, %1077 : vector<16x16xf32>
    %1137 = arith.addf %1133, %1136 : vector<16x16xf32>
    %1138 = arith.mulf %1115, %1077 : vector<16x16xf32>
    %cst_497 = arith.constant 1.000000e+00 : f32
    %1139 = vector.broadcast %cst_497 : f32 to vector<16x16xf32>
    %1140 = arith.subf %1139, %1117 : vector<16x16xf32>
    %1141 = arith.mulf %1140, %1082 : vector<16x16xf32>
    %1142 = arith.addf %1138, %1141 : vector<16x16xf32>
    %1143 = arith.mulf %1117, %1082 : vector<16x16xf32>
    %cst_498 = arith.constant 1.000000e+00 : f32
    %1144 = vector.broadcast %cst_498 : f32 to vector<16x16xf32>
    %1145 = arith.subf %1144, %1119 : vector<16x16xf32>
    %1146 = arith.mulf %1145, %1087 : vector<16x16xf32>
    %1147 = arith.addf %1143, %1146 : vector<16x16xf32>
    %1148 = arith.mulf %1119, %1087 : vector<16x16xf32>
    %cst_499 = arith.constant 1.000000e+00 : f32
    %1149 = vector.broadcast %cst_499 : f32 to vector<16x16xf32>
    %1150 = arith.subf %1149, %1121 : vector<16x16xf32>
    %1151 = arith.mulf %1150, %1092 : vector<16x16xf32>
    %1152 = arith.addf %1148, %1151 : vector<16x16xf32>
    %1153 = arith.mulf %1121, %1092 : vector<16x16xf32>
    %cst_500 = arith.constant 1.000000e+00 : f32
    %1154 = vector.broadcast %cst_500 : f32 to vector<16x16xf32>
    %1155 = arith.subf %1154, %1123 : vector<16x16xf32>
    %1156 = arith.mulf %1155, %1097 : vector<16x16xf32>
    %1157 = arith.addf %1153, %1156 : vector<16x16xf32>
    %1158 = arith.mulf %1123, %1097 : vector<16x16xf32>
    %cst_501 = arith.constant 1.000000e+00 : f32
    %1159 = vector.broadcast %cst_501 : f32 to vector<16x16xf32>
    %1160 = arith.subf %1159, %1125 : vector<16x16xf32>
    %1161 = arith.mulf %1160, %1102 : vector<16x16xf32>
    %1162 = arith.addf %1158, %1161 : vector<16x16xf32>
    %1163 = arith.mulf %1125, %1102 : vector<16x16xf32>
    %cst_502 = arith.constant 1.000000e+00 : f32
    %1164 = vector.broadcast %cst_502 : f32 to vector<16x16xf32>
    %1165 = arith.subf %1164, %1127 : vector<16x16xf32>
    %1166 = arith.mulf %1165, %1107 : vector<16x16xf32>
    %1167 = arith.addf %1163, %1166 : vector<16x16xf32>
    %1168 = arith.negf %889 : vector<16x16xf32>
    %1169 = math.exp %1168 : vector<16x16xf32>
    %cst_503 = arith.constant 1.000000e+00 : f32
    %1170 = vector.broadcast %cst_503 : f32 to vector<16x16xf32>
    %1171 = arith.addf %1170, %1169 : vector<16x16xf32>
    %1172 = arith.divf %1170, %1171 : vector<16x16xf32>
    %1173 = arith.mulf %889, %1172 : vector<16x16xf32>
    %c0_504 = arith.constant 0 : index
    %c64 = arith.constant 64 : index
    %c0_505 = arith.constant 0 : index
    %c0_506 = arith.constant 0 : index
    %1174 = vector.load %arg4[%c0_504, %c64, %c0_505, %c0_506] : memref<1x160x16x16xf32, #tpu.memory_space<vmem>>, vector<1x1x16x16xf32>
    %1175 = vector.shape_cast %1174 : vector<1x1x16x16xf32> to vector<16x16xf32>
    %1176 = arith.mulf %1175, %1132 : vector<16x16xf32>
    %c0_507 = arith.constant 0 : index
    %c65 = arith.constant 65 : index
    %c0_508 = arith.constant 0 : index
    %c0_509 = arith.constant 0 : index
    %1177 = vector.load %arg4[%c0_507, %c65, %c0_508, %c0_509] : memref<1x160x16x16xf32, #tpu.memory_space<vmem>>, vector<1x1x16x16xf32>
    %1178 = vector.shape_cast %1177 : vector<1x1x16x16xf32> to vector<16x16xf32>
    %1179 = arith.mulf %1178, %1137 : vector<16x16xf32>
    %1180 = arith.addf %1176, %1179 : vector<16x16xf32>
    %c0_510 = arith.constant 0 : index
    %c66 = arith.constant 66 : index
    %c0_511 = arith.constant 0 : index
    %c0_512 = arith.constant 0 : index
    %1181 = vector.load %arg4[%c0_510, %c66, %c0_511, %c0_512] : memref<1x160x16x16xf32, #tpu.memory_space<vmem>>, vector<1x1x16x16xf32>
    %1182 = vector.shape_cast %1181 : vector<1x1x16x16xf32> to vector<16x16xf32>
    %1183 = arith.mulf %1182, %1142 : vector<16x16xf32>
    %1184 = arith.addf %1180, %1183 : vector<16x16xf32>
    %c0_513 = arith.constant 0 : index
    %c67 = arith.constant 67 : index
    %c0_514 = arith.constant 0 : index
    %c0_515 = arith.constant 0 : index
    %1185 = vector.load %arg4[%c0_513, %c67, %c0_514, %c0_515] : memref<1x160x16x16xf32, #tpu.memory_space<vmem>>, vector<1x1x16x16xf32>
    %1186 = vector.shape_cast %1185 : vector<1x1x16x16xf32> to vector<16x16xf32>
    %1187 = arith.mulf %1186, %1147 : vector<16x16xf32>
    %1188 = arith.addf %1184, %1187 : vector<16x16xf32>
    %c0_516 = arith.constant 0 : index
    %c68 = arith.constant 68 : index
    %c0_517 = arith.constant 0 : index
    %c0_518 = arith.constant 0 : index
    %1189 = vector.load %arg4[%c0_516, %c68, %c0_517, %c0_518] : memref<1x160x16x16xf32, #tpu.memory_space<vmem>>, vector<1x1x16x16xf32>
    %1190 = vector.shape_cast %1189 : vector<1x1x16x16xf32> to vector<16x16xf32>
    %1191 = arith.mulf %1190, %1152 : vector<16x16xf32>
    %1192 = arith.addf %1188, %1191 : vector<16x16xf32>
    %c0_519 = arith.constant 0 : index
    %c69 = arith.constant 69 : index
    %c0_520 = arith.constant 0 : index
    %c0_521 = arith.constant 0 : index
    %1193 = vector.load %arg4[%c0_519, %c69, %c0_520, %c0_521] : memref<1x160x16x16xf32, #tpu.memory_space<vmem>>, vector<1x1x16x16xf32>
    %1194 = vector.shape_cast %1193 : vector<1x1x16x16xf32> to vector<16x16xf32>
    %1195 = arith.mulf %1194, %1157 : vector<16x16xf32>
    %1196 = arith.addf %1192, %1195 : vector<16x16xf32>
    %c0_522 = arith.constant 0 : index
    %c70 = arith.constant 70 : index
    %c0_523 = arith.constant 0 : index
    %c0_524 = arith.constant 0 : index
    %1197 = vector.load %arg4[%c0_522, %c70, %c0_523, %c0_524] : memref<1x160x16x16xf32, #tpu.memory_space<vmem>>, vector<1x1x16x16xf32>
    %1198 = vector.shape_cast %1197 : vector<1x1x16x16xf32> to vector<16x16xf32>
    %1199 = arith.mulf %1198, %1162 : vector<16x16xf32>
    %1200 = arith.addf %1196, %1199 : vector<16x16xf32>
    %c0_525 = arith.constant 0 : index
    %c71 = arith.constant 71 : index
    %c0_526 = arith.constant 0 : index
    %c0_527 = arith.constant 0 : index
    %1201 = vector.load %arg4[%c0_525, %c71, %c0_526, %c0_527] : memref<1x160x16x16xf32, #tpu.memory_space<vmem>>, vector<1x1x16x16xf32>
    %1202 = vector.shape_cast %1201 : vector<1x1x16x16xf32> to vector<16x16xf32>
    %1203 = arith.mulf %1202, %1167 : vector<16x16xf32>
    %1204 = arith.addf %1200, %1203 : vector<16x16xf32>
    %c0_528 = arith.constant 0 : index
    %c136 = arith.constant 136 : index
    %c0_529 = arith.constant 0 : index
    %c0_530 = arith.constant 0 : index
    %1205 = vector.load %arg4[%c0_528, %c136, %c0_529, %c0_530] : memref<1x160x16x16xf32, #tpu.memory_space<vmem>>, vector<1x1x16x16xf32>
    %1206 = vector.shape_cast %1205 : vector<1x1x16x16xf32> to vector<16x16xf32>
    %c0_531 = arith.constant 0 : index
    %c152 = arith.constant 152 : index
    %c0_532 = arith.constant 0 : index
    %c0_533 = arith.constant 0 : index
    %1207 = vector.load %arg4[%c0_531, %c152, %c0_532, %c0_533] : memref<1x160x16x16xf32, #tpu.memory_space<vmem>>, vector<1x1x16x16xf32>
    %1208 = vector.shape_cast %1207 : vector<1x1x16x16xf32> to vector<16x16xf32>
    %1209 = arith.mulf %1206, %1204 : vector<16x16xf32>
    %1210 = arith.addf %770, %1209 : vector<16x16xf32>
    %1211 = arith.mulf %1208, %1173 : vector<16x16xf32>
    %1212 = arith.addf %1210, %1211 : vector<16x16xf32>
    %c0_534 = arith.constant 0 : index
    %c72 = arith.constant 72 : index
    %c0_535 = arith.constant 0 : index
    %c0_536 = arith.constant 0 : index
    %1213 = vector.load %arg4[%c0_534, %c72, %c0_535, %c0_536] : memref<1x160x16x16xf32, #tpu.memory_space<vmem>>, vector<1x1x16x16xf32>
    %1214 = vector.shape_cast %1213 : vector<1x1x16x16xf32> to vector<16x16xf32>
    %1215 = arith.mulf %1214, %1132 : vector<16x16xf32>
    %c0_537 = arith.constant 0 : index
    %c73 = arith.constant 73 : index
    %c0_538 = arith.constant 0 : index
    %c0_539 = arith.constant 0 : index
    %1216 = vector.load %arg4[%c0_537, %c73, %c0_538, %c0_539] : memref<1x160x16x16xf32, #tpu.memory_space<vmem>>, vector<1x1x16x16xf32>
    %1217 = vector.shape_cast %1216 : vector<1x1x16x16xf32> to vector<16x16xf32>
    %1218 = arith.mulf %1217, %1137 : vector<16x16xf32>
    %1219 = arith.addf %1215, %1218 : vector<16x16xf32>
    %c0_540 = arith.constant 0 : index
    %c74 = arith.constant 74 : index
    %c0_541 = arith.constant 0 : index
    %c0_542 = arith.constant 0 : index
    %1220 = vector.load %arg4[%c0_540, %c74, %c0_541, %c0_542] : memref<1x160x16x16xf32, #tpu.memory_space<vmem>>, vector<1x1x16x16xf32>
    %1221 = vector.shape_cast %1220 : vector<1x1x16x16xf32> to vector<16x16xf32>
    %1222 = arith.mulf %1221, %1142 : vector<16x16xf32>
    %1223 = arith.addf %1219, %1222 : vector<16x16xf32>
    %c0_543 = arith.constant 0 : index
    %c75 = arith.constant 75 : index
    %c0_544 = arith.constant 0 : index
    %c0_545 = arith.constant 0 : index
    %1224 = vector.load %arg4[%c0_543, %c75, %c0_544, %c0_545] : memref<1x160x16x16xf32, #tpu.memory_space<vmem>>, vector<1x1x16x16xf32>
    %1225 = vector.shape_cast %1224 : vector<1x1x16x16xf32> to vector<16x16xf32>
    %1226 = arith.mulf %1225, %1147 : vector<16x16xf32>
    %1227 = arith.addf %1223, %1226 : vector<16x16xf32>
    %c0_546 = arith.constant 0 : index
    %c76 = arith.constant 76 : index
    %c0_547 = arith.constant 0 : index
    %c0_548 = arith.constant 0 : index
    %1228 = vector.load %arg4[%c0_546, %c76, %c0_547, %c0_548] : memref<1x160x16x16xf32, #tpu.memory_space<vmem>>, vector<1x1x16x16xf32>
    %1229 = vector.shape_cast %1228 : vector<1x1x16x16xf32> to vector<16x16xf32>
    %1230 = arith.mulf %1229, %1152 : vector<16x16xf32>
    %1231 = arith.addf %1227, %1230 : vector<16x16xf32>
    %c0_549 = arith.constant 0 : index
    %c77 = arith.constant 77 : index
    %c0_550 = arith.constant 0 : index
    %c0_551 = arith.constant 0 : index
    %1232 = vector.load %arg4[%c0_549, %c77, %c0_550, %c0_551] : memref<1x160x16x16xf32, #tpu.memory_space<vmem>>, vector<1x1x16x16xf32>
    %1233 = vector.shape_cast %1232 : vector<1x1x16x16xf32> to vector<16x16xf32>
    %1234 = arith.mulf %1233, %1157 : vector<16x16xf32>
    %1235 = arith.addf %1231, %1234 : vector<16x16xf32>
    %c0_552 = arith.constant 0 : index
    %c78 = arith.constant 78 : index
    %c0_553 = arith.constant 0 : index
    %c0_554 = arith.constant 0 : index
    %1236 = vector.load %arg4[%c0_552, %c78, %c0_553, %c0_554] : memref<1x160x16x16xf32, #tpu.memory_space<vmem>>, vector<1x1x16x16xf32>
    %1237 = vector.shape_cast %1236 : vector<1x1x16x16xf32> to vector<16x16xf32>
    %1238 = arith.mulf %1237, %1162 : vector<16x16xf32>
    %1239 = arith.addf %1235, %1238 : vector<16x16xf32>
    %c0_555 = arith.constant 0 : index
    %c79 = arith.constant 79 : index
    %c0_556 = arith.constant 0 : index
    %c0_557 = arith.constant 0 : index
    %1240 = vector.load %arg4[%c0_555, %c79, %c0_556, %c0_557] : memref<1x160x16x16xf32, #tpu.memory_space<vmem>>, vector<1x1x16x16xf32>
    %1241 = vector.shape_cast %1240 : vector<1x1x16x16xf32> to vector<16x16xf32>
    %1242 = arith.mulf %1241, %1167 : vector<16x16xf32>
    %1243 = arith.addf %1239, %1242 : vector<16x16xf32>
    %c0_558 = arith.constant 0 : index
    %c137 = arith.constant 137 : index
    %c0_559 = arith.constant 0 : index
    %c0_560 = arith.constant 0 : index
    %1244 = vector.load %arg4[%c0_558, %c137, %c0_559, %c0_560] : memref<1x160x16x16xf32, #tpu.memory_space<vmem>>, vector<1x1x16x16xf32>
    %1245 = vector.shape_cast %1244 : vector<1x1x16x16xf32> to vector<16x16xf32>
    %c0_561 = arith.constant 0 : index
    %c153 = arith.constant 153 : index
    %c0_562 = arith.constant 0 : index
    %c0_563 = arith.constant 0 : index
    %1246 = vector.load %arg4[%c0_561, %c153, %c0_562, %c0_563] : memref<1x160x16x16xf32, #tpu.memory_space<vmem>>, vector<1x1x16x16xf32>
    %1247 = vector.shape_cast %1246 : vector<1x1x16x16xf32> to vector<16x16xf32>
    %1248 = arith.mulf %1245, %1243 : vector<16x16xf32>
    %1249 = arith.addf %809, %1248 : vector<16x16xf32>
    %1250 = arith.mulf %1247, %1173 : vector<16x16xf32>
    %1251 = arith.addf %1249, %1250 : vector<16x16xf32>
    %c0_564 = arith.constant 0 : index
    %c80 = arith.constant 80 : index
    %c0_565 = arith.constant 0 : index
    %c0_566 = arith.constant 0 : index
    %1252 = vector.load %arg4[%c0_564, %c80, %c0_565, %c0_566] : memref<1x160x16x16xf32, #tpu.memory_space<vmem>>, vector<1x1x16x16xf32>
    %1253 = vector.shape_cast %1252 : vector<1x1x16x16xf32> to vector<16x16xf32>
    %1254 = arith.mulf %1253, %1132 : vector<16x16xf32>
    %c0_567 = arith.constant 0 : index
    %c81 = arith.constant 81 : index
    %c0_568 = arith.constant 0 : index
    %c0_569 = arith.constant 0 : index
    %1255 = vector.load %arg4[%c0_567, %c81, %c0_568, %c0_569] : memref<1x160x16x16xf32, #tpu.memory_space<vmem>>, vector<1x1x16x16xf32>
    %1256 = vector.shape_cast %1255 : vector<1x1x16x16xf32> to vector<16x16xf32>
    %1257 = arith.mulf %1256, %1137 : vector<16x16xf32>
    %1258 = arith.addf %1254, %1257 : vector<16x16xf32>
    %c0_570 = arith.constant 0 : index
    %c82 = arith.constant 82 : index
    %c0_571 = arith.constant 0 : index
    %c0_572 = arith.constant 0 : index
    %1259 = vector.load %arg4[%c0_570, %c82, %c0_571, %c0_572] : memref<1x160x16x16xf32, #tpu.memory_space<vmem>>, vector<1x1x16x16xf32>
    %1260 = vector.shape_cast %1259 : vector<1x1x16x16xf32> to vector<16x16xf32>
    %1261 = arith.mulf %1260, %1142 : vector<16x16xf32>
    %1262 = arith.addf %1258, %1261 : vector<16x16xf32>
    %c0_573 = arith.constant 0 : index
    %c83 = arith.constant 83 : index
    %c0_574 = arith.constant 0 : index
    %c0_575 = arith.constant 0 : index
    %1263 = vector.load %arg4[%c0_573, %c83, %c0_574, %c0_575] : memref<1x160x16x16xf32, #tpu.memory_space<vmem>>, vector<1x1x16x16xf32>
    %1264 = vector.shape_cast %1263 : vector<1x1x16x16xf32> to vector<16x16xf32>
    %1265 = arith.mulf %1264, %1147 : vector<16x16xf32>
    %1266 = arith.addf %1262, %1265 : vector<16x16xf32>
    %c0_576 = arith.constant 0 : index
    %c84 = arith.constant 84 : index
    %c0_577 = arith.constant 0 : index
    %c0_578 = arith.constant 0 : index
    %1267 = vector.load %arg4[%c0_576, %c84, %c0_577, %c0_578] : memref<1x160x16x16xf32, #tpu.memory_space<vmem>>, vector<1x1x16x16xf32>
    %1268 = vector.shape_cast %1267 : vector<1x1x16x16xf32> to vector<16x16xf32>
    %1269 = arith.mulf %1268, %1152 : vector<16x16xf32>
    %1270 = arith.addf %1266, %1269 : vector<16x16xf32>
    %c0_579 = arith.constant 0 : index
    %c85 = arith.constant 85 : index
    %c0_580 = arith.constant 0 : index
    %c0_581 = arith.constant 0 : index
    %1271 = vector.load %arg4[%c0_579, %c85, %c0_580, %c0_581] : memref<1x160x16x16xf32, #tpu.memory_space<vmem>>, vector<1x1x16x16xf32>
    %1272 = vector.shape_cast %1271 : vector<1x1x16x16xf32> to vector<16x16xf32>
    %1273 = arith.mulf %1272, %1157 : vector<16x16xf32>
    %1274 = arith.addf %1270, %1273 : vector<16x16xf32>
    %c0_582 = arith.constant 0 : index
    %c86 = arith.constant 86 : index
    %c0_583 = arith.constant 0 : index
    %c0_584 = arith.constant 0 : index
    %1275 = vector.load %arg4[%c0_582, %c86, %c0_583, %c0_584] : memref<1x160x16x16xf32, #tpu.memory_space<vmem>>, vector<1x1x16x16xf32>
    %1276 = vector.shape_cast %1275 : vector<1x1x16x16xf32> to vector<16x16xf32>
    %1277 = arith.mulf %1276, %1162 : vector<16x16xf32>
    %1278 = arith.addf %1274, %1277 : vector<16x16xf32>
    %c0_585 = arith.constant 0 : index
    %c87 = arith.constant 87 : index
    %c0_586 = arith.constant 0 : index
    %c0_587 = arith.constant 0 : index
    %1279 = vector.load %arg4[%c0_585, %c87, %c0_586, %c0_587] : memref<1x160x16x16xf32, #tpu.memory_space<vmem>>, vector<1x1x16x16xf32>
    %1280 = vector.shape_cast %1279 : vector<1x1x16x16xf32> to vector<16x16xf32>
    %1281 = arith.mulf %1280, %1167 : vector<16x16xf32>
    %1282 = arith.addf %1278, %1281 : vector<16x16xf32>
    %c0_588 = arith.constant 0 : index
    %c138 = arith.constant 138 : index
    %c0_589 = arith.constant 0 : index
    %c0_590 = arith.constant 0 : index
    %1283 = vector.load %arg4[%c0_588, %c138, %c0_589, %c0_590] : memref<1x160x16x16xf32, #tpu.memory_space<vmem>>, vector<1x1x16x16xf32>
    %1284 = vector.shape_cast %1283 : vector<1x1x16x16xf32> to vector<16x16xf32>
    %c0_591 = arith.constant 0 : index
    %c154 = arith.constant 154 : index
    %c0_592 = arith.constant 0 : index
    %c0_593 = arith.constant 0 : index
    %1285 = vector.load %arg4[%c0_591, %c154, %c0_592, %c0_593] : memref<1x160x16x16xf32, #tpu.memory_space<vmem>>, vector<1x1x16x16xf32>
    %1286 = vector.shape_cast %1285 : vector<1x1x16x16xf32> to vector<16x16xf32>
    %1287 = arith.mulf %1284, %1282 : vector<16x16xf32>
    %1288 = arith.addf %848, %1287 : vector<16x16xf32>
    %1289 = arith.mulf %1286, %1173 : vector<16x16xf32>
    %1290 = arith.addf %1288, %1289 : vector<16x16xf32>
    %c0_594 = arith.constant 0 : index
    %c88 = arith.constant 88 : index
    %c0_595 = arith.constant 0 : index
    %c0_596 = arith.constant 0 : index
    %1291 = vector.load %arg4[%c0_594, %c88, %c0_595, %c0_596] : memref<1x160x16x16xf32, #tpu.memory_space<vmem>>, vector<1x1x16x16xf32>
    %1292 = vector.shape_cast %1291 : vector<1x1x16x16xf32> to vector<16x16xf32>
    %1293 = arith.mulf %1292, %1132 : vector<16x16xf32>
    %c0_597 = arith.constant 0 : index
    %c89 = arith.constant 89 : index
    %c0_598 = arith.constant 0 : index
    %c0_599 = arith.constant 0 : index
    %1294 = vector.load %arg4[%c0_597, %c89, %c0_598, %c0_599] : memref<1x160x16x16xf32, #tpu.memory_space<vmem>>, vector<1x1x16x16xf32>
    %1295 = vector.shape_cast %1294 : vector<1x1x16x16xf32> to vector<16x16xf32>
    %1296 = arith.mulf %1295, %1137 : vector<16x16xf32>
    %1297 = arith.addf %1293, %1296 : vector<16x16xf32>
    %c0_600 = arith.constant 0 : index
    %c90 = arith.constant 90 : index
    %c0_601 = arith.constant 0 : index
    %c0_602 = arith.constant 0 : index
    %1298 = vector.load %arg4[%c0_600, %c90, %c0_601, %c0_602] : memref<1x160x16x16xf32, #tpu.memory_space<vmem>>, vector<1x1x16x16xf32>
    %1299 = vector.shape_cast %1298 : vector<1x1x16x16xf32> to vector<16x16xf32>
    %1300 = arith.mulf %1299, %1142 : vector<16x16xf32>
    %1301 = arith.addf %1297, %1300 : vector<16x16xf32>
    %c0_603 = arith.constant 0 : index
    %c91 = arith.constant 91 : index
    %c0_604 = arith.constant 0 : index
    %c0_605 = arith.constant 0 : index
    %1302 = vector.load %arg4[%c0_603, %c91, %c0_604, %c0_605] : memref<1x160x16x16xf32, #tpu.memory_space<vmem>>, vector<1x1x16x16xf32>
    %1303 = vector.shape_cast %1302 : vector<1x1x16x16xf32> to vector<16x16xf32>
    %1304 = arith.mulf %1303, %1147 : vector<16x16xf32>
    %1305 = arith.addf %1301, %1304 : vector<16x16xf32>
    %c0_606 = arith.constant 0 : index
    %c92 = arith.constant 92 : index
    %c0_607 = arith.constant 0 : index
    %c0_608 = arith.constant 0 : index
    %1306 = vector.load %arg4[%c0_606, %c92, %c0_607, %c0_608] : memref<1x160x16x16xf32, #tpu.memory_space<vmem>>, vector<1x1x16x16xf32>
    %1307 = vector.shape_cast %1306 : vector<1x1x16x16xf32> to vector<16x16xf32>
    %1308 = arith.mulf %1307, %1152 : vector<16x16xf32>
    %1309 = arith.addf %1305, %1308 : vector<16x16xf32>
    %c0_609 = arith.constant 0 : index
    %c93 = arith.constant 93 : index
    %c0_610 = arith.constant 0 : index
    %c0_611 = arith.constant 0 : index
    %1310 = vector.load %arg4[%c0_609, %c93, %c0_610, %c0_611] : memref<1x160x16x16xf32, #tpu.memory_space<vmem>>, vector<1x1x16x16xf32>
    %1311 = vector.shape_cast %1310 : vector<1x1x16x16xf32> to vector<16x16xf32>
    %1312 = arith.mulf %1311, %1157 : vector<16x16xf32>
    %1313 = arith.addf %1309, %1312 : vector<16x16xf32>
    %c0_612 = arith.constant 0 : index
    %c94 = arith.constant 94 : index
    %c0_613 = arith.constant 0 : index
    %c0_614 = arith.constant 0 : index
    %1314 = vector.load %arg4[%c0_612, %c94, %c0_613, %c0_614] : memref<1x160x16x16xf32, #tpu.memory_space<vmem>>, vector<1x1x16x16xf32>
    %1315 = vector.shape_cast %1314 : vector<1x1x16x16xf32> to vector<16x16xf32>
    %1316 = arith.mulf %1315, %1162 : vector<16x16xf32>
    %1317 = arith.addf %1313, %1316 : vector<16x16xf32>
    %c0_615 = arith.constant 0 : index
    %c95 = arith.constant 95 : index
    %c0_616 = arith.constant 0 : index
    %c0_617 = arith.constant 0 : index
    %1318 = vector.load %arg4[%c0_615, %c95, %c0_616, %c0_617] : memref<1x160x16x16xf32, #tpu.memory_space<vmem>>, vector<1x1x16x16xf32>
    %1319 = vector.shape_cast %1318 : vector<1x1x16x16xf32> to vector<16x16xf32>
    %1320 = arith.mulf %1319, %1167 : vector<16x16xf32>
    %1321 = arith.addf %1317, %1320 : vector<16x16xf32>
    %c0_618 = arith.constant 0 : index
    %c139 = arith.constant 139 : index
    %c0_619 = arith.constant 0 : index
    %c0_620 = arith.constant 0 : index
    %1322 = vector.load %arg4[%c0_618, %c139, %c0_619, %c0_620] : memref<1x160x16x16xf32, #tpu.memory_space<vmem>>, vector<1x1x16x16xf32>
    %1323 = vector.shape_cast %1322 : vector<1x1x16x16xf32> to vector<16x16xf32>
    %c0_621 = arith.constant 0 : index
    %c155 = arith.constant 155 : index
    %c0_622 = arith.constant 0 : index
    %c0_623 = arith.constant 0 : index
    %1324 = vector.load %arg4[%c0_621, %c155, %c0_622, %c0_623] : memref<1x160x16x16xf32, #tpu.memory_space<vmem>>, vector<1x1x16x16xf32>
    %1325 = vector.shape_cast %1324 : vector<1x1x16x16xf32> to vector<16x16xf32>
    %1326 = arith.mulf %1323, %1321 : vector<16x16xf32>
    %1327 = arith.addf %887, %1326 : vector<16x16xf32>
    %1328 = arith.mulf %1325, %1173 : vector<16x16xf32>
    %1329 = arith.addf %1327, %1328 : vector<16x16xf32>
    %c0_624 = arith.constant 0 : index
    %c3_625 = arith.constant 3 : index
    %c0_626 = arith.constant 0 : index
    %c0_627 = arith.constant 0 : index
    %1330 = vector.load %arg3[%c0_624, %c3_625, %c0_626, %c0_627] : memref<1x4x16x16xf32, #tpu.memory_space<vmem>>, vector<1x1x16x16xf32>
    %1331 = vector.shape_cast %1330 : vector<1x1x16x16xf32> to vector<16x16xf32>
    %cst_628 = arith.constant -2.200000e+00 : f32
    %1332 = vector.broadcast %cst_628 : f32 to vector<16x16xf32>
    %1333 = arith.cmpf oge, %1331, %1332 : vector<16x16xf32>
    %cst_629 = arith.constant -1.800000e+00 : f32
    %1334 = vector.broadcast %cst_629 : f32 to vector<16x16xf32>
    %1335 = arith.cmpf olt, %1331, %1334 : vector<16x16xf32>
    %1336 = arith.andi %1333, %1335 : vector<16x16xi1>
    %1337 = arith.extui %1336 : vector<16x16xi1> to vector<16x16xi32>
    %1338 = arith.sitofp %1337 : vector<16x16xi32> to vector<16x16xf32>
    %cst_630 = arith.constant -1.800000e+00 : f32
    %1339 = vector.broadcast %cst_630 : f32 to vector<16x16xf32>
    %1340 = arith.cmpf oge, %1331, %1339 : vector<16x16xf32>
    %cst_631 = arith.constant -1.400000e+00 : f32
    %1341 = vector.broadcast %cst_631 : f32 to vector<16x16xf32>
    %1342 = arith.cmpf olt, %1331, %1341 : vector<16x16xf32>
    %1343 = arith.andi %1340, %1342 : vector<16x16xi1>
    %1344 = arith.extui %1343 : vector<16x16xi1> to vector<16x16xi32>
    %1345 = arith.sitofp %1344 : vector<16x16xi32> to vector<16x16xf32>
    %cst_632 = arith.constant -1.400000e+00 : f32
    %1346 = vector.broadcast %cst_632 : f32 to vector<16x16xf32>
    %1347 = arith.cmpf oge, %1331, %1346 : vector<16x16xf32>
    %cst_633 = arith.constant -1.000000e+00 : f32
    %1348 = vector.broadcast %cst_633 : f32 to vector<16x16xf32>
    %1349 = arith.cmpf olt, %1331, %1348 : vector<16x16xf32>
    %1350 = arith.andi %1347, %1349 : vector<16x16xi1>
    %1351 = arith.extui %1350 : vector<16x16xi1> to vector<16x16xi32>
    %1352 = arith.sitofp %1351 : vector<16x16xi32> to vector<16x16xf32>
    %cst_634 = arith.constant -1.000000e+00 : f32
    %1353 = vector.broadcast %cst_634 : f32 to vector<16x16xf32>
    %1354 = arith.cmpf oge, %1331, %1353 : vector<16x16xf32>
    %cst_635 = arith.constant -6.000000e-01 : f32
    %1355 = vector.broadcast %cst_635 : f32 to vector<16x16xf32>
    %1356 = arith.cmpf olt, %1331, %1355 : vector<16x16xf32>
    %1357 = arith.andi %1354, %1356 : vector<16x16xi1>
    %1358 = arith.extui %1357 : vector<16x16xi1> to vector<16x16xi32>
    %1359 = arith.sitofp %1358 : vector<16x16xi32> to vector<16x16xf32>
    %cst_636 = arith.constant -6.000000e-01 : f32
    %1360 = vector.broadcast %cst_636 : f32 to vector<16x16xf32>
    %1361 = arith.cmpf oge, %1331, %1360 : vector<16x16xf32>
    %cst_637 = arith.constant -2.000000e-01 : f32
    %1362 = vector.broadcast %cst_637 : f32 to vector<16x16xf32>
    %1363 = arith.cmpf olt, %1331, %1362 : vector<16x16xf32>
    %1364 = arith.andi %1361, %1363 : vector<16x16xi1>
    %1365 = arith.extui %1364 : vector<16x16xi1> to vector<16x16xi32>
    %1366 = arith.sitofp %1365 : vector<16x16xi32> to vector<16x16xf32>
    %cst_638 = arith.constant -2.000000e-01 : f32
    %1367 = vector.broadcast %cst_638 : f32 to vector<16x16xf32>
    %1368 = arith.cmpf oge, %1331, %1367 : vector<16x16xf32>
    %cst_639 = arith.constant 2.000000e-01 : f32
    %1369 = vector.broadcast %cst_639 : f32 to vector<16x16xf32>
    %1370 = arith.cmpf olt, %1331, %1369 : vector<16x16xf32>
    %1371 = arith.andi %1368, %1370 : vector<16x16xi1>
    %1372 = arith.extui %1371 : vector<16x16xi1> to vector<16x16xi32>
    %1373 = arith.sitofp %1372 : vector<16x16xi32> to vector<16x16xf32>
    %cst_640 = arith.constant 2.000000e-01 : f32
    %1374 = vector.broadcast %cst_640 : f32 to vector<16x16xf32>
    %1375 = arith.cmpf oge, %1331, %1374 : vector<16x16xf32>
    %cst_641 = arith.constant 6.000000e-01 : f32
    %1376 = vector.broadcast %cst_641 : f32 to vector<16x16xf32>
    %1377 = arith.cmpf olt, %1331, %1376 : vector<16x16xf32>
    %1378 = arith.andi %1375, %1377 : vector<16x16xi1>
    %1379 = arith.extui %1378 : vector<16x16xi1> to vector<16x16xi32>
    %1380 = arith.sitofp %1379 : vector<16x16xi32> to vector<16x16xf32>
    %cst_642 = arith.constant 6.000000e-01 : f32
    %1381 = vector.broadcast %cst_642 : f32 to vector<16x16xf32>
    %1382 = arith.cmpf oge, %1331, %1381 : vector<16x16xf32>
    %cst_643 = arith.constant 1.000000e+00 : f32
    %1383 = vector.broadcast %cst_643 : f32 to vector<16x16xf32>
    %1384 = arith.cmpf olt, %1331, %1383 : vector<16x16xf32>
    %1385 = arith.andi %1382, %1384 : vector<16x16xi1>
    %1386 = arith.extui %1385 : vector<16x16xi1> to vector<16x16xi32>
    %1387 = arith.sitofp %1386 : vector<16x16xi32> to vector<16x16xf32>
    %cst_644 = arith.constant 1.000000e+00 : f32
    %1388 = vector.broadcast %cst_644 : f32 to vector<16x16xf32>
    %1389 = arith.cmpf oge, %1331, %1388 : vector<16x16xf32>
    %cst_645 = arith.constant 1.400000e+00 : f32
    %1390 = vector.broadcast %cst_645 : f32 to vector<16x16xf32>
    %1391 = arith.cmpf olt, %1331, %1390 : vector<16x16xf32>
    %1392 = arith.andi %1389, %1391 : vector<16x16xi1>
    %1393 = arith.extui %1392 : vector<16x16xi1> to vector<16x16xi32>
    %1394 = arith.sitofp %1393 : vector<16x16xi32> to vector<16x16xf32>
    %cst_646 = arith.constant 1.400000e+00 : f32
    %1395 = vector.broadcast %cst_646 : f32 to vector<16x16xf32>
    %1396 = arith.cmpf oge, %1331, %1395 : vector<16x16xf32>
    %cst_647 = arith.constant 1.800000e+00 : f32
    %1397 = vector.broadcast %cst_647 : f32 to vector<16x16xf32>
    %1398 = arith.cmpf olt, %1331, %1397 : vector<16x16xf32>
    %1399 = arith.andi %1396, %1398 : vector<16x16xi1>
    %1400 = arith.extui %1399 : vector<16x16xi1> to vector<16x16xi32>
    %1401 = arith.sitofp %1400 : vector<16x16xi32> to vector<16x16xf32>
    %cst_648 = arith.constant 1.800000e+00 : f32
    %1402 = vector.broadcast %cst_648 : f32 to vector<16x16xf32>
    %1403 = arith.cmpf oge, %1331, %1402 : vector<16x16xf32>
    %cst_649 = arith.constant 2.200000e+00 : f32
    %1404 = vector.broadcast %cst_649 : f32 to vector<16x16xf32>
    %1405 = arith.cmpf olt, %1331, %1404 : vector<16x16xf32>
    %1406 = arith.andi %1403, %1405 : vector<16x16xi1>
    %1407 = arith.extui %1406 : vector<16x16xi1> to vector<16x16xi32>
    %1408 = arith.sitofp %1407 : vector<16x16xi32> to vector<16x16xf32>
    %cst_650 = arith.constant 2.500000e+00 : f32
    %1409 = vector.broadcast %cst_650 : f32 to vector<16x16xf32>
    %1410 = arith.mulf %1331, %1409 : vector<16x16xf32>
    %cst_651 = arith.constant -5.500000e+00 : f32
    %1411 = vector.broadcast %cst_651 : f32 to vector<16x16xf32>
    %1412 = arith.subf %1410, %1411 : vector<16x16xf32>
    %cst_652 = arith.constant -4.500000e+00 : f32
    %1413 = vector.broadcast %cst_652 : f32 to vector<16x16xf32>
    %1414 = arith.subf %1410, %1413 : vector<16x16xf32>
    %cst_653 = arith.constant -3.500000e+00 : f32
    %1415 = vector.broadcast %cst_653 : f32 to vector<16x16xf32>
    %1416 = arith.subf %1410, %1415 : vector<16x16xf32>
    %cst_654 = arith.constant -2.500000e+00 : f32
    %1417 = vector.broadcast %cst_654 : f32 to vector<16x16xf32>
    %1418 = arith.subf %1410, %1417 : vector<16x16xf32>
    %cst_655 = arith.constant -1.500000e+00 : f32
    %1419 = vector.broadcast %cst_655 : f32 to vector<16x16xf32>
    %1420 = arith.subf %1410, %1419 : vector<16x16xf32>
    %cst_656 = arith.constant -5.000000e-01 : f32
    %1421 = vector.broadcast %cst_656 : f32 to vector<16x16xf32>
    %1422 = arith.subf %1410, %1421 : vector<16x16xf32>
    %cst_657 = arith.constant 5.000000e-01 : f32
    %1423 = vector.broadcast %cst_657 : f32 to vector<16x16xf32>
    %1424 = arith.subf %1410, %1423 : vector<16x16xf32>
    %cst_658 = arith.constant 1.500000e+00 : f32
    %1425 = vector.broadcast %cst_658 : f32 to vector<16x16xf32>
    %1426 = arith.subf %1410, %1425 : vector<16x16xf32>
    %cst_659 = arith.constant 2.500000e+00 : f32
    %1427 = vector.broadcast %cst_659 : f32 to vector<16x16xf32>
    %1428 = arith.subf %1410, %1427 : vector<16x16xf32>
    %cst_660 = arith.constant 3.500000e+00 : f32
    %1429 = vector.broadcast %cst_660 : f32 to vector<16x16xf32>
    %1430 = arith.subf %1410, %1429 : vector<16x16xf32>
    %cst_661 = arith.constant 4.500000e+00 : f32
    %1431 = vector.broadcast %cst_661 : f32 to vector<16x16xf32>
    %1432 = arith.subf %1410, %1431 : vector<16x16xf32>
    %1433 = arith.mulf %1412, %1338 : vector<16x16xf32>
    %cst_662 = arith.constant 1.000000e+00 : f32
    %1434 = vector.broadcast %cst_662 : f32 to vector<16x16xf32>
    %1435 = arith.subf %1434, %1414 : vector<16x16xf32>
    %1436 = arith.mulf %1435, %1345 : vector<16x16xf32>
    %1437 = arith.addf %1433, %1436 : vector<16x16xf32>
    %1438 = arith.mulf %1414, %1345 : vector<16x16xf32>
    %cst_663 = arith.constant 1.000000e+00 : f32
    %1439 = vector.broadcast %cst_663 : f32 to vector<16x16xf32>
    %1440 = arith.subf %1439, %1416 : vector<16x16xf32>
    %1441 = arith.mulf %1440, %1352 : vector<16x16xf32>
    %1442 = arith.addf %1438, %1441 : vector<16x16xf32>
    %1443 = arith.mulf %1416, %1352 : vector<16x16xf32>
    %cst_664 = arith.constant 1.000000e+00 : f32
    %1444 = vector.broadcast %cst_664 : f32 to vector<16x16xf32>
    %1445 = arith.subf %1444, %1418 : vector<16x16xf32>
    %1446 = arith.mulf %1445, %1359 : vector<16x16xf32>
    %1447 = arith.addf %1443, %1446 : vector<16x16xf32>
    %1448 = arith.mulf %1418, %1359 : vector<16x16xf32>
    %cst_665 = arith.constant 1.000000e+00 : f32
    %1449 = vector.broadcast %cst_665 : f32 to vector<16x16xf32>
    %1450 = arith.subf %1449, %1420 : vector<16x16xf32>
    %1451 = arith.mulf %1450, %1366 : vector<16x16xf32>
    %1452 = arith.addf %1448, %1451 : vector<16x16xf32>
    %1453 = arith.mulf %1420, %1366 : vector<16x16xf32>
    %cst_666 = arith.constant 1.000000e+00 : f32
    %1454 = vector.broadcast %cst_666 : f32 to vector<16x16xf32>
    %1455 = arith.subf %1454, %1422 : vector<16x16xf32>
    %1456 = arith.mulf %1455, %1373 : vector<16x16xf32>
    %1457 = arith.addf %1453, %1456 : vector<16x16xf32>
    %1458 = arith.mulf %1422, %1373 : vector<16x16xf32>
    %cst_667 = arith.constant 1.000000e+00 : f32
    %1459 = vector.broadcast %cst_667 : f32 to vector<16x16xf32>
    %1460 = arith.subf %1459, %1424 : vector<16x16xf32>
    %1461 = arith.mulf %1460, %1380 : vector<16x16xf32>
    %1462 = arith.addf %1458, %1461 : vector<16x16xf32>
    %1463 = arith.mulf %1424, %1380 : vector<16x16xf32>
    %cst_668 = arith.constant 1.000000e+00 : f32
    %1464 = vector.broadcast %cst_668 : f32 to vector<16x16xf32>
    %1465 = arith.subf %1464, %1426 : vector<16x16xf32>
    %1466 = arith.mulf %1465, %1387 : vector<16x16xf32>
    %1467 = arith.addf %1463, %1466 : vector<16x16xf32>
    %1468 = arith.mulf %1426, %1387 : vector<16x16xf32>
    %cst_669 = arith.constant 1.000000e+00 : f32
    %1469 = vector.broadcast %cst_669 : f32 to vector<16x16xf32>
    %1470 = arith.subf %1469, %1428 : vector<16x16xf32>
    %1471 = arith.mulf %1470, %1394 : vector<16x16xf32>
    %1472 = arith.addf %1468, %1471 : vector<16x16xf32>
    %1473 = arith.mulf %1428, %1394 : vector<16x16xf32>
    %cst_670 = arith.constant 1.000000e+00 : f32
    %1474 = vector.broadcast %cst_670 : f32 to vector<16x16xf32>
    %1475 = arith.subf %1474, %1430 : vector<16x16xf32>
    %1476 = arith.mulf %1475, %1401 : vector<16x16xf32>
    %1477 = arith.addf %1473, %1476 : vector<16x16xf32>
    %1478 = arith.mulf %1430, %1401 : vector<16x16xf32>
    %cst_671 = arith.constant 1.000000e+00 : f32
    %1479 = vector.broadcast %cst_671 : f32 to vector<16x16xf32>
    %1480 = arith.subf %1479, %1432 : vector<16x16xf32>
    %1481 = arith.mulf %1480, %1408 : vector<16x16xf32>
    %1482 = arith.addf %1478, %1481 : vector<16x16xf32>
    %cst_672 = arith.constant 1.250000e+00 : f32
    %1483 = vector.broadcast %cst_672 : f32 to vector<16x16xf32>
    %1484 = arith.mulf %1331, %1483 : vector<16x16xf32>
    %cst_673 = arith.constant -2.750000e+00 : f32
    %1485 = vector.broadcast %cst_673 : f32 to vector<16x16xf32>
    %1486 = arith.subf %1484, %1485 : vector<16x16xf32>
    %cst_674 = arith.constant -2.250000e+00 : f32
    %1487 = vector.broadcast %cst_674 : f32 to vector<16x16xf32>
    %1488 = arith.subf %1484, %1487 : vector<16x16xf32>
    %cst_675 = arith.constant -1.750000e+00 : f32
    %1489 = vector.broadcast %cst_675 : f32 to vector<16x16xf32>
    %1490 = arith.subf %1484, %1489 : vector<16x16xf32>
    %cst_676 = arith.constant -1.250000e+00 : f32
    %1491 = vector.broadcast %cst_676 : f32 to vector<16x16xf32>
    %1492 = arith.subf %1484, %1491 : vector<16x16xf32>
    %cst_677 = arith.constant -7.500000e-01 : f32
    %1493 = vector.broadcast %cst_677 : f32 to vector<16x16xf32>
    %1494 = arith.subf %1484, %1493 : vector<16x16xf32>
    %cst_678 = arith.constant -2.500000e-01 : f32
    %1495 = vector.broadcast %cst_678 : f32 to vector<16x16xf32>
    %1496 = arith.subf %1484, %1495 : vector<16x16xf32>
    %cst_679 = arith.constant 2.500000e-01 : f32
    %1497 = vector.broadcast %cst_679 : f32 to vector<16x16xf32>
    %1498 = arith.subf %1484, %1497 : vector<16x16xf32>
    %cst_680 = arith.constant 7.500000e-01 : f32
    %1499 = vector.broadcast %cst_680 : f32 to vector<16x16xf32>
    %1500 = arith.subf %1484, %1499 : vector<16x16xf32>
    %cst_681 = arith.constant 1.250000e+00 : f32
    %1501 = vector.broadcast %cst_681 : f32 to vector<16x16xf32>
    %1502 = arith.subf %1484, %1501 : vector<16x16xf32>
    %cst_682 = arith.constant 1.750000e+00 : f32
    %1503 = vector.broadcast %cst_682 : f32 to vector<16x16xf32>
    %1504 = arith.subf %1484, %1503 : vector<16x16xf32>
    %1505 = arith.mulf %1486, %1437 : vector<16x16xf32>
    %cst_683 = arith.constant 1.000000e+00 : f32
    %1506 = vector.broadcast %cst_683 : f32 to vector<16x16xf32>
    %1507 = arith.subf %1506, %1488 : vector<16x16xf32>
    %1508 = arith.mulf %1507, %1442 : vector<16x16xf32>
    %1509 = arith.addf %1505, %1508 : vector<16x16xf32>
    %1510 = arith.mulf %1488, %1442 : vector<16x16xf32>
    %cst_684 = arith.constant 1.000000e+00 : f32
    %1511 = vector.broadcast %cst_684 : f32 to vector<16x16xf32>
    %1512 = arith.subf %1511, %1490 : vector<16x16xf32>
    %1513 = arith.mulf %1512, %1447 : vector<16x16xf32>
    %1514 = arith.addf %1510, %1513 : vector<16x16xf32>
    %1515 = arith.mulf %1490, %1447 : vector<16x16xf32>
    %cst_685 = arith.constant 1.000000e+00 : f32
    %1516 = vector.broadcast %cst_685 : f32 to vector<16x16xf32>
    %1517 = arith.subf %1516, %1492 : vector<16x16xf32>
    %1518 = arith.mulf %1517, %1452 : vector<16x16xf32>
    %1519 = arith.addf %1515, %1518 : vector<16x16xf32>
    %1520 = arith.mulf %1492, %1452 : vector<16x16xf32>
    %cst_686 = arith.constant 1.000000e+00 : f32
    %1521 = vector.broadcast %cst_686 : f32 to vector<16x16xf32>
    %1522 = arith.subf %1521, %1494 : vector<16x16xf32>
    %1523 = arith.mulf %1522, %1457 : vector<16x16xf32>
    %1524 = arith.addf %1520, %1523 : vector<16x16xf32>
    %1525 = arith.mulf %1494, %1457 : vector<16x16xf32>
    %cst_687 = arith.constant 1.000000e+00 : f32
    %1526 = vector.broadcast %cst_687 : f32 to vector<16x16xf32>
    %1527 = arith.subf %1526, %1496 : vector<16x16xf32>
    %1528 = arith.mulf %1527, %1462 : vector<16x16xf32>
    %1529 = arith.addf %1525, %1528 : vector<16x16xf32>
    %1530 = arith.mulf %1496, %1462 : vector<16x16xf32>
    %cst_688 = arith.constant 1.000000e+00 : f32
    %1531 = vector.broadcast %cst_688 : f32 to vector<16x16xf32>
    %1532 = arith.subf %1531, %1498 : vector<16x16xf32>
    %1533 = arith.mulf %1532, %1467 : vector<16x16xf32>
    %1534 = arith.addf %1530, %1533 : vector<16x16xf32>
    %1535 = arith.mulf %1498, %1467 : vector<16x16xf32>
    %cst_689 = arith.constant 1.000000e+00 : f32
    %1536 = vector.broadcast %cst_689 : f32 to vector<16x16xf32>
    %1537 = arith.subf %1536, %1500 : vector<16x16xf32>
    %1538 = arith.mulf %1537, %1472 : vector<16x16xf32>
    %1539 = arith.addf %1535, %1538 : vector<16x16xf32>
    %1540 = arith.mulf %1500, %1472 : vector<16x16xf32>
    %cst_690 = arith.constant 1.000000e+00 : f32
    %1541 = vector.broadcast %cst_690 : f32 to vector<16x16xf32>
    %1542 = arith.subf %1541, %1502 : vector<16x16xf32>
    %1543 = arith.mulf %1542, %1477 : vector<16x16xf32>
    %1544 = arith.addf %1540, %1543 : vector<16x16xf32>
    %1545 = arith.mulf %1502, %1477 : vector<16x16xf32>
    %cst_691 = arith.constant 1.000000e+00 : f32
    %1546 = vector.broadcast %cst_691 : f32 to vector<16x16xf32>
    %1547 = arith.subf %1546, %1504 : vector<16x16xf32>
    %1548 = arith.mulf %1547, %1482 : vector<16x16xf32>
    %1549 = arith.addf %1545, %1548 : vector<16x16xf32>
    %cst_692 = arith.constant 0.833333313 : f32
    %1550 = vector.broadcast %cst_692 : f32 to vector<16x16xf32>
    %1551 = arith.mulf %1331, %1550 : vector<16x16xf32>
    %cst_693 = arith.constant -1.83333337 : f32
    %1552 = vector.broadcast %cst_693 : f32 to vector<16x16xf32>
    %1553 = arith.subf %1551, %1552 : vector<16x16xf32>
    %cst_694 = arith.constant -1.500000e+00 : f32
    %1554 = vector.broadcast %cst_694 : f32 to vector<16x16xf32>
    %1555 = arith.subf %1551, %1554 : vector<16x16xf32>
    %cst_695 = arith.constant -1.16666663 : f32
    %1556 = vector.broadcast %cst_695 : f32 to vector<16x16xf32>
    %1557 = arith.subf %1551, %1556 : vector<16x16xf32>
    %cst_696 = arith.constant -0.833333313 : f32
    %1558 = vector.broadcast %cst_696 : f32 to vector<16x16xf32>
    %1559 = arith.subf %1551, %1558 : vector<16x16xf32>
    %cst_697 = arith.constant -5.000000e-01 : f32
    %1560 = vector.broadcast %cst_697 : f32 to vector<16x16xf32>
    %1561 = arith.subf %1551, %1560 : vector<16x16xf32>
    %cst_698 = arith.constant -0.166666672 : f32
    %1562 = vector.broadcast %cst_698 : f32 to vector<16x16xf32>
    %1563 = arith.subf %1551, %1562 : vector<16x16xf32>
    %cst_699 = arith.constant 0.166666672 : f32
    %1564 = vector.broadcast %cst_699 : f32 to vector<16x16xf32>
    %1565 = arith.subf %1551, %1564 : vector<16x16xf32>
    %cst_700 = arith.constant 5.000000e-01 : f32
    %1566 = vector.broadcast %cst_700 : f32 to vector<16x16xf32>
    %1567 = arith.subf %1551, %1566 : vector<16x16xf32>
    %cst_701 = arith.constant 0.833333313 : f32
    %1568 = vector.broadcast %cst_701 : f32 to vector<16x16xf32>
    %1569 = arith.subf %1551, %1568 : vector<16x16xf32>
    %1570 = arith.mulf %1553, %1509 : vector<16x16xf32>
    %cst_702 = arith.constant 1.000000e+00 : f32
    %1571 = vector.broadcast %cst_702 : f32 to vector<16x16xf32>
    %1572 = arith.subf %1571, %1555 : vector<16x16xf32>
    %1573 = arith.mulf %1572, %1514 : vector<16x16xf32>
    %1574 = arith.addf %1570, %1573 : vector<16x16xf32>
    %1575 = arith.mulf %1555, %1514 : vector<16x16xf32>
    %cst_703 = arith.constant 1.000000e+00 : f32
    %1576 = vector.broadcast %cst_703 : f32 to vector<16x16xf32>
    %1577 = arith.subf %1576, %1557 : vector<16x16xf32>
    %1578 = arith.mulf %1577, %1519 : vector<16x16xf32>
    %1579 = arith.addf %1575, %1578 : vector<16x16xf32>
    %1580 = arith.mulf %1557, %1519 : vector<16x16xf32>
    %cst_704 = arith.constant 1.000000e+00 : f32
    %1581 = vector.broadcast %cst_704 : f32 to vector<16x16xf32>
    %1582 = arith.subf %1581, %1559 : vector<16x16xf32>
    %1583 = arith.mulf %1582, %1524 : vector<16x16xf32>
    %1584 = arith.addf %1580, %1583 : vector<16x16xf32>
    %1585 = arith.mulf %1559, %1524 : vector<16x16xf32>
    %cst_705 = arith.constant 1.000000e+00 : f32
    %1586 = vector.broadcast %cst_705 : f32 to vector<16x16xf32>
    %1587 = arith.subf %1586, %1561 : vector<16x16xf32>
    %1588 = arith.mulf %1587, %1529 : vector<16x16xf32>
    %1589 = arith.addf %1585, %1588 : vector<16x16xf32>
    %1590 = arith.mulf %1561, %1529 : vector<16x16xf32>
    %cst_706 = arith.constant 1.000000e+00 : f32
    %1591 = vector.broadcast %cst_706 : f32 to vector<16x16xf32>
    %1592 = arith.subf %1591, %1563 : vector<16x16xf32>
    %1593 = arith.mulf %1592, %1534 : vector<16x16xf32>
    %1594 = arith.addf %1590, %1593 : vector<16x16xf32>
    %1595 = arith.mulf %1563, %1534 : vector<16x16xf32>
    %cst_707 = arith.constant 1.000000e+00 : f32
    %1596 = vector.broadcast %cst_707 : f32 to vector<16x16xf32>
    %1597 = arith.subf %1596, %1565 : vector<16x16xf32>
    %1598 = arith.mulf %1597, %1539 : vector<16x16xf32>
    %1599 = arith.addf %1595, %1598 : vector<16x16xf32>
    %1600 = arith.mulf %1565, %1539 : vector<16x16xf32>
    %cst_708 = arith.constant 1.000000e+00 : f32
    %1601 = vector.broadcast %cst_708 : f32 to vector<16x16xf32>
    %1602 = arith.subf %1601, %1567 : vector<16x16xf32>
    %1603 = arith.mulf %1602, %1544 : vector<16x16xf32>
    %1604 = arith.addf %1600, %1603 : vector<16x16xf32>
    %1605 = arith.mulf %1567, %1544 : vector<16x16xf32>
    %cst_709 = arith.constant 1.000000e+00 : f32
    %1606 = vector.broadcast %cst_709 : f32 to vector<16x16xf32>
    %1607 = arith.subf %1606, %1569 : vector<16x16xf32>
    %1608 = arith.mulf %1607, %1549 : vector<16x16xf32>
    %1609 = arith.addf %1605, %1608 : vector<16x16xf32>
    %1610 = arith.negf %1331 : vector<16x16xf32>
    %1611 = math.exp %1610 : vector<16x16xf32>
    %cst_710 = arith.constant 1.000000e+00 : f32
    %1612 = vector.broadcast %cst_710 : f32 to vector<16x16xf32>
    %1613 = arith.addf %1612, %1611 : vector<16x16xf32>
    %1614 = arith.divf %1612, %1613 : vector<16x16xf32>
    %1615 = arith.mulf %1331, %1614 : vector<16x16xf32>
    %c0_711 = arith.constant 0 : index
    %c96 = arith.constant 96 : index
    %c0_712 = arith.constant 0 : index
    %c0_713 = arith.constant 0 : index
    %1616 = vector.load %arg4[%c0_711, %c96, %c0_712, %c0_713] : memref<1x160x16x16xf32, #tpu.memory_space<vmem>>, vector<1x1x16x16xf32>
    %1617 = vector.shape_cast %1616 : vector<1x1x16x16xf32> to vector<16x16xf32>
    %1618 = arith.mulf %1617, %1574 : vector<16x16xf32>
    %c0_714 = arith.constant 0 : index
    %c97 = arith.constant 97 : index
    %c0_715 = arith.constant 0 : index
    %c0_716 = arith.constant 0 : index
    %1619 = vector.load %arg4[%c0_714, %c97, %c0_715, %c0_716] : memref<1x160x16x16xf32, #tpu.memory_space<vmem>>, vector<1x1x16x16xf32>
    %1620 = vector.shape_cast %1619 : vector<1x1x16x16xf32> to vector<16x16xf32>
    %1621 = arith.mulf %1620, %1579 : vector<16x16xf32>
    %1622 = arith.addf %1618, %1621 : vector<16x16xf32>
    %c0_717 = arith.constant 0 : index
    %c98 = arith.constant 98 : index
    %c0_718 = arith.constant 0 : index
    %c0_719 = arith.constant 0 : index
    %1623 = vector.load %arg4[%c0_717, %c98, %c0_718, %c0_719] : memref<1x160x16x16xf32, #tpu.memory_space<vmem>>, vector<1x1x16x16xf32>
    %1624 = vector.shape_cast %1623 : vector<1x1x16x16xf32> to vector<16x16xf32>
    %1625 = arith.mulf %1624, %1584 : vector<16x16xf32>
    %1626 = arith.addf %1622, %1625 : vector<16x16xf32>
    %c0_720 = arith.constant 0 : index
    %c99 = arith.constant 99 : index
    %c0_721 = arith.constant 0 : index
    %c0_722 = arith.constant 0 : index
    %1627 = vector.load %arg4[%c0_720, %c99, %c0_721, %c0_722] : memref<1x160x16x16xf32, #tpu.memory_space<vmem>>, vector<1x1x16x16xf32>
    %1628 = vector.shape_cast %1627 : vector<1x1x16x16xf32> to vector<16x16xf32>
    %1629 = arith.mulf %1628, %1589 : vector<16x16xf32>
    %1630 = arith.addf %1626, %1629 : vector<16x16xf32>
    %c0_723 = arith.constant 0 : index
    %c100 = arith.constant 100 : index
    %c0_724 = arith.constant 0 : index
    %c0_725 = arith.constant 0 : index
    %1631 = vector.load %arg4[%c0_723, %c100, %c0_724, %c0_725] : memref<1x160x16x16xf32, #tpu.memory_space<vmem>>, vector<1x1x16x16xf32>
    %1632 = vector.shape_cast %1631 : vector<1x1x16x16xf32> to vector<16x16xf32>
    %1633 = arith.mulf %1632, %1594 : vector<16x16xf32>
    %1634 = arith.addf %1630, %1633 : vector<16x16xf32>
    %c0_726 = arith.constant 0 : index
    %c101 = arith.constant 101 : index
    %c0_727 = arith.constant 0 : index
    %c0_728 = arith.constant 0 : index
    %1635 = vector.load %arg4[%c0_726, %c101, %c0_727, %c0_728] : memref<1x160x16x16xf32, #tpu.memory_space<vmem>>, vector<1x1x16x16xf32>
    %1636 = vector.shape_cast %1635 : vector<1x1x16x16xf32> to vector<16x16xf32>
    %1637 = arith.mulf %1636, %1599 : vector<16x16xf32>
    %1638 = arith.addf %1634, %1637 : vector<16x16xf32>
    %c0_729 = arith.constant 0 : index
    %c102 = arith.constant 102 : index
    %c0_730 = arith.constant 0 : index
    %c0_731 = arith.constant 0 : index
    %1639 = vector.load %arg4[%c0_729, %c102, %c0_730, %c0_731] : memref<1x160x16x16xf32, #tpu.memory_space<vmem>>, vector<1x1x16x16xf32>
    %1640 = vector.shape_cast %1639 : vector<1x1x16x16xf32> to vector<16x16xf32>
    %1641 = arith.mulf %1640, %1604 : vector<16x16xf32>
    %1642 = arith.addf %1638, %1641 : vector<16x16xf32>
    %c0_732 = arith.constant 0 : index
    %c103 = arith.constant 103 : index
    %c0_733 = arith.constant 0 : index
    %c0_734 = arith.constant 0 : index
    %1643 = vector.load %arg4[%c0_732, %c103, %c0_733, %c0_734] : memref<1x160x16x16xf32, #tpu.memory_space<vmem>>, vector<1x1x16x16xf32>
    %1644 = vector.shape_cast %1643 : vector<1x1x16x16xf32> to vector<16x16xf32>
    %1645 = arith.mulf %1644, %1609 : vector<16x16xf32>
    %1646 = arith.addf %1642, %1645 : vector<16x16xf32>
    %c0_735 = arith.constant 0 : index
    %c140 = arith.constant 140 : index
    %c0_736 = arith.constant 0 : index
    %c0_737 = arith.constant 0 : index
    %1647 = vector.load %arg4[%c0_735, %c140, %c0_736, %c0_737] : memref<1x160x16x16xf32, #tpu.memory_space<vmem>>, vector<1x1x16x16xf32>
    %1648 = vector.shape_cast %1647 : vector<1x1x16x16xf32> to vector<16x16xf32>
    %c0_738 = arith.constant 0 : index
    %c156 = arith.constant 156 : index
    %c0_739 = arith.constant 0 : index
    %c0_740 = arith.constant 0 : index
    %1649 = vector.load %arg4[%c0_738, %c156, %c0_739, %c0_740] : memref<1x160x16x16xf32, #tpu.memory_space<vmem>>, vector<1x1x16x16xf32>
    %1650 = vector.shape_cast %1649 : vector<1x1x16x16xf32> to vector<16x16xf32>
    %1651 = arith.mulf %1648, %1646 : vector<16x16xf32>
    %1652 = arith.addf %1212, %1651 : vector<16x16xf32>
    %1653 = arith.mulf %1650, %1615 : vector<16x16xf32>
    %1654 = arith.addf %1652, %1653 : vector<16x16xf32>
    %c0_741 = arith.constant 0 : index
    %c104 = arith.constant 104 : index
    %c0_742 = arith.constant 0 : index
    %c0_743 = arith.constant 0 : index
    %1655 = vector.load %arg4[%c0_741, %c104, %c0_742, %c0_743] : memref<1x160x16x16xf32, #tpu.memory_space<vmem>>, vector<1x1x16x16xf32>
    %1656 = vector.shape_cast %1655 : vector<1x1x16x16xf32> to vector<16x16xf32>
    %1657 = arith.mulf %1656, %1574 : vector<16x16xf32>
    %c0_744 = arith.constant 0 : index
    %c105 = arith.constant 105 : index
    %c0_745 = arith.constant 0 : index
    %c0_746 = arith.constant 0 : index
    %1658 = vector.load %arg4[%c0_744, %c105, %c0_745, %c0_746] : memref<1x160x16x16xf32, #tpu.memory_space<vmem>>, vector<1x1x16x16xf32>
    %1659 = vector.shape_cast %1658 : vector<1x1x16x16xf32> to vector<16x16xf32>
    %1660 = arith.mulf %1659, %1579 : vector<16x16xf32>
    %1661 = arith.addf %1657, %1660 : vector<16x16xf32>
    %c0_747 = arith.constant 0 : index
    %c106 = arith.constant 106 : index
    %c0_748 = arith.constant 0 : index
    %c0_749 = arith.constant 0 : index
    %1662 = vector.load %arg4[%c0_747, %c106, %c0_748, %c0_749] : memref<1x160x16x16xf32, #tpu.memory_space<vmem>>, vector<1x1x16x16xf32>
    %1663 = vector.shape_cast %1662 : vector<1x1x16x16xf32> to vector<16x16xf32>
    %1664 = arith.mulf %1663, %1584 : vector<16x16xf32>
    %1665 = arith.addf %1661, %1664 : vector<16x16xf32>
    %c0_750 = arith.constant 0 : index
    %c107 = arith.constant 107 : index
    %c0_751 = arith.constant 0 : index
    %c0_752 = arith.constant 0 : index
    %1666 = vector.load %arg4[%c0_750, %c107, %c0_751, %c0_752] : memref<1x160x16x16xf32, #tpu.memory_space<vmem>>, vector<1x1x16x16xf32>
    %1667 = vector.shape_cast %1666 : vector<1x1x16x16xf32> to vector<16x16xf32>
    %1668 = arith.mulf %1667, %1589 : vector<16x16xf32>
    %1669 = arith.addf %1665, %1668 : vector<16x16xf32>
    %c0_753 = arith.constant 0 : index
    %c108 = arith.constant 108 : index
    %c0_754 = arith.constant 0 : index
    %c0_755 = arith.constant 0 : index
    %1670 = vector.load %arg4[%c0_753, %c108, %c0_754, %c0_755] : memref<1x160x16x16xf32, #tpu.memory_space<vmem>>, vector<1x1x16x16xf32>
    %1671 = vector.shape_cast %1670 : vector<1x1x16x16xf32> to vector<16x16xf32>
    %1672 = arith.mulf %1671, %1594 : vector<16x16xf32>
    %1673 = arith.addf %1669, %1672 : vector<16x16xf32>
    %c0_756 = arith.constant 0 : index
    %c109 = arith.constant 109 : index
    %c0_757 = arith.constant 0 : index
    %c0_758 = arith.constant 0 : index
    %1674 = vector.load %arg4[%c0_756, %c109, %c0_757, %c0_758] : memref<1x160x16x16xf32, #tpu.memory_space<vmem>>, vector<1x1x16x16xf32>
    %1675 = vector.shape_cast %1674 : vector<1x1x16x16xf32> to vector<16x16xf32>
    %1676 = arith.mulf %1675, %1599 : vector<16x16xf32>
    %1677 = arith.addf %1673, %1676 : vector<16x16xf32>
    %c0_759 = arith.constant 0 : index
    %c110 = arith.constant 110 : index
    %c0_760 = arith.constant 0 : index
    %c0_761 = arith.constant 0 : index
    %1678 = vector.load %arg4[%c0_759, %c110, %c0_760, %c0_761] : memref<1x160x16x16xf32, #tpu.memory_space<vmem>>, vector<1x1x16x16xf32>
    %1679 = vector.shape_cast %1678 : vector<1x1x16x16xf32> to vector<16x16xf32>
    %1680 = arith.mulf %1679, %1604 : vector<16x16xf32>
    %1681 = arith.addf %1677, %1680 : vector<16x16xf32>
    %c0_762 = arith.constant 0 : index
    %c111 = arith.constant 111 : index
    %c0_763 = arith.constant 0 : index
    %c0_764 = arith.constant 0 : index
    %1682 = vector.load %arg4[%c0_762, %c111, %c0_763, %c0_764] : memref<1x160x16x16xf32, #tpu.memory_space<vmem>>, vector<1x1x16x16xf32>
    %1683 = vector.shape_cast %1682 : vector<1x1x16x16xf32> to vector<16x16xf32>
    %1684 = arith.mulf %1683, %1609 : vector<16x16xf32>
    %1685 = arith.addf %1681, %1684 : vector<16x16xf32>
    %c0_765 = arith.constant 0 : index
    %c141 = arith.constant 141 : index
    %c0_766 = arith.constant 0 : index
    %c0_767 = arith.constant 0 : index
    %1686 = vector.load %arg4[%c0_765, %c141, %c0_766, %c0_767] : memref<1x160x16x16xf32, #tpu.memory_space<vmem>>, vector<1x1x16x16xf32>
    %1687 = vector.shape_cast %1686 : vector<1x1x16x16xf32> to vector<16x16xf32>
    %c0_768 = arith.constant 0 : index
    %c157 = arith.constant 157 : index
    %c0_769 = arith.constant 0 : index
    %c0_770 = arith.constant 0 : index
    %1688 = vector.load %arg4[%c0_768, %c157, %c0_769, %c0_770] : memref<1x160x16x16xf32, #tpu.memory_space<vmem>>, vector<1x1x16x16xf32>
    %1689 = vector.shape_cast %1688 : vector<1x1x16x16xf32> to vector<16x16xf32>
    %1690 = arith.mulf %1687, %1685 : vector<16x16xf32>
    %1691 = arith.addf %1251, %1690 : vector<16x16xf32>
    %1692 = arith.mulf %1689, %1615 : vector<16x16xf32>
    %1693 = arith.addf %1691, %1692 : vector<16x16xf32>
    %c0_771 = arith.constant 0 : index
    %c112 = arith.constant 112 : index
    %c0_772 = arith.constant 0 : index
    %c0_773 = arith.constant 0 : index
    %1694 = vector.load %arg4[%c0_771, %c112, %c0_772, %c0_773] : memref<1x160x16x16xf32, #tpu.memory_space<vmem>>, vector<1x1x16x16xf32>
    %1695 = vector.shape_cast %1694 : vector<1x1x16x16xf32> to vector<16x16xf32>
    %1696 = arith.mulf %1695, %1574 : vector<16x16xf32>
    %c0_774 = arith.constant 0 : index
    %c113 = arith.constant 113 : index
    %c0_775 = arith.constant 0 : index
    %c0_776 = arith.constant 0 : index
    %1697 = vector.load %arg4[%c0_774, %c113, %c0_775, %c0_776] : memref<1x160x16x16xf32, #tpu.memory_space<vmem>>, vector<1x1x16x16xf32>
    %1698 = vector.shape_cast %1697 : vector<1x1x16x16xf32> to vector<16x16xf32>
    %1699 = arith.mulf %1698, %1579 : vector<16x16xf32>
    %1700 = arith.addf %1696, %1699 : vector<16x16xf32>
    %c0_777 = arith.constant 0 : index
    %c114 = arith.constant 114 : index
    %c0_778 = arith.constant 0 : index
    %c0_779 = arith.constant 0 : index
    %1701 = vector.load %arg4[%c0_777, %c114, %c0_778, %c0_779] : memref<1x160x16x16xf32, #tpu.memory_space<vmem>>, vector<1x1x16x16xf32>
    %1702 = vector.shape_cast %1701 : vector<1x1x16x16xf32> to vector<16x16xf32>
    %1703 = arith.mulf %1702, %1584 : vector<16x16xf32>
    %1704 = arith.addf %1700, %1703 : vector<16x16xf32>
    %c0_780 = arith.constant 0 : index
    %c115 = arith.constant 115 : index
    %c0_781 = arith.constant 0 : index
    %c0_782 = arith.constant 0 : index
    %1705 = vector.load %arg4[%c0_780, %c115, %c0_781, %c0_782] : memref<1x160x16x16xf32, #tpu.memory_space<vmem>>, vector<1x1x16x16xf32>
    %1706 = vector.shape_cast %1705 : vector<1x1x16x16xf32> to vector<16x16xf32>
    %1707 = arith.mulf %1706, %1589 : vector<16x16xf32>
    %1708 = arith.addf %1704, %1707 : vector<16x16xf32>
    %c0_783 = arith.constant 0 : index
    %c116 = arith.constant 116 : index
    %c0_784 = arith.constant 0 : index
    %c0_785 = arith.constant 0 : index
    %1709 = vector.load %arg4[%c0_783, %c116, %c0_784, %c0_785] : memref<1x160x16x16xf32, #tpu.memory_space<vmem>>, vector<1x1x16x16xf32>
    %1710 = vector.shape_cast %1709 : vector<1x1x16x16xf32> to vector<16x16xf32>
    %1711 = arith.mulf %1710, %1594 : vector<16x16xf32>
    %1712 = arith.addf %1708, %1711 : vector<16x16xf32>
    %c0_786 = arith.constant 0 : index
    %c117 = arith.constant 117 : index
    %c0_787 = arith.constant 0 : index
    %c0_788 = arith.constant 0 : index
    %1713 = vector.load %arg4[%c0_786, %c117, %c0_787, %c0_788] : memref<1x160x16x16xf32, #tpu.memory_space<vmem>>, vector<1x1x16x16xf32>
    %1714 = vector.shape_cast %1713 : vector<1x1x16x16xf32> to vector<16x16xf32>
    %1715 = arith.mulf %1714, %1599 : vector<16x16xf32>
    %1716 = arith.addf %1712, %1715 : vector<16x16xf32>
    %c0_789 = arith.constant 0 : index
    %c118 = arith.constant 118 : index
    %c0_790 = arith.constant 0 : index
    %c0_791 = arith.constant 0 : index
    %1717 = vector.load %arg4[%c0_789, %c118, %c0_790, %c0_791] : memref<1x160x16x16xf32, #tpu.memory_space<vmem>>, vector<1x1x16x16xf32>
    %1718 = vector.shape_cast %1717 : vector<1x1x16x16xf32> to vector<16x16xf32>
    %1719 = arith.mulf %1718, %1604 : vector<16x16xf32>
    %1720 = arith.addf %1716, %1719 : vector<16x16xf32>
    %c0_792 = arith.constant 0 : index
    %c119 = arith.constant 119 : index
    %c0_793 = arith.constant 0 : index
    %c0_794 = arith.constant 0 : index
    %1721 = vector.load %arg4[%c0_792, %c119, %c0_793, %c0_794] : memref<1x160x16x16xf32, #tpu.memory_space<vmem>>, vector<1x1x16x16xf32>
    %1722 = vector.shape_cast %1721 : vector<1x1x16x16xf32> to vector<16x16xf32>
    %1723 = arith.mulf %1722, %1609 : vector<16x16xf32>
    %1724 = arith.addf %1720, %1723 : vector<16x16xf32>
    %c0_795 = arith.constant 0 : index
    %c142 = arith.constant 142 : index
    %c0_796 = arith.constant 0 : index
    %c0_797 = arith.constant 0 : index
    %1725 = vector.load %arg4[%c0_795, %c142, %c0_796, %c0_797] : memref<1x160x16x16xf32, #tpu.memory_space<vmem>>, vector<1x1x16x16xf32>
    %1726 = vector.shape_cast %1725 : vector<1x1x16x16xf32> to vector<16x16xf32>
    %c0_798 = arith.constant 0 : index
    %c158 = arith.constant 158 : index
    %c0_799 = arith.constant 0 : index
    %c0_800 = arith.constant 0 : index
    %1727 = vector.load %arg4[%c0_798, %c158, %c0_799, %c0_800] : memref<1x160x16x16xf32, #tpu.memory_space<vmem>>, vector<1x1x16x16xf32>
    %1728 = vector.shape_cast %1727 : vector<1x1x16x16xf32> to vector<16x16xf32>
    %1729 = arith.mulf %1726, %1724 : vector<16x16xf32>
    %1730 = arith.addf %1290, %1729 : vector<16x16xf32>
    %1731 = arith.mulf %1728, %1615 : vector<16x16xf32>
    %1732 = arith.addf %1730, %1731 : vector<16x16xf32>
    %c0_801 = arith.constant 0 : index
    %c120 = arith.constant 120 : index
    %c0_802 = arith.constant 0 : index
    %c0_803 = arith.constant 0 : index
    %1733 = vector.load %arg4[%c0_801, %c120, %c0_802, %c0_803] : memref<1x160x16x16xf32, #tpu.memory_space<vmem>>, vector<1x1x16x16xf32>
    %1734 = vector.shape_cast %1733 : vector<1x1x16x16xf32> to vector<16x16xf32>
    %1735 = arith.mulf %1734, %1574 : vector<16x16xf32>
    %c0_804 = arith.constant 0 : index
    %c121 = arith.constant 121 : index
    %c0_805 = arith.constant 0 : index
    %c0_806 = arith.constant 0 : index
    %1736 = vector.load %arg4[%c0_804, %c121, %c0_805, %c0_806] : memref<1x160x16x16xf32, #tpu.memory_space<vmem>>, vector<1x1x16x16xf32>
    %1737 = vector.shape_cast %1736 : vector<1x1x16x16xf32> to vector<16x16xf32>
    %1738 = arith.mulf %1737, %1579 : vector<16x16xf32>
    %1739 = arith.addf %1735, %1738 : vector<16x16xf32>
    %c0_807 = arith.constant 0 : index
    %c122 = arith.constant 122 : index
    %c0_808 = arith.constant 0 : index
    %c0_809 = arith.constant 0 : index
    %1740 = vector.load %arg4[%c0_807, %c122, %c0_808, %c0_809] : memref<1x160x16x16xf32, #tpu.memory_space<vmem>>, vector<1x1x16x16xf32>
    %1741 = vector.shape_cast %1740 : vector<1x1x16x16xf32> to vector<16x16xf32>
    %1742 = arith.mulf %1741, %1584 : vector<16x16xf32>
    %1743 = arith.addf %1739, %1742 : vector<16x16xf32>
    %c0_810 = arith.constant 0 : index
    %c123 = arith.constant 123 : index
    %c0_811 = arith.constant 0 : index
    %c0_812 = arith.constant 0 : index
    %1744 = vector.load %arg4[%c0_810, %c123, %c0_811, %c0_812] : memref<1x160x16x16xf32, #tpu.memory_space<vmem>>, vector<1x1x16x16xf32>
    %1745 = vector.shape_cast %1744 : vector<1x1x16x16xf32> to vector<16x16xf32>
    %1746 = arith.mulf %1745, %1589 : vector<16x16xf32>
    %1747 = arith.addf %1743, %1746 : vector<16x16xf32>
    %c0_813 = arith.constant 0 : index
    %c124 = arith.constant 124 : index
    %c0_814 = arith.constant 0 : index
    %c0_815 = arith.constant 0 : index
    %1748 = vector.load %arg4[%c0_813, %c124, %c0_814, %c0_815] : memref<1x160x16x16xf32, #tpu.memory_space<vmem>>, vector<1x1x16x16xf32>
    %1749 = vector.shape_cast %1748 : vector<1x1x16x16xf32> to vector<16x16xf32>
    %1750 = arith.mulf %1749, %1594 : vector<16x16xf32>
    %1751 = arith.addf %1747, %1750 : vector<16x16xf32>
    %c0_816 = arith.constant 0 : index
    %c125 = arith.constant 125 : index
    %c0_817 = arith.constant 0 : index
    %c0_818 = arith.constant 0 : index
    %1752 = vector.load %arg4[%c0_816, %c125, %c0_817, %c0_818] : memref<1x160x16x16xf32, #tpu.memory_space<vmem>>, vector<1x1x16x16xf32>
    %1753 = vector.shape_cast %1752 : vector<1x1x16x16xf32> to vector<16x16xf32>
    %1754 = arith.mulf %1753, %1599 : vector<16x16xf32>
    %1755 = arith.addf %1751, %1754 : vector<16x16xf32>
    %c0_819 = arith.constant 0 : index
    %c126 = arith.constant 126 : index
    %c0_820 = arith.constant 0 : index
    %c0_821 = arith.constant 0 : index
    %1756 = vector.load %arg4[%c0_819, %c126, %c0_820, %c0_821] : memref<1x160x16x16xf32, #tpu.memory_space<vmem>>, vector<1x1x16x16xf32>
    %1757 = vector.shape_cast %1756 : vector<1x1x16x16xf32> to vector<16x16xf32>
    %1758 = arith.mulf %1757, %1604 : vector<16x16xf32>
    %1759 = arith.addf %1755, %1758 : vector<16x16xf32>
    %c0_822 = arith.constant 0 : index
    %c127 = arith.constant 127 : index
    %c0_823 = arith.constant 0 : index
    %c0_824 = arith.constant 0 : index
    %1760 = vector.load %arg4[%c0_822, %c127, %c0_823, %c0_824] : memref<1x160x16x16xf32, #tpu.memory_space<vmem>>, vector<1x1x16x16xf32>
    %1761 = vector.shape_cast %1760 : vector<1x1x16x16xf32> to vector<16x16xf32>
    %1762 = arith.mulf %1761, %1609 : vector<16x16xf32>
    %1763 = arith.addf %1759, %1762 : vector<16x16xf32>
    %c0_825 = arith.constant 0 : index
    %c143 = arith.constant 143 : index
    %c0_826 = arith.constant 0 : index
    %c0_827 = arith.constant 0 : index
    %1764 = vector.load %arg4[%c0_825, %c143, %c0_826, %c0_827] : memref<1x160x16x16xf32, #tpu.memory_space<vmem>>, vector<1x1x16x16xf32>
    %1765 = vector.shape_cast %1764 : vector<1x1x16x16xf32> to vector<16x16xf32>
    %c0_828 = arith.constant 0 : index
    %c159 = arith.constant 159 : index
    %c0_829 = arith.constant 0 : index
    %c0_830 = arith.constant 0 : index
    %1766 = vector.load %arg4[%c0_828, %c159, %c0_829, %c0_830] : memref<1x160x16x16xf32, #tpu.memory_space<vmem>>, vector<1x1x16x16xf32>
    %1767 = vector.shape_cast %1766 : vector<1x1x16x16xf32> to vector<16x16xf32>
    %1768 = arith.mulf %1765, %1763 : vector<16x16xf32>
    %1769 = arith.addf %1329, %1768 : vector<16x16xf32>
    %1770 = arith.mulf %1767, %1615 : vector<16x16xf32>
    %1771 = arith.addf %1769, %1770 : vector<16x16xf32>
    %c0_831 = arith.constant 0 : index
    %c0_832 = arith.constant 0 : index
    %c0_833 = arith.constant 0 : index
    %c0_834 = arith.constant 0 : index
    %1772 = vector.load %arg5[%c0_831, %c0_832, %c0_833, %c0_834] : memref<1x4x16x16xf32, #tpu.memory_space<vmem>>, vector<1x1x16x16xf32>
    %1773 = vector.shape_cast %1772 : vector<1x1x16x16xf32> to vector<16x16xf32>
    %1774 = vector.shape_cast %1654 : vector<16x16xf32> to vector<1x1x16x16xf32>
    tpu.vector_store %arg5[%c0_831, %c0_832, %c0_833, %c0_834], %1774 {strides = array<i32>} : memref<1x4x16x16xf32, #tpu.memory_space<vmem>>, vector<1x1x16x16xf32>,
    %c0_835 = arith.constant 0 : index
    %c1_836 = arith.constant 1 : index
    %c0_837 = arith.constant 0 : index
    %c0_838 = arith.constant 0 : index
    %1775 = vector.load %arg5[%c0_835, %c1_836, %c0_837, %c0_838] : memref<1x4x16x16xf32, #tpu.memory_space<vmem>>, vector<1x1x16x16xf32>
    %1776 = vector.shape_cast %1775 : vector<1x1x16x16xf32> to vector<16x16xf32>
    %1777 = vector.shape_cast %1693 : vector<16x16xf32> to vector<1x1x16x16xf32>
    tpu.vector_store %arg5[%c0_835, %c1_836, %c0_837, %c0_838], %1777 {strides = array<i32>} : memref<1x4x16x16xf32, #tpu.memory_space<vmem>>, vector<1x1x16x16xf32>,
    %c0_839 = arith.constant 0 : index
    %c2_840 = arith.constant 2 : index
    %c0_841 = arith.constant 0 : index
    %c0_842 = arith.constant 0 : index
    %1778 = vector.load %arg5[%c0_839, %c2_840, %c0_841, %c0_842] : memref<1x4x16x16xf32, #tpu.memory_space<vmem>>, vector<1x1x16x16xf32>
    %1779 = vector.shape_cast %1778 : vector<1x1x16x16xf32> to vector<16x16xf32>
    %1780 = vector.shape_cast %1732 : vector<16x16xf32> to vector<1x1x16x16xf32>
    tpu.vector_store %arg5[%c0_839, %c2_840, %c0_841, %c0_842], %1780 {strides = array<i32>} : memref<1x4x16x16xf32, #tpu.memory_space<vmem>>, vector<1x1x16x16xf32>,
    %c0_843 = arith.constant 0 : index
    %c3_844 = arith.constant 3 : index
    %c0_845 = arith.constant 0 : index
    %c0_846 = arith.constant 0 : index
    %1781 = vector.load %arg5[%c0_843, %c3_844, %c0_845, %c0_846] : memref<1x4x16x16xf32, #tpu.memory_space<vmem>>, vector<1x1x16x16xf32>
    %1782 = vector.shape_cast %1781 : vector<1x1x16x16xf32> to vector<16x16xf32>
    %1783 = vector.shape_cast %1771 : vector<16x16xf32> to vector<1x1x16x16xf32>
    tpu.vector_store %arg5[%c0_843, %c3_844, %c0_845, %c0_846], %1783 {strides = array<i32>} : memref<1x4x16x16xf32, #tpu.memory_space<vmem>>, vector<1x1x16x16xf32>,
    return
  }
  func.func @transform_0(%arg0: i32, %arg1: i32, %arg2: i32) -> (i32, i32, i32, i32) {
    %c0_i32 = arith.constant 0 : i32
    %c0_i32_0 = arith.constant 0 : i32
    return %arg0, %c0_i32, %arg1, %arg2 : i32, i32, i32, i32
  }
  func.func @transform_1(%arg0: i32, %arg1: i32, %arg2: i32) -> (i32, i32, i32, i32) {
    %c0_i32 = arith.constant 0 : i32
    %c0_i32_0 = arith.constant 0 : i32
    return %arg0, %c0_i32, %arg1, %arg2 : i32, i32, i32, i32
  }
  func.func @transform_2(%arg0: i32, %arg1: i32, %arg2: i32) -> (i32, i32, i32, i32) {
    %c0_i32 = arith.constant 0 : i32
    %c0_i32_0 = arith.constant 0 : i32
    return %arg0, %c0_i32, %arg1, %arg2 : i32, i32, i32, i32
  }
}

</mosaic_0001>

<llo_original>
// kernel: tpu_custom_call.1
$region0: #{tpu_custom_call.1}
  #allocation0 [shape = 'u32[]', space=smem, size = 0x4, offset = 0x4, fixed_abs, tag = 'smem constant byte address 0x4 - core index']
  #allocation1 [shape = 'u32[144,128]{1,0:T(1,128)}', space=vmem, size = 0x12000, scoped, tag = 'internal scratch']
  %s0 = inlined_call_operand.vmem [shape: f32[2,4,16,16], index: 0, kind: input, shape index: {}]
  %s1 = inlined_call_operand.vmem [shape: f32[2,160,16,16], index: 1, kind: input, shape index: {}]
  %s2 = inlined_call_operand.hbm [shape: f32[2,4,16,16], index: 2, kind: output, shape index: {}]
  %s3 = sld [smem:[#allocation0]]
  $region41: #{tpu_custom_call.1} parent=0
    _
  %s5 = ssub.s32 1, %s3
  %s6 = scalar_select 0, %s5, %s3
  $region1: #{tpu_custom_call.1} parent=0
    #allocation2 [shape = 'u8[65536]{0}', space=vmem, size = 0x10000, scoped, tag = 'output window, operand 0']
    #allocation3 [shape = 's32[2]{0}', space=sflag, size = 0x8, scoped, tag = 'scoped memory for tpu_custom_call.1']
    %7 = vsyncpa [#allocation3], 0
    %s8 = scalar_lea.sflag [#allocation3], 1
    %9 = vsyncpa %s8, 0
    loop: start=0, step=1, limit=4
    $region2: #{tpu_custom_call.1} parent=1 // loop_pre_header
      _
    $region3: #{tpu_custom_call.1} parent=1 // loop_header
      %s11 = sphi 0, %s15
      %p12 = scmp.ge.s32.totalorder %s11, 4
      %s18 = sphi 0, %s37
      %s19 = sphi 0, %s33
      %s20 = sphi 0, %s29
      %s21 = sphi 0, %s18
      %s22 = sphi 0, %s19
      %s23 = sphi 0, %s20
      %s24 = sphi 0, %s21
      %s25 = sphi 0, %s22
      %s26 = sphi 0, %s23
      %s44 = sphi 0, %s46
      %s47 = sphi 0, %s44
      %s48 = sphi 0, %s47
      %s64 = sphi 0, %s48
      %s74 = sphi 0, %s76
      %s77 = sphi 0, %s74
      %s78 = sphi 0, %s77
      %s94 = sphi 0, %s78
      %s104 = sphi 0, %s106
      %s107 = sphi 0, %s104
      %s108 = sphi 0, %s107
      %s124 = sphi 0, %s108
    $region4: #{tpu_custom_call.1} parent=1 // loop_header_branch
      %14 = sbr.rel (%p12) target = $region8
    $region5: #{tpu_custom_call.1} parent=1 // loop_body
      %s16 = ssub.s32 %s11, 1
      %s17 = ssub.s32 %s11, 2
      %s27 = sadd.s32 1, %s20
      %p28 = scmp.ge.s32.totalorder %s27, 1
      %s29 = scalar_select %p28, 0, %s27
      %s30 = sadd.s32 1, %s19
      %s31 = scalar_select %p28, %s30, %s19
      %p32 = scmp.ge.s32.totalorder %s31, 1
      %s33 = scalar_select %p32, 0, %s31
      %s34 = sadd.s32 1, %s18
      %s35 = scalar_select %p32, %s34, %s18
      %p36 = scmp.ge.s32.totalorder %s35, 2
      %s37 = scalar_select %p36, 0, %s35
      %s38 = ssub.s32 %s18, %s37
      %s39 = ssub.s32 %s19, %s33
      %s40 = sor.u32 %s38, %s39
      %s41 = ssub.s32 %s20, %s29
      %s42 = sor.u32 %s40, %s41
      %p43 = scmp.eq.s32.totalorder %s42, 0
      %s45 = sadd.s32 %s44, 1
      %s46 = scalar_select %p43, %s44, %s45
      %p49 = pneg %p43
      %p50 = scmp.eq.s32.totalorder %s11, 1
      %p51 = por %p49, %p50
      %p52 = scmp.ne.s32.totalorder %s44, %s47
      %p53 = scmp.eq.s32.totalorder %s11, 0
      %p54 = por %p52, %p53
      %p55 = scmp.ne.s32.totalorder %s44, %s47
      %p56 = scmp.eq.s32.totalorder %s16, 1
      %p57 = por %p55, %p56
      %p58 = scmp.ne.s32.totalorder %s47, %s48
      %p59 = scmp.eq.s32.totalorder %s16, 0
      %p60 = por %p58, %p59
      %p61 = scmp.ne.s32.totalorder %s47, %s48
      %p62 = scmp.eq.s32.totalorder %s17, 1
      %p63 = por %p61, %p62
      %p65 = scmp.ne.s32.totalorder %s48, %s64
      %p66 = scmp.eq.s32.totalorder %s17, 0
      %p67 = por %p65, %p66
      %s68 = ssub.s32 %s18, %s37
      %s69 = ssub.s32 %s19, %s33
      %s70 = sor.u32 %s68, %s69
      %s71 = ssub.s32 %s20, %s29
      %s72 = sor.u32 %s70, %s71
      %p73 = scmp.eq.s32.totalorder %s72, 0
      %s75 = sadd.s32 %s74, 1
      %s76 = scalar_select %p73, %s74, %s75
      %p79 = pneg %p73
      %p80 = scmp.eq.s32.totalorder %s11, 1
      %p81 = por %p79, %p80
      %p82 = scmp.ne.s32.totalorder %s74, %s77
      %p83 = scmp.eq.s32.totalorder %s11, 0
      %p84 = por %p82, %p83
      %p85 = scmp.ne.s32.totalorder %s74, %s77
      %p86 = scmp.eq.s32.totalorder %s16, 1
      %p87 = por %p85, %p86
      %p88 = scmp.ne.s32.totalorder %s77, %s78
      %p89 = scmp.eq.s32.totalorder %s16, 0
      %p90 = por %p88, %p89
      %p91 = scmp.ne.s32.totalorder %s77, %s78
      %p92 = scmp.eq.s32.totalorder %s17, 1
      %p93 = por %p91, %p92
      %p95 = scmp.ne.s32.totalorder %s78, %s94
      %p96 = scmp.eq.s32.totalorder %s17, 0
      %p97 = por %p95, %p96
      %s98 = ssub.s32 %s18, %s37
      %s99 = ssub.s32 %s19, %s33
      %s100 = sor.u32 %s98, %s99
      %s101 = ssub.s32 %s20, %s29
      %s102 = sor.u32 %s100, %s101
      %p103 = scmp.eq.s32.totalorder %s102, 0
      %s105 = sadd.s32 %s104, 1
      %s106 = scalar_select %p103, %s104, %s105
      %p109 = pneg %p103
      %p110 = scmp.eq.s32.totalorder %s11, 1
      %p111 = por %p109, %p110
      %p112 = scmp.ne.s32.totalorder %s104, %s107
      %p113 = scmp.eq.s32.totalorder %s11, 0
      %p114 = por %p112, %p113
      %p115 = scmp.ne.s32.totalorder %s104, %s107
      %p116 = scmp.eq.s32.totalorder %s16, 1
      %p117 = por %p115, %p116
      %p118 = scmp.ne.s32.totalorder %s107, %s108
      %p119 = scmp.eq.s32.totalorder %s16, 0
      %p120 = por %p118, %p119
      %p121 = scmp.ne.s32.totalorder %s107, %s108
      %p122 = scmp.eq.s32.totalorder %s17, 1
      %p123 = por %p121, %p122
      %p125 = scmp.ne.s32.totalorder %s108, %s124
      %p126 = scmp.eq.s32.totalorder %s17, 0
      %p127 = por %p125, %p126
      %p128 = scmp.le.s32.totalorder 1, %s11
      %p129 = scmp.lt.s32.totalorder %s11, 3
      %p130 = pnand %p128, %p129
      %p131 = pneg %p130
      // Predicated region
      $region9: #{tpu_custom_call.1} parent=5 // pred_check
        _
      $region10: #{tpu_custom_call.1} parent=5 // pred_check_branch
        %133 = sbr.rel (%p130) target = $region12
      $region11: #{tpu_custom_call.1} parent=5 // pred_region
        %s134 = ssub.s32 %s11, 1
      $region12: #{tpu_custom_call.1} parent=5 // pred_fallthru
        _
      %p135 = scmp.lt.s32.totalorder %s11, 2
      // Predicated region
      $region13: #{tpu_custom_call.1} parent=5 // pred_check
        %p136 = pneg %p135
      $region14: #{tpu_custom_call.1} parent=5 // pred_check_branch
        %138 = sbr.rel (%p136) target = $region16
      $region15: #{tpu_custom_call.1} parent=5 // pred_region
        // Predicated region
        $region17: #{tpu_custom_call.1} parent=15 // pred_check
          %p139 = pneg %p54
        $region18: #{tpu_custom_call.1} parent=15 // pred_check_branch
          %141 = sbr.rel (%p139) target = $region20
        $region19: #{tpu_custom_call.1} parent=15 // pred_region
          %s142 = smul.u32 2, %s19
          %p143 = scmp.lt.s32.totalorder %s18, 1
          %s144 = scalar_select %p143, %s18, 1
          %p145 = scmp.lt.s32.totalorder %s142, 1
          %s146 = scalar_select %p145, %s142, 1
          %p147 = scmp.lt.s32.totalorder %s20, 0
          %s148 = scalar_select %p147, %s20, 0
          %s149 = sadd.s32 %s148, %s146
          %s150 = smul.addr %s144, 8
          %s151 = sadd.s32 %s149, %s150
          %s152 = smul.addr %s151, 8
          %s153 = scalar_lea.vmem %s0, %s152
          %s154 = smul.u32 2, %s19
        $region20: #{tpu_custom_call.1} parent=15 // pred_fallthru
          _
        // Predicated region
        $region21: #{tpu_custom_call.1} parent=15 // pred_check
          %p155 = pneg %p84
        $region22: #{tpu_custom_call.1} parent=15 // pred_check_branch
          %157 = sbr.rel (%p155) target = $region24
        $region23: #{tpu_custom_call.1} parent=15 // pred_region
          %s158 = smul.u32 2, %s19
          %p159 = scmp.lt.s32.totalorder %s18, 1
          %s160 = scalar_select %p159, %s18, 1
          %p161 = scmp.lt.s32.totalorder %s158, 1
          %s162 = scalar_select %p161, %s158, 1
          %p163 = scmp.lt.s32.totalorder %s20, 0
          %s164 = scalar_select %p163, %s20, 0
          %s165 = sadd.s32 %s164, %s162
          %s166 = smul.addr %s160, 320
          %s167 = sadd.s32 %s165, %s166
          %s168 = smul.addr %s167, 8
          %s169 = scalar_lea.vmem %s1, %s168
          %s170 = smul.u32 2, %s19
        $region24: #{tpu_custom_call.1} parent=15 // pred_fallthru
          _
      $region16: #{tpu_custom_call.1} parent=5 // pred_fallthru
        _
      %p171 = scmp.le.s32.totalorder 1, %s11
      %p172 = scmp.lt.s32.totalorder %s11, 3
      %p173 = pnand %p171, %p172
      %p174 = pneg %p173
      // Predicated region
      $region25: #{tpu_custom_call.1} parent=5 // pred_check
        _
      $region26: #{tpu_custom_call.1} parent=5 // pred_check_branch
        %176 = sbr.rel (%p173) target = $region28
      $region27: #{tpu_custom_call.1} parent=5 // pred_region
        %s177 = ssub.s32 %s11, 1
        %s178 = smul.u32 2, %s22
        %p179 = scmp.lt.s32.totalorder %s21, 1
        %s180 = scalar_select %p179, %s21, 1
        %p181 = scmp.lt.s32.totalorder %s178, 1
        %s182 = scalar_select %p181, %s178, 1
        %p183 = scmp.lt.s32.totalorder %s23, 0
        %s184 = scalar_select %p183, %s23, 0
        %s185 = sadd.s32 %s184, %s182
        %s186 = smul.addr %s180, 8
        %s187 = sadd.s32 %s185, %s186
        %s188 = smul.addr %s187, 8
        %s189 = scalar_lea.vmem %s0, %s188
        %p190 = pneg %p60
        %p191 = pneg %p57
        %s192 = smul.u32 2, %s22
        %p193 = scmp.lt.s32.totalorder %s21, 1
        %s194 = scalar_select %p193, %s21, 1
        %p195 = scmp.lt.s32.totalorder %s192, 1
        %s196 = scalar_select %p195, %s192, 1
        %p197 = scmp.lt.s32.totalorder %s23, 0
        %s198 = scalar_select %p197, %s23, 0
        %s199 = sadd.s32 %s198, %s196
        %s200 = smul.addr %s194, 320
        %s201 = sadd.s32 %s199, %s200
        %s202 = smul.addr %s201, 8
        %s203 = scalar_lea.vmem %s1, %s202
        %p204 = pneg %p90
        %p205 = pneg %p87
        %p206 = pneg %p120
        %p207 = pneg %p117
        %s208 = sand.u32 %s107, 1
        %s209 = scalar_lea.sflag [#allocation3], %s208
        %s210 = sand.u32 %s107, 1
        %s211 = smul.addr %s210, 64
        %s212 = scalar_lea.vmem [#allocation2], %s211
        %s213 = smul.u32 2, %s22
        %p214 = scmp.lt.s32.totalorder %s21, 1
        %s215 = scalar_select %p214, %s21, 1
        %p216 = scmp.lt.s32.totalorder %s213, 1
        %s217 = scalar_select %p216, %s213, 1
        %p218 = scmp.lt.s32.totalorder %s23, 0
        %s219 = scalar_select %p218, %s23, 0
        %s220 = sadd.s32 %s219, %s217
        %s221 = smul.addr %s215, 8
        %s222 = sadd.s32 %s220, %s221
        %s223 = smul.addr %s222, 8
        %s224 = scalar_lea.vmem %s0, %s223
        %s225 = smul.u32 2, %s22
        %s226 = smul.u32 2, %s22
        %p227 = scmp.lt.s32.totalorder %s21, 1
        %s228 = scalar_select %p227, %s21, 1
        %p229 = scmp.lt.s32.totalorder %s226, 1
        %s230 = scalar_select %p229, %s226, 1
        %p231 = scmp.lt.s32.totalorder %s23, 0
        %s232 = scalar_select %p231, %s23, 0
        %s233 = sadd.s32 %s232, %s230
        %s234 = smul.addr %s228, 320
        %s235 = sadd.s32 %s233, %s234
        %s236 = smul.addr %s235, 8
        %s237 = scalar_lea.vmem %s1, %s236
        %s238 = smul.u32 2, %s22
        %s239 = smul.u32 2, %s22
        %v240 = vld [vmem:[%s224] sm:$0xff]
        %v241 = vld [vmem:[%s224 + $0x8] sm:$0xff]
        %vm242 = vcmp.ge.f32.partialorder %v240, -2.2
        %vm243 = vcmp.ge.f32.partialorder %v241, -2.2
        %vm244 = vcmp.lt.f32.partialorder %v240, -1.8
        %vm245 = vcmp.lt.f32.partialorder %v241, -1.8
        %vm246 = vmand %vm242, %vm244
        %vm247 = vmand %vm243, %vm245
        %v248 = vsel %vm246, 1, 0
        %v249 = vsel %vm247, 1, 0
        %v250 = vcvt.s32.f32 %v248
        %v251 = vcvt.s32.f32 %v249
        %vm252 = vcmp.ge.f32.partialorder %v240, -1.8
        %vm253 = vcmp.ge.f32.partialorder %v241, -1.8
        %vm254 = vcmp.lt.f32.partialorder %v240, -1.4
        %vm255 = vcmp.lt.f32.partialorder %v241, -1.4
        %vm256 = vmand %vm252, %vm254
        %vm257 = vmand %vm253, %vm255
        %v258 = vsel %vm256, 1, 0
        %v259 = vsel %vm257, 1, 0
        %v260 = vcvt.s32.f32 %v258
        %v261 = vcvt.s32.f32 %v259
        %vm262 = vcmp.ge.f32.partialorder %v240, -1.4
        %vm263 = vcmp.ge.f32.partialorder %v241, -1.4
        %vm264 = vcmp.lt.f32.partialorder %v240, -1.0
        %vm265 = vcmp.lt.f32.partialorder %v241, -1.0
        %vm266 = vmand %vm262, %vm264
        %vm267 = vmand %vm263, %vm265
        %v268 = vsel %vm266, 1, 0
        %v269 = vsel %vm267, 1, 0
        %v270 = vcvt.s32.f32 %v268
        %v271 = vcvt.s32.f32 %v269
        %vm272 = vcmp.ge.f32.partialorder %v240, -1.0
        %vm273 = vcmp.ge.f32.partialorder %v241, -1.0
        %vm274 = vcmp.lt.f32.partialorder %v240, -0.6
        %vm275 = vcmp.lt.f32.partialorder %v241, -0.6
        %vm276 = vmand %vm272, %vm274
        %vm277 = vmand %vm273, %vm275
        %v278 = vsel %vm276, 1, 0
        %v279 = vsel %vm277, 1, 0
        %v280 = vcvt.s32.f32 %v278
        %v281 = vcvt.s32.f32 %v279
        %vm282 = vcmp.ge.f32.partialorder %v240, -0.6
        %vm283 = vcmp.ge.f32.partialorder %v241, -0.6
        %vm284 = vcmp.lt.f32.partialorder %v240, -0.2
        %vm285 = vcmp.lt.f32.partialorder %v241, -0.2
        %vm286 = vmand %vm282, %vm284
        %vm287 = vmand %vm283, %vm285
        %v288 = vsel %vm286, 1, 0
        %v289 = vsel %vm287, 1, 0
        %v290 = vcvt.s32.f32 %v288
        %v291 = vcvt.s32.f32 %v289
        %vm292 = vcmp.ge.f32.partialorder %v240, -0.2
        %vm293 = vcmp.ge.f32.partialorder %v241, -0.2
        %vm294 = vcmp.lt.f32.partialorder %v240, 0.2
        %vm295 = vcmp.lt.f32.partialorder %v241, 0.2
        %vm296 = vmand %vm292, %vm294
        %vm297 = vmand %vm293, %vm295
        %v298 = vsel %vm296, 1, 0
        %v299 = vsel %vm297, 1, 0
        %v300 = vcvt.s32.f32 %v298
        %v301 = vcvt.s32.f32 %v299
        %vm302 = vcmp.ge.f32.partialorder %v240, 0.2
        %vm303 = vcmp.ge.f32.partialorder %v241, 0.2
        %vm304 = vcmp.lt.f32.partialorder %v240, 0.6
        %vm305 = vcmp.lt.f32.partialorder %v241, 0.6
        %vm306 = vmand %vm302, %vm304
        %vm307 = vmand %vm303, %vm305
        %v308 = vsel %vm306, 1, 0
        %v309 = vsel %vm307, 1, 0
        %v310 = vcvt.s32.f32 %v308
        %v311 = vcvt.s32.f32 %v309
        %vm312 = vcmp.ge.f32.partialorder %v240, 0.6
        %vm313 = vcmp.ge.f32.partialorder %v241, 0.6
        %vm314 = vcmp.lt.f32.partialorder %v240, 1.0
        %vm315 = vcmp.lt.f32.partialorder %v241, 1.0
        %vm316 = vmand %vm312, %vm314
        %vm317 = vmand %vm313, %vm315
        %v318 = vsel %vm316, 1, 0
        %v319 = vsel %vm317, 1, 0
        %v320 = vcvt.s32.f32 %v318
        %v321 = vcvt.s32.f32 %v319
        %vm322 = vcmp.ge.f32.partialorder %v240, 1.0
        %vm323 = vcmp.ge.f32.partialorder %v241, 1.0
        %vm324 = vcmp.lt.f32.partialorder %v240, 1.4
        %vm325 = vcmp.lt.f32.partialorder %v241, 1.4
        %vm326 = vmand %vm322, %vm324
        %vm327 = vmand %vm323, %vm325
        %v328 = vsel %vm326, 1, 0
        %v329 = vsel %vm327, 1, 0
        %v330 = vcvt.s32.f32 %v328
        %v331 = vcvt.s32.f32 %v329
        %vm332 = vcmp.ge.f32.partialorder %v240, 1.4
        %vm333 = vcmp.ge.f32.partialorder %v241, 1.4
        %vm334 = vcmp.lt.f32.partialorder %v240, 1.8
        %vm335 = vcmp.lt.f32.partialorder %v241, 1.8
        %vm336 = vmand %vm332, %vm334
        %vm337 = vmand %vm333, %vm335
        %v338 = vsel %vm336, 1, 0
        %v339 = vsel %vm337, 1, 0
        %v340 = vcvt.s32.f32 %v338
        %v341 = vcvt.s32.f32 %v339
        %vm342 = vcmp.ge.f32.partialorder %v240, 1.8
        %vm343 = vcmp.ge.f32.partialorder %v241, 1.8
        %vm344 = vcmp.lt.f32.partialorder %v240, 2.2
        %vm345 = vcmp.lt.f32.partialorder %v241, 2.2
        %vm346 = vmand %vm342, %vm344
        %vm347 = vmand %vm343, %vm345
        %v348 = vsel %vm346, 1, 0
        %v349 = vsel %vm347, 1, 0
        %v350 = vcvt.s32.f32 %v348
        %v351 = vcvt.s32.f32 %v349
        %v352 = vmul.f32 %v240, 2.5
        %v353 = vmul.f32 %v241, 2.5
        %v354 = vsub.f32 %v352, -5.5
        %v355 = vsub.f32 %v353, -5.5
        %v356 = vsub.f32 %v352, -4.5
        %v357 = vsub.f32 %v353, -4.5
        %v358 = vsub.f32 %v352, -3.5
        %v359 = vsub.f32 %v353, -3.5
        %v360 = vsub.f32 %v352, -2.5
        %v361 = vsub.f32 %v353, -2.5
        %v362 = vsub.f32 %v352, -1.5
        %v363 = vsub.f32 %v353, -1.5
        %v364 = vsub.f32 %v352, -0.5
        %v365 = vsub.f32 %v353, -0.5
        %v366 = vsub.f32 %v352, 0.5
        %v367 = vsub.f32 %v353, 0.5
        %v368 = vsub.f32 %v352, 1.5
        %v369 = vsub.f32 %v353, 1.5
        %v370 = vsub.f32 %v352, 2.5
        %v371 = vsub.f32 %v353, 2.5
        %v372 = vsub.f32 %v352, 3.5
        %v373 = vsub.f32 %v353, 3.5
        %v374 = vsub.f32 %v352, 4.5
        %v375 = vsub.f32 %v353, 4.5
        %v376 = vmul.f32 %v354, %v250
        %v377 = vmul.f32 %v355, %v251
        %v378 = vsub.f32 1.0, %v356
        %v379 = vsub.f32 1.0, %v357
        %v380 = vmul.f32 %v378, %v260
        %v381 = vmul.f32 %v379, %v261
        %v382 = vadd.f32 %v376, %v380
        %v383 = vadd.f32 %v377, %v381
        %v384 = vmul.f32 %v356, %v260
        %v385 = vmul.f32 %v357, %v261
        %v386 = vsub.f32 1.0, %v358
        %v387 = vsub.f32 1.0, %v359
        %v388 = vmul.f32 %v386, %v270
        %v389 = vmul.f32 %v387, %v271
        %v390 = vadd.f32 %v384, %v388
        %v391 = vadd.f32 %v385, %v389
        %v392 = vmul.f32 %v358, %v270
        %v393 = vmul.f32 %v359, %v271
        %v394 = vsub.f32 1.0, %v360
        %v395 = vsub.f32 1.0, %v361
        %v396 = vmul.f32 %v394, %v280
        %v397 = vmul.f32 %v395, %v281
        %v398 = vadd.f32 %v392, %v396
        %v399 = vadd.f32 %v393, %v397
        %v400 = vmul.f32 %v360, %v280
        %v401 = vmul.f32 %v361, %v281
        %v402 = vsub.f32 1.0, %v362
        %v403 = vsub.f32 1.0, %v363
        %v404 = vmul.f32 %v402, %v290
        %v405 = vmul.f32 %v403, %v291
        %v406 = vadd.f32 %v400, %v404
        %v407 = vadd.f32 %v401, %v405
        %v408 = vmul.f32 %v362, %v290
        %v409 = vmul.f32 %v363, %v291
        %v410 = vsub.f32 1.0, %v364
        %v411 = vsub.f32 1.0, %v365
        %v412 = vmul.f32 %v410, %v300
        %v413 = vmul.f32 %v411, %v301
        %v414 = vadd.f32 %v408, %v412
        %v415 = vadd.f32 %v409, %v413
        %v416 = vmul.f32 %v364, %v300
        %v417 = vmul.f32 %v365, %v301
        %v418 = vsub.f32 1.0, %v366
        %v419 = vsub.f32 1.0, %v367
        %v420 = vmul.f32 %v418, %v310
        %v421 = vmul.f32 %v419, %v311
        %v422 = vadd.f32 %v416, %v420
        %v423 = vadd.f32 %v417, %v421
        %v424 = vmul.f32 %v366, %v310
        %v425 = vmul.f32 %v367, %v311
        %v426 = vsub.f32 1.0, %v368
        %v427 = vsub.f32 1.0, %v369
        %v428 = vmul.f32 %v426, %v320
        %v429 = vmul.f32 %v427, %v321
        %v430 = vadd.f32 %v424, %v428
        %v431 = vadd.f32 %v425, %v429
        %v432 = vmul.f32 %v368, %v320
        %v433 = vmul.f32 %v369, %v321
        %v434 = vsub.f32 1.0, %v370
        %v435 = vsub.f32 1.0, %v371
        %v436 = vmul.f32 %v434, %v330
        %v437 = vmul.f32 %v435, %v331
        %v438 = vadd.f32 %v432, %v436
        %v439 = vadd.f32 %v433, %v437
        %v440 = vmul.f32 %v370, %v330
        %v441 = vmul.f32 %v371, %v331
        %v442 = vsub.f32 1.0, %v372
        %v443 = vsub.f32 1.0, %v373
        %v444 = vmul.f32 %v442, %v340
        %v445 = vmul.f32 %v443, %v341
        %v446 = vadd.f32 %v440, %v444
        %v447 = vadd.f32 %v441, %v445
        %v448 = vmul.f32 %v372, %v340
        %v449 = vmul.f32 %v373, %v341
        %v450 = vsub.f32 1.0, %v374
        %v451 = vsub.f32 1.0, %v375
        %v452 = vmul.f32 %v450, %v350
        %v453 = vmul.f32 %v451, %v351
        %v454 = vadd.f32 %v448, %v452
        %v455 = vadd.f32 %v449, %v453
        %v456 = vmul.f32 %v240, 1.25
        %v457 = vmul.f32 %v241, 1.25
        %v458 = vsub.f32 %v456, -2.75
        %v459 = vsub.f32 %v457, -2.75
        %v460 = vsub.f32 %v456, -2.25
        %v461 = vsub.f32 %v457, -2.25
        %v462 = vsub.f32 %v456, -1.75
        %v463 = vsub.f32 %v457, -1.75
        %v464 = vsub.f32 %v456, -1.25
        %v465 = vsub.f32 %v457, -1.25
        %v466 = vsub.f32 %v456, -0.75
        %v467 = vsub.f32 %v457, -0.75
        %v468 = vsub.f32 %v456, -0.25
        %v469 = vsub.f32 %v457, -0.25
        %v470 = vsub.f32 %v456, 0.25
        %v471 = vsub.f32 %v457, 0.25
        %v472 = vsub.f32 %v456, 0.75
        %v473 = vsub.f32 %v457, 0.75
        %v474 = vsub.f32 %v456, 1.25
        %v475 = vsub.f32 %v457, 1.25
        %v476 = vsub.f32 %v456, 1.75
        %v477 = vsub.f32 %v457, 1.75
        %v478 = vmul.f32 %v458, %v382
        %v479 = vmul.f32 %v459, %v383
        %v480 = vsub.f32 1.0, %v460
        %v481 = vsub.f32 1.0, %v461
        %v482 = vmul.f32 %v480, %v390
        %v483 = vmul.f32 %v481, %v391
        %v484 = vadd.f32 %v478, %v482
        %v485 = vadd.f32 %v479, %v483
        %v486 = vmul.f32 %v460, %v390
        %v487 = vmul.f32 %v461, %v391
        %v488 = vsub.f32 1.0, %v462
        %v489 = vsub.f32 1.0, %v463
        %v490 = vmul.f32 %v488, %v398
        %v491 = vmul.f32 %v489, %v399
        %v492 = vadd.f32 %v486, %v490
        %v493 = vadd.f32 %v487, %v491
        %v494 = vmul.f32 %v462, %v398
        %v495 = vmul.f32 %v463, %v399
        %v496 = vsub.f32 1.0, %v464
        %v497 = vsub.f32 1.0, %v465
        %v498 = vmul.f32 %v496, %v406
        %v499 = vmul.f32 %v497, %v407
        %v500 = vadd.f32 %v494, %v498
        %v501 = vadd.f32 %v495, %v499
        %v502 = vmul.f32 %v464, %v406
        %v503 = vmul.f32 %v465, %v407
        %v504 = vsub.f32 1.0, %v466
        %v505 = vsub.f32 1.0, %v467
        %v506 = vmul.f32 %v504, %v414
        %v507 = vmul.f32 %v505, %v415
        %v508 = vadd.f32 %v502, %v506
        %v509 = vadd.f32 %v503, %v507
        %v510 = vmul.f32 %v466, %v414
        %v511 = vmul.f32 %v467, %v415
        %v512 = vsub.f32 1.0, %v468
        %v513 = vsub.f32 1.0, %v469
        %v514 = vmul.f32 %v512, %v422
        %v515 = vmul.f32 %v513, %v423
        %v516 = vadd.f32 %v510, %v514
        %v517 = vadd.f32 %v511, %v515
        %v518 = vmul.f32 %v468, %v422
        %v519 = vmul.f32 %v469, %v423
        %v520 = vsub.f32 1.0, %v470
        %v521 = vsub.f32 1.0, %v471
        %v522 = vmul.f32 %v520, %v430
        %v523 = vmul.f32 %v521, %v431
        %v524 = vadd.f32 %v518, %v522
        %v525 = vadd.f32 %v519, %v523
        %v526 = vmul.f32 %v470, %v430
        %v527 = vmul.f32 %v471, %v431
        %v528 = vsub.f32 1.0, %v472
        %v529 = vsub.f32 1.0, %v473
        %v530 = vmul.f32 %v528, %v438
        %v531 = vmul.f32 %v529, %v439
        %v532 = vadd.f32 %v526, %v530
        %v533 = vadd.f32 %v527, %v531
        %v534 = vmul.f32 %v472, %v438
        %v535 = vmul.f32 %v473, %v439
        %v536 = vsub.f32 1.0, %v474
        %v537 = vsub.f32 1.0, %v475
        %v538 = vmul.f32 %v536, %v446
        %v539 = vmul.f32 %v537, %v447
        %v540 = vadd.f32 %v534, %v538
        %v541 = vadd.f32 %v535, %v539
        %v542 = vmul.f32 %v474, %v446
        %v543 = vmul.f32 %v475, %v447
        %v544 = vsub.f32 1.0, %v476
        %v545 = vsub.f32 1.0, %v477
        %v546 = vmul.f32 %v544, %v454
        %v547 = vmul.f32 %v545, %v455
        %v548 = vadd.f32 %v542, %v546
        %v549 = vadd.f32 %v543, %v547
        %v550 = vmul.f32 %v240, 0.8333333
        %v551 = vmul.f32 %v241, 0.8333333
        %v552 = vsub.f32 %v550, -1.8333334
        %v553 = vsub.f32 %v551, -1.8333334
        %v554 = vsub.f32 %v550, -1.5
        %v555 = vsub.f32 %v551, -1.5
        %v556 = vsub.f32 %v550, -1.1666666
        %v557 = vsub.f32 %v551, -1.1666666
        %v558 = vsub.f32 %v550, -0.8333333
        %v559 = vsub.f32 %v551, -0.8333333
        %v560 = vsub.f32 %v550, -0.5
        %v561 = vsub.f32 %v551, -0.5
        %v562 = vsub.f32 %v550, -0.16666667
        %v563 = vsub.f32 %v551, -0.16666667
        %v564 = vsub.f32 %v550, 0.16666667
        %v565 = vsub.f32 %v551, 0.16666667
        %v566 = vsub.f32 %v550, 0.5
        %v567 = vsub.f32 %v551, 0.5
        %v568 = vsub.f32 %v550, 0.8333333
        %v569 = vsub.f32 %v551, 0.8333333
        %v570 = vmul.f32 %v552, %v484
        %v571 = vmul.f32 %v553, %v485
        %v572 = vsub.f32 1.0, %v554
        %v573 = vsub.f32 1.0, %v555
        %v574 = vmul.f32 %v572, %v492
        %v575 = vmul.f32 %v573, %v493
        %v576 = vadd.f32 %v570, %v574
        %v577 = vadd.f32 %v571, %v575
        %v578 = vmul.f32 %v554, %v492
        %v579 = vmul.f32 %v555, %v493
        %v580 = vsub.f32 1.0, %v556
        %v581 = vsub.f32 1.0, %v557
        %v582 = vmul.f32 %v580, %v500
        %v583 = vmul.f32 %v581, %v501
        %v584 = vadd.f32 %v578, %v582
        %v585 = vadd.f32 %v579, %v583
        %v586 = vmul.f32 %v556, %v500
        %v587 = vmul.f32 %v557, %v501
        %v588 = vsub.f32 1.0, %v558
        %v589 = vsub.f32 1.0, %v559
        %v590 = vmul.f32 %v588, %v508
        %v591 = vmul.f32 %v589, %v509
        %v592 = vadd.f32 %v586, %v590
        %v593 = vadd.f32 %v587, %v591
        %v594 = vmul.f32 %v558, %v508
        %v595 = vmul.f32 %v559, %v509
        %v596 = vsub.f32 1.0, %v560
        %v597 = vsub.f32 1.0, %v561
        %v598 = vmul.f32 %v596, %v516
        %v599 = vmul.f32 %v597, %v517
        %v600 = vadd.f32 %v594, %v598
        %v601 = vadd.f32 %v595, %v599
        %v602 = vmul.f32 %v560, %v516
        %v603 = vmul.f32 %v561, %v517
        %v604 = vsub.f32 1.0, %v562
        %v605 = vsub.f32 1.0, %v563
        %v606 = vmul.f32 %v604, %v524
        %v607 = vmul.f32 %v605, %v525
        %v608 = vadd.f32 %v602, %v606
        %v609 = vadd.f32 %v603, %v607
        %v610 = vmul.f32 %v562, %v524
        %v611 = vmul.f32 %v563, %v525
        %v612 = vsub.f32 1.0, %v564
        %v613 = vsub.f32 1.0, %v565
        %v614 = vmul.f32 %v612, %v532
        %v615 = vmul.f32 %v613, %v533
        %v616 = vadd.f32 %v610, %v614
        %v617 = vadd.f32 %v611, %v615
        %v618 = vmul.f32 %v564, %v532
        %v619 = vmul.f32 %v565, %v533
        %v620 = vsub.f32 1.0, %v566
        %v621 = vsub.f32 1.0, %v567
        %v622 = vmul.f32 %v620, %v540
        %v623 = vmul.f32 %v621, %v541
        %v624 = vadd.f32 %v618, %v622
        %v625 = vadd.f32 %v619, %v623
        %v626 = vmul.f32 %v566, %v540
        %v627 = vmul.f32 %v567, %v541
        %v628 = vsub.f32 1.0, %v568
        %v629 = vsub.f32 1.0, %v569
        %v630 = vmul.f32 %v628, %v548
        %v631 = vmul.f32 %v629, %v549
        %v632 = vadd.f32 %v626, %v630
        %v633 = vadd.f32 %v627, %v631
        %v634 = vxor.u32 %v240, 2147483648
        %v635 = vxor.u32 %v241, 2147483648
        %v636 = vmul.f32 %v634, 1.442695
        %v637 = vpow.pop %v636
        %v638 = vmul.f32 %v635, 1.442695
        %v639 = vpow.pop %v638
        %v640 = vadd.f32 %v637, 1.0
        %v641 = vadd.f32 %v639, 1.0
        %v642 = vrcp.pop %v640
        %v643 = vmul.f32 1.0, %v642
        %v644 = vrcp.pop %v641
        %v645 = vmul.f32 1.0, %v644
        %v646 = vmul.f32 %v240, %v643
        %v647 = vmul.f32 %v241, %v645
        %v648 = vld [vmem:[%s237] sm:$0xff]
        %v649 = vld [vmem:[%s237 + $0x8] sm:$0xff]
        %v650 = vmul.f32 %v648, %v576
        %v651 = vmul.f32 %v649, %v577
        %s652 = scalar_lea.vmem %s237, 16
        %v653 = vld [vmem:[%s652] sm:$0xff]
        %v654 = vld [vmem:[%s652 + $0x8] sm:$0xff]
        %v655 = vmul.f32 %v653, %v584
        %v656 = vmul.f32 %v654, %v585
        %v657 = vadd.f32 %v650, %v655
        %v658 = vadd.f32 %v651, %v656
        %s659 = scalar_lea.vmem %s237, 32
        %v660 = vld [vmem:[%s659] sm:$0xff]
        %v661 = vld [vmem:[%s659 + $0x8] sm:$0xff]
        %v662 = vmul.f32 %v660, %v592
        %v663 = vmul.f32 %v661, %v593
        %v664 = vadd.f32 %v657, %v662
        %v665 = vadd.f32 %v658, %v663
        %s666 = scalar_lea.vmem %s237, 48
        %v667 = vld [vmem:[%s666] sm:$0xff]
        %v668 = vld [vmem:[%s666 + $0x8] sm:$0xff]
        %v669 = vmul.f32 %v667, %v600
        %v670 = vmul.f32 %v668, %v601
        %v671 = vadd.f32 %v664, %v669
        %v672 = vadd.f32 %v665, %v670
        %s673 = scalar_lea.vmem %s237, 64
        %v674 = vld [vmem:[%s673] sm:$0xff]
        %v675 = vld [vmem:[%s673 + $0x8] sm:$0xff]
        %v676 = vmul.f32 %v674, %v608
        %v677 = vmul.f32 %v675, %v609
        %v678 = vadd.f32 %v671, %v676
        %v679 = vadd.f32 %v672, %v677
        %s680 = scalar_lea.vmem %s237, 80
        %v681 = vld [vmem:[%s680] sm:$0xff]
        %v682 = vld [vmem:[%s680 + $0x8] sm:$0xff]
        %v683 = vmul.f32 %v681, %v616
        %v684 = vmul.f32 %v682, %v617
        %v685 = vadd.f32 %v678, %v683
        %v686 = vadd.f32 %v679, %v684
        %s687 = scalar_lea.vmem %s237, 96
        %v688 = vld [vmem:[%s687] sm:$0xff]
        %v689 = vld [vmem:[%s687 + $0x8] sm:$0xff]
        %v690 = vmul.f32 %v688, %v624
        %v691 = vmul.f32 %v689, %v625
        %v692 = vadd.f32 %v685, %v690
        %v693 = vadd.f32 %v686, %v691
        %s694 = scalar_lea.vmem %s237, 112
        %v695 = vld [vmem:[%s694] sm:$0xff]
        %v696 = vld [vmem:[%s694 + $0x8] sm:$0xff]
        %v697 = vmul.f32 %v695, %v632
        %v698 = vmul.f32 %v696, %v633
        %v699 = vadd.f32 %v692, %v697
        %v700 = vadd.f32 %v693, %v698
        %s701 = scalar_lea.vmem %s237, 2048
        %v702 = vld [vmem:[%s701] sm:$0xff]
        %v703 = vld [vmem:[%s701 + $0x8] sm:$0xff]
        %s704 = scalar_lea.vmem %s237, 2304
        %v705 = vld [vmem:[%s704] sm:$0xff]
        %v706 = vld [vmem:[%s704 + $0x8] sm:$0xff]
        %v707 = vmul.f32 %v702, %v699
        %v708 = vmul.f32 %v703, %v700
        %v709 = vadd.f32 %v707, 0.0
        %v710 = vadd.f32 %v708, 0.0
        %v711 = vmul.f32 %v705, %v646
        %v712 = vmul.f32 %v706, %v647
        %v713 = vadd.f32 %v709, %v711
        %v714 = vadd.f32 %v710, %v712
        %s715 = scalar_lea.vmem %s237, 128
        %v716 = vld [vmem:[%s715] sm:$0xff]
        %v717 = vld [vmem:[%s715 + $0x8] sm:$0xff]
        %v718 = vmul.f32 %v716, %v576
        %v719 = vmul.f32 %v717, %v577
        %s720 = scalar_lea.vmem %s237, 144
        %v721 = vld [vmem:[%s720] sm:$0xff]
        %v722 = vld [vmem:[%s720 + $0x8] sm:$0xff]
        %v723 = vmul.f32 %v721, %v584
        %v724 = vmul.f32 %v722, %v585
        %v725 = vadd.f32 %v718, %v723
        %v726 = vadd.f32 %v719, %v724
        %s727 = scalar_lea.vmem %s237, 160
        %v728 = vld [vmem:[%s727] sm:$0xff]
        %v729 = vld [vmem:[%s727 + $0x8] sm:$0xff]
        %v730 = vmul.f32 %v728, %v592
        %v731 = vmul.f32 %v729, %v593
        %v732 = vadd.f32 %v725, %v730
        %v733 = vadd.f32 %v726, %v731
        %s734 = scalar_lea.vmem %s237, 176
        %v735 = vld [vmem:[%s734] sm:$0xff]
        %v736 = vld [vmem:[%s734 + $0x8] sm:$0xff]
        %v737 = vmul.f32 %v735, %v600
        %v738 = vmul.f32 %v736, %v601
        %v739 = vadd.f32 %v732, %v737
        %v740 = vadd.f32 %v733, %v738
        %s741 = scalar_lea.vmem %s237, 192
        %v742 = vld [vmem:[%s741] sm:$0xff]
        %v743 = vld [vmem:[%s741 + $0x8] sm:$0xff]
        %v744 = vmul.f32 %v742, %v608
        %v745 = vmul.f32 %v743, %v609
        %v746 = vadd.f32 %v739, %v744
        %v747 = vadd.f32 %v740, %v745
        %s748 = scalar_lea.vmem %s237, 208
        %v749 = vld [vmem:[%s748] sm:$0xff]
        %v750 = vld [vmem:[%s748 + $0x8] sm:$0xff]
        %v751 = vmul.f32 %v749, %v616
        %v752 = vmul.f32 %v750, %v617
        %v753 = vadd.f32 %v746, %v751
        %v754 = vadd.f32 %v747, %v752
        %s755 = scalar_lea.vmem %s237, 224
        %v756 = vld [vmem:[%s755] sm:$0xff]
        %v757 = vld [vmem:[%s755 + $0x8] sm:$0xff]
        %v758 = vmul.f32 %v756, %v624
        %v759 = vmul.f32 %v757, %v625
        %v760 = vadd.f32 %v753, %v758
        %v761 = vadd.f32 %v754, %v759
        %s762 = scalar_lea.vmem %s237, 240
        %v763 = vld [vmem:[%s762] sm:$0xff]
        %v764 = vld [vmem:[%s762 + $0x8] sm:$0xff]
        %v765 = vmul.f32 %v763, %v632
        %v766 = vmul.f32 %v764, %v633
        %v767 = vadd.f32 %v760, %v765
        %v768 = vadd.f32 %v761, %v766
        %s769 = scalar_lea.vmem %s237, 2064
        %v770 = vld [vmem:[%s769] sm:$0xff]
        %v771 = vld [vmem:[%s769 + $0x8] sm:$0xff]
        %s772 = scalar_lea.vmem %s237, 2320
        %v773 = vld [vmem:[%s772] sm:$0xff]
        %v774 = vld [vmem:[%s772 + $0x8] sm:$0xff]
        %v775 = vmul.f32 %v770, %v767
        %v776 = vmul.f32 %v771, %v768
        %v777 = vadd.f32 %v775, 0.0
        %v778 = vadd.f32 %v776, 0.0
        %v779 = vmul.f32 %v773, %v646
        %v780 = vmul.f32 %v774, %v647
        %v781 = vadd.f32 %v777, %v779
        %v782 = vadd.f32 %v778, %v780
        %s783 = scalar_lea.vmem %s237, 256
        %v784 = vld [vmem:[%s783] sm:$0xff]
        %v785 = vld [vmem:[%s783 + $0x8] sm:$0xff]
        %v786 = vmul.f32 %v784, %v576
        %v787 = vmul.f32 %v785, %v577
        %s788 = scalar_lea.vmem %s237, 272
        %v789 = vld [vmem:[%s788] sm:$0xff]
        %v790 = vld [vmem:[%s788 + $0x8] sm:$0xff]
        %v791 = vmul.f32 %v789, %v584
        %v792 = vmul.f32 %v790, %v585
        %v793 = vadd.f32 %v786, %v791
        %v794 = vadd.f32 %v787, %v792
        %s795 = scalar_lea.vmem %s237, 288
        %v796 = vld [vmem:[%s795] sm:$0xff]
        %v797 = vld [vmem:[%s795 + $0x8] sm:$0xff]
        %v798 = vmul.f32 %v796, %v592
        %v799 = vmul.f32 %v797, %v593
        %v800 = vadd.f32 %v793, %v798
        %v801 = vadd.f32 %v794, %v799
        %s802 = scalar_lea.vmem %s237, 304
        %v803 = vld [vmem:[%s802] sm:$0xff]
        %v804 = vld [vmem:[%s802 + $0x8] sm:$0xff]
        %v805 = vmul.f32 %v803, %v600
        %v806 = vmul.f32 %v804, %v601
        %v807 = vadd.f32 %v800, %v805
        %v808 = vadd.f32 %v801, %v806
        %s809 = scalar_lea.vmem %s237, 320
        %v810 = vld [vmem:[%s809] sm:$0xff]
        %v811 = vld [vmem:[%s809 + $0x8] sm:$0xff]
        %v812 = vmul.f32 %v810, %v608
        %v813 = vmul.f32 %v811, %v609
        %v814 = vadd.f32 %v807, %v812
        %v815 = vadd.f32 %v808, %v813
        %s816 = scalar_lea.vmem %s237, 336
        %v817 = vld [vmem:[%s816] sm:$0xff]
        %v818 = vld [vmem:[%s816 + $0x8] sm:$0xff]
        %v819 = vmul.f32 %v817, %v616
        %v820 = vmul.f32 %v818, %v617
        %v821 = vadd.f32 %v814, %v819
        %v822 = vadd.f32 %v815, %v820
        %s823 = scalar_lea.vmem %s237, 352
        %v824 = vld [vmem:[%s823] sm:$0xff]
        %v825 = vld [vmem:[%s823 + $0x8] sm:$0xff]
        %v826 = vmul.f32 %v824, %v624
        %v827 = vmul.f32 %v825, %v625
        %v828 = vadd.f32 %v821, %v826
        %v829 = vadd.f32 %v822, %v827
        %s830 = scalar_lea.vmem %s237, 368
        %v831 = vld [vmem:[%s830] sm:$0xff]
        %v832 = vld [vmem:[%s830 + $0x8] sm:$0xff]
        %v833 = vmul.f32 %v831, %v632
        %v834 = vmul.f32 %v832, %v633
        %v835 = vadd.f32 %v828, %v833
        %v836 = vadd.f32 %v829, %v834
        %s837 = scalar_lea.vmem %s237, 2080
        %v838 = vld [vmem:[%s837] sm:$0xff]
        %v839 = vld [vmem:[%s837 + $0x8] sm:$0xff]
        %s840 = scalar_lea.vmem %s237, 2336
        %v841 = vld [vmem:[%s840] sm:$0xff]
        %v842 = vld [vmem:[%s840 + $0x8] sm:$0xff]
        %v843 = vmul.f32 %v838, %v835
        %v844 = vmul.f32 %v839, %v836
        %v845 = vadd.f32 %v843, 0.0
        %v846 = vadd.f32 %v844, 0.0
        %v847 = vmul.f32 %v841, %v646
        %v848 = vmul.f32 %v842, %v647
        %v849 = vadd.f32 %v845, %v847
        %v850 = vadd.f32 %v846, %v848
        %s851 = scalar_lea.vmem %s237, 384
        %v852 = vld [vmem:[%s851] sm:$0xff]
        %v853 = vld [vmem:[%s851 + $0x8] sm:$0xff]
        %v854 = vmul.f32 %v852, %v576
        %v855 = vmul.f32 %v853, %v577
        %s856 = scalar_lea.vmem %s237, 400
        %v857 = vld [vmem:[%s856] sm:$0xff]
        %v858 = vld [vmem:[%s856 + $0x8] sm:$0xff]
        %v859 = vmul.f32 %v857, %v584
        %v860 = vmul.f32 %v858, %v585
        %v861 = vadd.f32 %v854, %v859
        %v862 = vadd.f32 %v855, %v860
        %s863 = scalar_lea.vmem %s237, 416
        %v864 = vld [vmem:[%s863] sm:$0xff]
        %v865 = vld [vmem:[%s863 + $0x8] sm:$0xff]
        %v866 = vmul.f32 %v864, %v592
        %v867 = vmul.f32 %v865, %v593
        %v868 = vadd.f32 %v861, %v866
        %v869 = vadd.f32 %v862, %v867
        %s870 = scalar_lea.vmem %s237, 432
        %v871 = vld [vmem:[%s870] sm:$0xff]
        %v872 = vld [vmem:[%s870 + $0x8] sm:$0xff]
        %v873 = vmul.f32 %v871, %v600
        %v874 = vmul.f32 %v872, %v601
        %v875 = vadd.f32 %v868, %v873
        %v876 = vadd.f32 %v869, %v874
        %s877 = scalar_lea.vmem %s237, 448
        %v878 = vld [vmem:[%s877] sm:$0xff]
        %v879 = vld [vmem:[%s877 + $0x8] sm:$0xff]
        %v880 = vmul.f32 %v878, %v608
        %v881 = vmul.f32 %v879, %v609
        %v882 = vadd.f32 %v875, %v880
        %v883 = vadd.f32 %v876, %v881
        %s884 = scalar_lea.vmem %s237, 464
        %v885 = vld [vmem:[%s884] sm:$0xff]
        %v886 = vld [vmem:[%s884 + $0x8] sm:$0xff]
        %v887 = vmul.f32 %v885, %v616
        %v888 = vmul.f32 %v886, %v617
        %v889 = vadd.f32 %v882, %v887
        %v890 = vadd.f32 %v883, %v888
        %s891 = scalar_lea.vmem %s237, 480
        %v892 = vld [vmem:[%s891] sm:$0xff]
        %v893 = vld [vmem:[%s891 + $0x8] sm:$0xff]
        %v894 = vmul.f32 %v892, %v624
        %v895 = vmul.f32 %v893, %v625
        %v896 = vadd.f32 %v889, %v894
        %v897 = vadd.f32 %v890, %v895
        %s898 = scalar_lea.vmem %s237, 496
        %v899 = vld [vmem:[%s898] sm:$0xff]
        %v900 = vld [vmem:[%s898 + $0x8] sm:$0xff]
        %v901 = vmul.f32 %v899, %v632
        %v902 = vmul.f32 %v900, %v633
        %v903 = vadd.f32 %v896, %v901
        %v904 = vadd.f32 %v897, %v902
        %s905 = scalar_lea.vmem %s237, 2096
        %v906 = vld [vmem:[%s905] sm:$0xff]
        %v907 = vld [vmem:[%s905 + $0x8] sm:$0xff]
        %s908 = scalar_lea.vmem %s237, 2352
        %v909 = vld [vmem:[%s908] sm:$0xff]
        %v910 = vld [vmem:[%s908 + $0x8] sm:$0xff]
        %v911 = vmul.f32 %v906, %v903
        %v912 = vmul.f32 %v907, %v904
        %v913 = vadd.f32 %v911, 0.0
        %v914 = vadd.f32 %v912, 0.0
        %v915 = vmul.f32 %v909, %v646
        %v916 = vmul.f32 %v910, %v647
        %v917 = vadd.f32 %v913, %v915
        %v918 = vadd.f32 %v914, %v916
        %s919 = scalar_lea.vmem %s224, 16
        %v920 = vld [vmem:[%s919] sm:$0xff]
        %v921 = vld [vmem:[%s919 + $0x8] sm:$0xff]
        %vm922 = vcmp.ge.f32.partialorder %v920, -2.2
        %vm923 = vcmp.ge.f32.partialorder %v921, -2.2
        %vm924 = vcmp.lt.f32.partialorder %v920, -1.8
        %vm925 = vcmp.lt.f32.partialorder %v921, -1.8
        %vm926 = vmand %vm922, %vm924
        %vm927 = vmand %vm923, %vm925
        %v928 = vsel %vm926, 1, 0
        %v929 = vsel %vm927, 1, 0
        %v930 = vcvt.s32.f32 %v928
        %v931 = vcvt.s32.f32 %v929
        %vm932 = vcmp.ge.f32.partialorder %v920, -1.8
        %vm933 = vcmp.ge.f32.partialorder %v921, -1.8
        %vm934 = vcmp.lt.f32.partialorder %v920, -1.4
        %vm935 = vcmp.lt.f32.partialorder %v921, -1.4
        %vm936 = vmand %vm932, %vm934
        %vm937 = vmand %vm933, %vm935
        %v938 = vsel %vm936, 1, 0
        %v939 = vsel %vm937, 1, 0
        %v940 = vcvt.s32.f32 %v938
        %v941 = vcvt.s32.f32 %v939
        %vm942 = vcmp.ge.f32.partialorder %v920, -1.4
        %vm943 = vcmp.ge.f32.partialorder %v921, -1.4
        %vm944 = vcmp.lt.f32.partialorder %v920, -1.0
        %vm945 = vcmp.lt.f32.partialorder %v921, -1.0
        %vm946 = vmand %vm942, %vm944
        %vm947 = vmand %vm943, %vm945
        %v948 = vsel %vm946, 1, 0
        %v949 = vsel %vm947, 1, 0
        %v950 = vcvt.s32.f32 %v948
        %v951 = vcvt.s32.f32 %v949
        %vm952 = vcmp.ge.f32.partialorder %v920, -1.0
        %vm953 = vcmp.ge.f32.partialorder %v921, -1.0
        %vm954 = vcmp.lt.f32.partialorder %v920, -0.6
        %vm955 = vcmp.lt.f32.partialorder %v921, -0.6
        %vm956 = vmand %vm952, %vm954
        %vm957 = vmand %vm953, %vm955
        %v958 = vsel %vm956, 1, 0
        %v959 = vsel %vm957, 1, 0
        %v960 = vcvt.s32.f32 %v958
        %v961 = vcvt.s32.f32 %v959
        %vm962 = vcmp.ge.f32.partialorder %v920, -0.6
        %vm963 = vcmp.ge.f32.partialorder %v921, -0.6
        %vm964 = vcmp.lt.f32.partialorder %v920, -0.2
        %vm965 = vcmp.lt.f32.partialorder %v921, -0.2
        %vm966 = vmand %vm962, %vm964
        %vm967 = vmand %vm963, %vm965
        %v968 = vsel %vm966, 1, 0
        %v969 = vsel %vm967, 1, 0
        %v970 = vcvt.s32.f32 %v968
        %v971 = vcvt.s32.f32 %v969
        %vm972 = vcmp.ge.f32.partialorder %v920, -0.2
        %vm973 = vcmp.ge.f32.partialorder %v921, -0.2
        %vm974 = vcmp.lt.f32.partialorder %v920, 0.2
        %vm975 = vcmp.lt.f32.partialorder %v921, 0.2
        %vm976 = vmand %vm972, %vm974
        %vm977 = vmand %vm973, %vm975
        %v978 = vsel %vm976, 1, 0
        %v979 = vsel %vm977, 1, 0
        %v980 = vcvt.s32.f32 %v978
        %v981 = vcvt.s32.f32 %v979
        %vm982 = vcmp.ge.f32.partialorder %v920, 0.2
        %vm983 = vcmp.ge.f32.partialorder %v921, 0.2
        %vm984 = vcmp.lt.f32.partialorder %v920, 0.6
        %vm985 = vcmp.lt.f32.partialorder %v921, 0.6
        %vm986 = vmand %vm982, %vm984
        %vm987 = vmand %vm983, %vm985
        %v988 = vsel %vm986, 1, 0
        %v989 = vsel %vm987, 1, 0
        %v990 = vcvt.s32.f32 %v988
        %v991 = vcvt.s32.f32 %v989
        %vm992 = vcmp.ge.f32.partialorder %v920, 0.6
        %vm993 = vcmp.ge.f32.partialorder %v921, 0.6
        %vm994 = vcmp.lt.f32.partialorder %v920, 1.0
        %vm995 = vcmp.lt.f32.partialorder %v921, 1.0
        %vm996 = vmand %vm992, %vm994
        %vm997 = vmand %vm993, %vm995
        %v998 = vsel %vm996, 1, 0
        %v999 = vsel %vm997, 1, 0
        %v1000 = vcvt.s32.f32 %v998
        %v1001 = vcvt.s32.f32 %v999
        %vm1002 = vcmp.ge.f32.partialorder %v920, 1.0
        %vm1003 = vcmp.ge.f32.partialorder %v921, 1.0
        %vm1004 = vcmp.lt.f32.partialorder %v920, 1.4
        %vm1005 = vcmp.lt.f32.partialorder %v921, 1.4
        %vm1006 = vmand %vm1002, %vm1004
        %vm1007 = vmand %vm1003, %vm1005
        %v1008 = vsel %vm1006, 1, 0
        %v1009 = vsel %vm1007, 1, 0
        %v1010 = vcvt.s32.f32 %v1008
        %v1011 = vcvt.s32.f32 %v1009
        %vm1012 = vcmp.ge.f32.partialorder %v920, 1.4
        %vm1013 = vcmp.ge.f32.partialorder %v921, 1.4
        %vm1014 = vcmp.lt.f32.partialorder %v920, 1.8
        %vm1015 = vcmp.lt.f32.partialorder %v921, 1.8
        %vm1016 = vmand %vm1012, %vm1014
        %vm1017 = vmand %vm1013, %vm1015
        %v1018 = vsel %vm1016, 1, 0
        %v1019 = vsel %vm1017, 1, 0
        %v1020 = vcvt.s32.f32 %v1018
        %v1021 = vcvt.s32.f32 %v1019
        %vm1022 = vcmp.ge.f32.partialorder %v920, 1.8
        %vm1023 = vcmp.ge.f32.partialorder %v921, 1.8
        %vm1024 = vcmp.lt.f32.partialorder %v920, 2.2
        %vm1025 = vcmp.lt.f32.partialorder %v921, 2.2
        %vm1026 = vmand %vm1022, %vm1024
        %vm1027 = vmand %vm1023, %vm1025
        %v1028 = vsel %vm1026, 1, 0
        %v1029 = vsel %vm1027, 1, 0
        %v1030 = vcvt.s32.f32 %v1028
        %v1031 = vcvt.s32.f32 %v1029
        %v1032 = vmul.f32 %v920, 2.5
        %v1033 = vmul.f32 %v921, 2.5
        %v1034 = vsub.f32 %v1032, -5.5
        %v1035 = vsub.f32 %v1033, -5.5
        %v1036 = vsub.f32 %v1032, -4.5
        %v1037 = vsub.f32 %v1033, -4.5
        %v1038 = vsub.f32 %v1032, -3.5
        %v1039 = vsub.f32 %v1033, -3.5
        %v1040 = vsub.f32 %v1032, -2.5
        %v1041 = vsub.f32 %v1033, -2.5
        %v1042 = vsub.f32 %v1032, -1.5
        %v1043 = vsub.f32 %v1033, -1.5
        %v1044 = vsub.f32 %v1032, -0.5
        %v1045 = vsub.f32 %v1033, -0.5
        %v1046 = vsub.f32 %v1032, 0.5
        %v1047 = vsub.f32 %v1033, 0.5
        %v1048 = vsub.f32 %v1032, 1.5
        %v1049 = vsub.f32 %v1033, 1.5
        %v1050 = vsub.f32 %v1032, 2.5
        %v1051 = vsub.f32 %v1033, 2.5
        %v1052 = vsub.f32 %v1032, 3.5
        %v1053 = vsub.f32 %v1033, 3.5
        %v1054 = vsub.f32 %v1032, 4.5
        %v1055 = vsub.f32 %v1033, 4.5
        %v1056 = vmul.f32 %v1034, %v930
        %v1057 = vmul.f32 %v1035, %v931
        %v1058 = vsub.f32 1.0, %v1036
        %v1059 = vsub.f32 1.0, %v1037
        %v1060 = vmul.f32 %v1058, %v940
        %v1061 = vmul.f32 %v1059, %v941
        %v1062 = vadd.f32 %v1056, %v1060
        %v1063 = vadd.f32 %v1057, %v1061
        %v1064 = vmul.f32 %v1036, %v940
        %v1065 = vmul.f32 %v1037, %v941
        %v1066 = vsub.f32 1.0, %v1038
        %v1067 = vsub.f32 1.0, %v1039
        %v1068 = vmul.f32 %v1066, %v950
        %v1069 = vmul.f32 %v1067, %v951
        %v1070 = vadd.f32 %v1064, %v1068
        %v1071 = vadd.f32 %v1065, %v1069
        %v1072 = vmul.f32 %v1038, %v950
        %v1073 = vmul.f32 %v1039, %v951
        %v1074 = vsub.f32 1.0, %v1040
        %v1075 = vsub.f32 1.0, %v1041
        %v1076 = vmul.f32 %v1074, %v960
        %v1077 = vmul.f32 %v1075, %v961
        %v1078 = vadd.f32 %v1072, %v1076
        %v1079 = vadd.f32 %v1073, %v1077
        %v1080 = vmul.f32 %v1040, %v960
        %v1081 = vmul.f32 %v1041, %v961
        %v1082 = vsub.f32 1.0, %v1042
        %v1083 = vsub.f32 1.0, %v1043
        %v1084 = vmul.f32 %v1082, %v970
        %v1085 = vmul.f32 %v1083, %v971
        %v1086 = vadd.f32 %v1080, %v1084
        %v1087 = vadd.f32 %v1081, %v1085
        %v1088 = vmul.f32 %v1042, %v970
        %v1089 = vmul.f32 %v1043, %v971
        %v1090 = vsub.f32 1.0, %v1044
        %v1091 = vsub.f32 1.0, %v1045
        %v1092 = vmul.f32 %v1090, %v980
        %v1093 = vmul.f32 %v1091, %v981
        %v1094 = vadd.f32 %v1088, %v1092
        %v1095 = vadd.f32 %v1089, %v1093
        %v1096 = vmul.f32 %v1044, %v980
        %v1097 = vmul.f32 %v1045, %v981
        %v1098 = vsub.f32 1.0, %v1046
        %v1099 = vsub.f32 1.0, %v1047
        %v1100 = vmul.f32 %v1098, %v990
        %v1101 = vmul.f32 %v1099, %v991
        %v1102 = vadd.f32 %v1096, %v1100
        %v1103 = vadd.f32 %v1097, %v1101
        %v1104 = vmul.f32 %v1046, %v990
        %v1105 = vmul.f32 %v1047, %v991
        %v1106 = vsub.f32 1.0, %v1048
        %v1107 = vsub.f32 1.0, %v1049
        %v1108 = vmul.f32 %v1106, %v1000
        %v1109 = vmul.f32 %v1107, %v1001
        %v1110 = vadd.f32 %v1104, %v1108
        %v1111 = vadd.f32 %v1105, %v1109
        %v1112 = vmul.f32 %v1048, %v1000
        %v1113 = vmul.f32 %v1049, %v1001
        %v1114 = vsub.f32 1.0, %v1050
        %v1115 = vsub.f32 1.0, %v1051
        %v1116 = vmul.f32 %v1114, %v1010
        %v1117 = vmul.f32 %v1115, %v1011
        %v1118 = vadd.f32 %v1112, %v1116
        %v1119 = vadd.f32 %v1113, %v1117
        %v1120 = vmul.f32 %v1050, %v1010
        %v1121 = vmul.f32 %v1051, %v1011
        %v1122 = vsub.f32 1.0, %v1052
        %v1123 = vsub.f32 1.0, %v1053
        %v1124 = vmul.f32 %v1122, %v1020
        %v1125 = vmul.f32 %v1123, %v1021
        %v1126 = vadd.f32 %v1120, %v1124
        %v1127 = vadd.f32 %v1121, %v1125
        %v1128 = vmul.f32 %v1052, %v1020
        %v1129 = vmul.f32 %v1053, %v1021
        %v1130 = vsub.f32 1.0, %v1054
        %v1131 = vsub.f32 1.0, %v1055
        %v1132 = vmul.f32 %v1130, %v1030
        %v1133 = vmul.f32 %v1131, %v1031
        %v1134 = vadd.f32 %v1128, %v1132
        %v1135 = vadd.f32 %v1129, %v1133
        %v1136 = vmul.f32 %v920, 1.25
        %v1137 = vmul.f32 %v921, 1.25
        %v1138 = vsub.f32 %v1136, -2.75
        %v1139 = vsub.f32 %v1137, -2.75
        %v1140 = vsub.f32 %v1136, -2.25
        %v1141 = vsub.f32 %v1137, -2.25
        %v1142 = vsub.f32 %v1136, -1.75
        %v1143 = vsub.f32 %v1137, -1.75
        %v1144 = vsub.f32 %v1136, -1.25
        %v1145 = vsub.f32 %v1137, -1.25
        %v1146 = vsub.f32 %v1136, -0.75
        %v1147 = vsub.f32 %v1137, -0.75
        %v1148 = vsub.f32 %v1136, -0.25
        %v1149 = vsub.f32 %v1137, -0.25
        %v1150 = vsub.f32 %v1136, 0.25
        %v1151 = vsub.f32 %v1137, 0.25
        %v1152 = vsub.f32 %v1136, 0.75
        %v1153 = vsub.f32 %v1137, 0.75
        %v1154 = vsub.f32 %v1136, 1.25
        %v1155 = vsub.f32 %v1137, 1.25
        %v1156 = vsub.f32 %v1136, 1.75
        %v1157 = vsub.f32 %v1137, 1.75
        %v1158 = vmul.f32 %v1138, %v1062
        %v1159 = vmul.f32 %v1139, %v1063
        %v1160 = vsub.f32 1.0, %v1140
        %v1161 = vsub.f32 1.0, %v1141
        %v1162 = vmul.f32 %v1160, %v1070
        %v1163 = vmul.f32 %v1161, %v1071
        %v1164 = vadd.f32 %v1158, %v1162
        %v1165 = vadd.f32 %v1159, %v1163
        %v1166 = vmul.f32 %v1140, %v1070
        %v1167 = vmul.f32 %v1141, %v1071
        %v1168 = vsub.f32 1.0, %v1142
        %v1169 = vsub.f32 1.0, %v1143
        %v1170 = vmul.f32 %v1168, %v1078
        %v1171 = vmul.f32 %v1169, %v1079
        %v1172 = vadd.f32 %v1166, %v1170
        %v1173 = vadd.f32 %v1167, %v1171
        %v1174 = vmul.f32 %v1142, %v1078
        %v1175 = vmul.f32 %v1143, %v1079
        %v1176 = vsub.f32 1.0, %v1144
        %v1177 = vsub.f32 1.0, %v1145
        %v1178 = vmul.f32 %v1176, %v1086
        %v1179 = vmul.f32 %v1177, %v1087
        %v1180 = vadd.f32 %v1174, %v1178
        %v1181 = vadd.f32 %v1175, %v1179
        %v1182 = vmul.f32 %v1144, %v1086
        %v1183 = vmul.f32 %v1145, %v1087
        %v1184 = vsub.f32 1.0, %v1146
        %v1185 = vsub.f32 1.0, %v1147
        %v1186 = vmul.f32 %v1184, %v1094
        %v1187 = vmul.f32 %v1185, %v1095
        %v1188 = vadd.f32 %v1182, %v1186
        %v1189 = vadd.f32 %v1183, %v1187
        %v1190 = vmul.f32 %v1146, %v1094
        %v1191 = vmul.f32 %v1147, %v1095
        %v1192 = vsub.f32 1.0, %v1148
        %v1193 = vsub.f32 1.0, %v1149
        %v1194 = vmul.f32 %v1192, %v1102
        %v1195 = vmul.f32 %v1193, %v1103
        %v1196 = vadd.f32 %v1190, %v1194
        %v1197 = vadd.f32 %v1191, %v1195
        %v1198 = vmul.f32 %v1148, %v1102
        %v1199 = vmul.f32 %v1149, %v1103
        %v1200 = vsub.f32 1.0, %v1150
        %v1201 = vsub.f32 1.0, %v1151
        %v1202 = vmul.f32 %v1200, %v1110
        %v1203 = vmul.f32 %v1201, %v1111
        %v1204 = vadd.f32 %v1198, %v1202
        %v1205 = vadd.f32 %v1199, %v1203
        %v1206 = vmul.f32 %v1150, %v1110
        %v1207 = vmul.f32 %v1151, %v1111
        %v1208 = vsub.f32 1.0, %v1152
        %v1209 = vsub.f32 1.0, %v1153
        %v1210 = vmul.f32 %v1208, %v1118
        %v1211 = vmul.f32 %v1209, %v1119
        %v1212 = vadd.f32 %v1206, %v1210
        %v1213 = vadd.f32 %v1207, %v1211
        %v1214 = vmul.f32 %v1152, %v1118
        %v1215 = vmul.f32 %v1153, %v1119
        %v1216 = vsub.f32 1.0, %v1154
        %v1217 = vsub.f32 1.0, %v1155
        %v1218 = vmul.f32 %v1216, %v1126
        %v1219 = vmul.f32 %v1217, %v1127
        %v1220 = vadd.f32 %v1214, %v1218
        %v1221 = vadd.f32 %v1215, %v1219
        %v1222 = vmul.f32 %v1154, %v1126
        %v1223 = vmul.f32 %v1155, %v1127
        %v1224 = vsub.f32 1.0, %v1156
        %v1225 = vsub.f32 1.0, %v1157
        %v1226 = vmul.f32 %v1224, %v1134
        %v1227 = vmul.f32 %v1225, %v1135
        %v1228 = vadd.f32 %v1222, %v1226
        %v1229 = vadd.f32 %v1223, %v1227
        %v1230 = vmul.f32 %v920, 0.8333333
        %v1231 = vmul.f32 %v921, 0.8333333
        %v1232 = vsub.f32 %v1230, -1.8333334
        %v1233 = vsub.f32 %v1231, -1.8333334
        %v1234 = vsub.f32 %v1230, -1.5
        %v1235 = vsub.f32 %v1231, -1.5
        %v1236 = vsub.f32 %v1230, -1.1666666
        %v1237 = vsub.f32 %v1231, -1.1666666
        %v1238 = vsub.f32 %v1230, -0.8333333
        %v1239 = vsub.f32 %v1231, -0.8333333
        %v1240 = vsub.f32 %v1230, -0.5
        %v1241 = vsub.f32 %v1231, -0.5
        %v1242 = vsub.f32 %v1230, -0.16666667
        %v1243 = vsub.f32 %v1231, -0.16666667
        %v1244 = vsub.f32 %v1230, 0.16666667
        %v1245 = vsub.f32 %v1231, 0.16666667
        %v1246 = vsub.f32 %v1230, 0.5
        %v1247 = vsub.f32 %v1231, 0.5
        %v1248 = vsub.f32 %v1230, 0.8333333
        %v1249 = vsub.f32 %v1231, 0.8333333
        %v1250 = vmul.f32 %v1232, %v1164
        %v1251 = vmul.f32 %v1233, %v1165
        %v1252 = vsub.f32 1.0, %v1234
        %v1253 = vsub.f32 1.0, %v1235
        %v1254 = vmul.f32 %v1252, %v1172
        %v1255 = vmul.f32 %v1253, %v1173
        %v1256 = vadd.f32 %v1250, %v1254
        %v1257 = vadd.f32 %v1251, %v1255
        %v1258 = vmul.f32 %v1234, %v1172
        %v1259 = vmul.f32 %v1235, %v1173
        %v1260 = vsub.f32 1.0, %v1236
        %v1261 = vsub.f32 1.0, %v1237
        %v1262 = vmul.f32 %v1260, %v1180
        %v1263 = vmul.f32 %v1261, %v1181
        %v1264 = vadd.f32 %v1258, %v1262
        %v1265 = vadd.f32 %v1259, %v1263
        %v1266 = vmul.f32 %v1236, %v1180
        %v1267 = vmul.f32 %v1237, %v1181
        %v1268 = vsub.f32 1.0, %v1238
        %v1269 = vsub.f32 1.0, %v1239
        %v1270 = vmul.f32 %v1268, %v1188
        %v1271 = vmul.f32 %v1269, %v1189
        %v1272 = vadd.f32 %v1266, %v1270
        %v1273 = vadd.f32 %v1267, %v1271
        %v1274 = vmul.f32 %v1238, %v1188
        %v1275 = vmul.f32 %v1239, %v1189
        %v1276 = vsub.f32 1.0, %v1240
        %v1277 = vsub.f32 1.0, %v1241
        %v1278 = vmul.f32 %v1276, %v1196
        %v1279 = vmul.f32 %v1277, %v1197
        %v1280 = vadd.f32 %v1274, %v1278
        %v1281 = vadd.f32 %v1275, %v1279
        %v1282 = vmul.f32 %v1240, %v1196
        %v1283 = vmul.f32 %v1241, %v1197
        %v1284 = vsub.f32 1.0, %v1242
        %v1285 = vsub.f32 1.0, %v1243
        %v1286 = vmul.f32 %v1284, %v1204
        %v1287 = vmul.f32 %v1285, %v1205
        %v1288 = vadd.f32 %v1282, %v1286
        %v1289 = vadd.f32 %v1283, %v1287
        %v1290 = vmul.f32 %v1242, %v1204
        %v1291 = vmul.f32 %v1243, %v1205
        %v1292 = vsub.f32 1.0, %v1244
        %v1293 = vsub.f32 1.0, %v1245
        %v1294 = vmul.f32 %v1292, %v1212
        %v1295 = vmul.f32 %v1293, %v1213
        %v1296 = vadd.f32 %v1290, %v1294
        %v1297 = vadd.f32 %v1291, %v1295
        %v1298 = vmul.f32 %v1244, %v1212
        %v1299 = vmul.f32 %v1245, %v1213
        %v1300 = vsub.f32 1.0, %v1246
        %v1301 = vsub.f32 1.0, %v1247
        %v1302 = vmul.f32 %v1300, %v1220
        %v1303 = vmul.f32 %v1301, %v1221
        %v1304 = vadd.f32 %v1298, %v1302
        %v1305 = vadd.f32 %v1299, %v1303
        %v1306 = vmul.f32 %v1246, %v1220
        %v1307 = vmul.f32 %v1247, %v1221
        %v1308 = vsub.f32 1.0, %v1248
        %v1309 = vsub.f32 1.0, %v1249
        %v1310 = vmul.f32 %v1308, %v1228
        %v1311 = vmul.f32 %v1309, %v1229
        %v1312 = vadd.f32 %v1306, %v1310
        %v1313 = vadd.f32 %v1307, %v1311
        %v1314 = vxor.u32 %v920, 2147483648
        %v1315 = vxor.u32 %v921, 2147483648
        %v1316 = vmul.f32 %v1314, 1.442695
        %v1317 = vpow.pop %v1316
        %v1318 = vmul.f32 %v1315, 1.442695
        %v1319 = vpow.pop %v1318
        %v1320 = vadd.f32 %v1317, 1.0
        %v1321 = vadd.f32 %v1319, 1.0
        %v1322 = vrcp.pop %v1320
        %v1323 = vmul.f32 1.0, %v1322
        %v1324 = vrcp.pop %v1321
        %v1325 = vmul.f32 1.0, %v1324
        %v1326 = vmul.f32 %v920, %v1323
        %v1327 = vmul.f32 %v921, %v1325
        %s1328 = scalar_lea.vmem %s237, 512
        %v1329 = vld [vmem:[%s1328] sm:$0xff]
        %v1330 = vld [vmem:[%s1328 + $0x8] sm:$0xff]
        %v1331 = vmul.f32 %v1329, %v1256
        %v1332 = vmul.f32 %v1330, %v1257
        %s1333 = scalar_lea.vmem %s237, 528
        %v1334 = vld [vmem:[%s1333] sm:$0xff]
        %v1335 = vld [vmem:[%s1333 + $0x8] sm:$0xff]
        %v1336 = vmul.f32 %v1334, %v1264
        %v1337 = vmul.f32 %v1335, %v1265
        %v1338 = vadd.f32 %v1331, %v1336
        %v1339 = vadd.f32 %v1332, %v1337
        %s1340 = scalar_lea.vmem %s237, 544
        %v1341 = vld [vmem:[%s1340] sm:$0xff]
        %v1342 = vld [vmem:[%s1340 + $0x8] sm:$0xff]
        %v1343 = vmul.f32 %v1341, %v1272
        %v1344 = vmul.f32 %v1342, %v1273
        %v1345 = vadd.f32 %v1338, %v1343
        %v1346 = vadd.f32 %v1339, %v1344
        %s1347 = scalar_lea.vmem %s237, 560
        %v1348 = vld [vmem:[%s1347] sm:$0xff]
        %v1349 = vld [vmem:[%s1347 + $0x8] sm:$0xff]
        %v1350 = vmul.f32 %v1348, %v1280
        %v1351 = vmul.f32 %v1349, %v1281
        %v1352 = vadd.f32 %v1345, %v1350
        %v1353 = vadd.f32 %v1346, %v1351
        %s1354 = scalar_lea.vmem %s237, 576
        %v1355 = vld [vmem:[%s1354] sm:$0xff]
        %v1356 = vld [vmem:[%s1354 + $0x8] sm:$0xff]
        %v1357 = vmul.f32 %v1355, %v1288
        %v1358 = vmul.f32 %v1356, %v1289
        %v1359 = vadd.f32 %v1352, %v1357
        %v1360 = vadd.f32 %v1353, %v1358
        %s1361 = scalar_lea.vmem %s237, 592
        %v1362 = vld [vmem:[%s1361] sm:$0xff]
        %v1363 = vld [vmem:[%s1361 + $0x8] sm:$0xff]
        %v1364 = vmul.f32 %v1362, %v1296
        %v1365 = vmul.f32 %v1363, %v1297
        %v1366 = vadd.f32 %v1359, %v1364
        %v1367 = vadd.f32 %v1360, %v1365
        %s1368 = scalar_lea.vmem %s237, 608
        %v1369 = vld [vmem:[%s1368] sm:$0xff]
        %v1370 = vld [vmem:[%s1368 + $0x8] sm:$0xff]
        %v1371 = vmul.f32 %v1369, %v1304
        %v1372 = vmul.f32 %v1370, %v1305
        %v1373 = vadd.f32 %v1366, %v1371
        %v1374 = vadd.f32 %v1367, %v1372
        %s1375 = scalar_lea.vmem %s237, 624
        %v1376 = vld [vmem:[%s1375] sm:$0xff]
        %v1377 = vld [vmem:[%s1375 + $0x8] sm:$0xff]
        %v1378 = vmul.f32 %v1376, %v1312
        %v1379 = vmul.f32 %v1377, %v1313
        %v1380 = vadd.f32 %v1373, %v1378
        %v1381 = vadd.f32 %v1374, %v1379
        %s1382 = scalar_lea.vmem %s237, 2112
        %v1383 = vld [vmem:[%s1382] sm:$0xff]
        %v1384 = vld [vmem:[%s1382 + $0x8] sm:$0xff]
        %s1385 = scalar_lea.vmem %s237, 2368
        %v1386 = vld [vmem:[%s1385] sm:$0xff]
        %v1387 = vld [vmem:[%s1385 + $0x8] sm:$0xff]
        %v1388 = vmul.f32 %v1383, %v1380
        %v1389 = vmul.f32 %v1384, %v1381
        %v1390 = vadd.f32 %v713, %v1388
        %v1391 = vadd.f32 %v714, %v1389
        %v1392 = vmul.f32 %v1386, %v1326
        %v1393 = vmul.f32 %v1387, %v1327
        %v1394 = vadd.f32 %v1390, %v1392
        %v1395 = vadd.f32 %v1391, %v1393
        %s1396 = scalar_lea.vmem %s237, 640
        %v1397 = vld [vmem:[%s1396] sm:$0xff]
        %v1398 = vld [vmem:[%s1396 + $0x8] sm:$0xff]
        %v1399 = vmul.f32 %v1397, %v1256
        %v1400 = vmul.f32 %v1398, %v1257
        %s1401 = scalar_lea.vmem %s237, 656
        %v1402 = vld [vmem:[%s1401] sm:$0xff]
        %v1403 = vld [vmem:[%s1401 + $0x8] sm:$0xff]
        %v1404 = vmul.f32 %v1402, %v1264
        %v1405 = vmul.f32 %v1403, %v1265
        %v1406 = vadd.f32 %v1399, %v1404
        %v1407 = vadd.f32 %v1400, %v1405
        %s1408 = scalar_lea.vmem %s237, 672
        %v1409 = vld [vmem:[%s1408] sm:$0xff]
        %v1410 = vld [vmem:[%s1408 + $0x8] sm:$0xff]
        %v1411 = vmul.f32 %v1409, %v1272
        %v1412 = vmul.f32 %v1410, %v1273
        %v1413 = vadd.f32 %v1406, %v1411
        %v1414 = vadd.f32 %v1407, %v1412
        %s1415 = scalar_lea.vmem %s237, 688
        %v1416 = vld [vmem:[%s1415] sm:$0xff]
        %v1417 = vld [vmem:[%s1415 + $0x8] sm:$0xff]
        %v1418 = vmul.f32 %v1416, %v1280
        %v1419 = vmul.f32 %v1417, %v1281
        %v1420 = vadd.f32 %v1413, %v1418
        %v1421 = vadd.f32 %v1414, %v1419
        %s1422 = scalar_lea.vmem %s237, 704
        %v1423 = vld [vmem:[%s1422] sm:$0xff]
        %v1424 = vld [vmem:[%s1422 + $0x8] sm:$0xff]
        %v1425 = vmul.f32 %v1423, %v1288
        %v1426 = vmul.f32 %v1424, %v1289
        %v1427 = vadd.f32 %v1420, %v1425
        %v1428 = vadd.f32 %v1421, %v1426
        %s1429 = scalar_lea.vmem %s237, 720
        %v1430 = vld [vmem:[%s1429] sm:$0xff]
        %v1431 = vld [vmem:[%s1429 + $0x8] sm:$0xff]
        %v1432 = vmul.f32 %v1430, %v1296
        %v1433 = vmul.f32 %v1431, %v1297
        %v1434 = vadd.f32 %v1427, %v1432
        %v1435 = vadd.f32 %v1428, %v1433
        %s1436 = scalar_lea.vmem %s237, 736
        %v1437 = vld [vmem:[%s1436] sm:$0xff]
        %v1438 = vld [vmem:[%s1436 + $0x8] sm:$0xff]
        %v1439 = vmul.f32 %v1437, %v1304
        %v1440 = vmul.f32 %v1438, %v1305
        %v1441 = vadd.f32 %v1434, %v1439
        %v1442 = vadd.f32 %v1435, %v1440
        %s1443 = scalar_lea.vmem %s237, 752
        %v1444 = vld [vmem:[%s1443] sm:$0xff]
        %v1445 = vld [vmem:[%s1443 + $0x8] sm:$0xff]
        %v1446 = vmul.f32 %v1444, %v1312
        %v1447 = vmul.f32 %v1445, %v1313
        %v1448 = vadd.f32 %v1441, %v1446
        %v1449 = vadd.f32 %v1442, %v1447
        %s1450 = scalar_lea.vmem %s237, 2128
        %v1451 = vld [vmem:[%s1450] sm:$0xff]
        %v1452 = vld [vmem:[%s1450 + $0x8] sm:$0xff]
        %s1453 = scalar_lea.vmem %s237, 2384
        %v1454 = vld [vmem:[%s1453] sm:$0xff]
        %v1455 = vld [vmem:[%s1453 + $0x8] sm:$0xff]
        %v1456 = vmul.f32 %v1451, %v1448
        %v1457 = vmul.f32 %v1452, %v1449
        %v1458 = vadd.f32 %v781, %v1456
        %v1459 = vadd.f32 %v782, %v1457
        %v1460 = vmul.f32 %v1454, %v1326
        %v1461 = vmul.f32 %v1455, %v1327
        %v1462 = vadd.f32 %v1458, %v1460
        %v1463 = vadd.f32 %v1459, %v1461
        %s1464 = scalar_lea.vmem %s237, 768
        %v1465 = vld [vmem:[%s1464] sm:$0xff]
        %v1466 = vld [vmem:[%s1464 + $0x8] sm:$0xff]
        %v1467 = vmul.f32 %v1465, %v1256
        %v1468 = vmul.f32 %v1466, %v1257
        %s1469 = scalar_lea.vmem %s237, 784
        %v1470 = vld [vmem:[%s1469] sm:$0xff]
        %v1471 = vld [vmem:[%s1469 + $0x8] sm:$0xff]
        %v1472 = vmul.f32 %v1470, %v1264
        %v1473 = vmul.f32 %v1471, %v1265
        %v1474 = vadd.f32 %v1467, %v1472
        %v1475 = vadd.f32 %v1468, %v1473
        %s1476 = scalar_lea.vmem %s237, 800
        %v1477 = vld [vmem:[%s1476] sm:$0xff]
        %v1478 = vld [vmem:[%s1476 + $0x8] sm:$0xff]
        %v1479 = vmul.f32 %v1477, %v1272
        %v1480 = vmul.f32 %v1478, %v1273
        %v1481 = vadd.f32 %v1474, %v1479
        %v1482 = vadd.f32 %v1475, %v1480
        %s1483 = scalar_lea.vmem %s237, 816
        %v1484 = vld [vmem:[%s1483] sm:$0xff]
        %v1485 = vld [vmem:[%s1483 + $0x8] sm:$0xff]
        %v1486 = vmul.f32 %v1484, %v1280
        %v1487 = vmul.f32 %v1485, %v1281
        %v1488 = vadd.f32 %v1481, %v1486
        %v1489 = vadd.f32 %v1482, %v1487
        %s1490 = scalar_lea.vmem %s237, 832
        %v1491 = vld [vmem:[%s1490] sm:$0xff]
        %v1492 = vld [vmem:[%s1490 + $0x8] sm:$0xff]
        %v1493 = vmul.f32 %v1491, %v1288
        %v1494 = vmul.f32 %v1492, %v1289
        %v1495 = vadd.f32 %v1488, %v1493
        %v1496 = vadd.f32 %v1489, %v1494
        %s1497 = scalar_lea.vmem %s237, 848
        %v1498 = vld [vmem:[%s1497] sm:$0xff]
        %v1499 = vld [vmem:[%s1497 + $0x8] sm:$0xff]
        %v1500 = vmul.f32 %v1498, %v1296
        %v1501 = vmul.f32 %v1499, %v1297
        %v1502 = vadd.f32 %v1495, %v1500
        %v1503 = vadd.f32 %v1496, %v1501
        %s1504 = scalar_lea.vmem %s237, 864
        %v1505 = vld [vmem:[%s1504] sm:$0xff]
        %v1506 = vld [vmem:[%s1504 + $0x8] sm:$0xff]
        %v1507 = vmul.f32 %v1505, %v1304
        %v1508 = vmul.f32 %v1506, %v1305
        %v1509 = vadd.f32 %v1502, %v1507
        %v1510 = vadd.f32 %v1503, %v1508
        %s1511 = scalar_lea.vmem %s237, 880
        %v1512 = vld [vmem:[%s1511] sm:$0xff]
        %v1513 = vld [vmem:[%s1511 + $0x8] sm:$0xff]
        %v1514 = vmul.f32 %v1512, %v1312
        %v1515 = vmul.f32 %v1513, %v1313
        %v1516 = vadd.f32 %v1509, %v1514
        %v1517 = vadd.f32 %v1510, %v1515
        %s1518 = scalar_lea.vmem %s237, 2144
        %v1519 = vld [vmem:[%s1518] sm:$0xff]
        %v1520 = vld [vmem:[%s1518 + $0x8] sm:$0xff]
        %s1521 = scalar_lea.vmem %s237, 2400
        %v1522 = vld [vmem:[%s1521] sm:$0xff]
        %v1523 = vld [vmem:[%s1521 + $0x8] sm:$0xff]
        %v1524 = vmul.f32 %v1519, %v1516
        %v1525 = vmul.f32 %v1520, %v1517
        %v1526 = vadd.f32 %v849, %v1524
        %v1527 = vadd.f32 %v850, %v1525
        %v1528 = vmul.f32 %v1522, %v1326
        %v1529 = vmul.f32 %v1523, %v1327
        %v1530 = vadd.f32 %v1526, %v1528
        %v1531 = vadd.f32 %v1527, %v1529
        %s1532 = scalar_lea.vmem %s237, 896
        %v1533 = vld [vmem:[%s1532] sm:$0xff]
        %v1534 = vld [vmem:[%s1532 + $0x8] sm:$0xff]
        %v1535 = vmul.f32 %v1533, %v1256
        %v1536 = vmul.f32 %v1534, %v1257
        %s1537 = scalar_lea.vmem %s237, 912
        %v1538 = vld [vmem:[%s1537] sm:$0xff]
        %v1539 = vld [vmem:[%s1537 + $0x8] sm:$0xff]
        %v1540 = vmul.f32 %v1538, %v1264
        %v1541 = vmul.f32 %v1539, %v1265
        %v1542 = vadd.f32 %v1535, %v1540
        %v1543 = vadd.f32 %v1536, %v1541
        %s1544 = scalar_lea.vmem %s237, 928
        %v1545 = vld [vmem:[%s1544] sm:$0xff]
        %v1546 = vld [vmem:[%s1544 + $0x8] sm:$0xff]
        %v1547 = vmul.f32 %v1545, %v1272
        %v1548 = vmul.f32 %v1546, %v1273
        %v1549 = vadd.f32 %v1542, %v1547
        %v1550 = vadd.f32 %v1543, %v1548
        %s1551 = scalar_lea.vmem %s237, 944
        %v1552 = vld [vmem:[%s1551] sm:$0xff]
        %v1553 = vld [vmem:[%s1551 + $0x8] sm:$0xff]
        %v1554 = vmul.f32 %v1552, %v1280
        %v1555 = vmul.f32 %v1553, %v1281
        %v1556 = vadd.f32 %v1549, %v1554
        %v1557 = vadd.f32 %v1550, %v1555
        %s1558 = scalar_lea.vmem %s237, 960
        %v1559 = vld [vmem:[%s1558] sm:$0xff]
        %v1560 = vld [vmem:[%s1558 + $0x8] sm:$0xff]
        %v1561 = vmul.f32 %v1559, %v1288
        %v1562 = vmul.f32 %v1560, %v1289
        %v1563 = vadd.f32 %v1556, %v1561
        %v1564 = vadd.f32 %v1557, %v1562
        %s1565 = scalar_lea.vmem %s237, 976
        %v1566 = vld [vmem:[%s1565] sm:$0xff]
        %v1567 = vld [vmem:[%s1565 + $0x8] sm:$0xff]
        %v1568 = vmul.f32 %v1566, %v1296
        %v1569 = vmul.f32 %v1567, %v1297
        %v1570 = vadd.f32 %v1563, %v1568
        %v1571 = vadd.f32 %v1564, %v1569
        %s1572 = scalar_lea.vmem %s237, 992
        %v1573 = vld [vmem:[%s1572] sm:$0xff]
        %v1574 = vld [vmem:[%s1572 + $0x8] sm:$0xff]
        %v1575 = vmul.f32 %v1573, %v1304
        %v1576 = vmul.f32 %v1574, %v1305
        %v1577 = vadd.f32 %v1570, %v1575
        %v1578 = vadd.f32 %v1571, %v1576
        %s1579 = scalar_lea.vmem %s237, 1008
        %v1580 = vld [vmem:[%s1579] sm:$0xff]
        %v1581 = vld [vmem:[%s1579 + $0x8] sm:$0xff]
        %v1582 = vmul.f32 %v1580, %v1312
        %v1583 = vmul.f32 %v1581, %v1313
        %v1584 = vadd.f32 %v1577, %v1582
        %v1585 = vadd.f32 %v1578, %v1583
        %s1586 = scalar_lea.vmem %s237, 2160
        %v1587 = vld [vmem:[%s1586] sm:$0xff]
        %v1588 = vld [vmem:[%s1586 + $0x8] sm:$0xff]
        %s1589 = scalar_lea.vmem %s237, 2416
        %v1590 = vld [vmem:[%s1589] sm:$0xff]
        %v1591 = vld [vmem:[%s1589 + $0x8] sm:$0xff]
        %v1592 = vmul.f32 %v1587, %v1584
        %v1593 = vmul.f32 %v1588, %v1585
        %v1594 = vadd.f32 %v917, %v1592
        %v1595 = vadd.f32 %v918, %v1593
        %v1596 = vmul.f32 %v1590, %v1326
        %v1597 = vmul.f32 %v1591, %v1327
        %v1598 = vadd.f32 %v1594, %v1596
        %v1599 = vadd.f32 %v1595, %v1597
        %s1600 = scalar_lea.vmem %s224, 32
        %v1601 = vld [vmem:[%s1600] sm:$0xff]
        %v1602 = vld [vmem:[%s1600 + $0x8] sm:$0xff]
        %vm1603 = vcmp.ge.f32.partialorder %v1601, -2.2
        %vm1604 = vcmp.ge.f32.partialorder %v1602, -2.2
        %vm1605 = vcmp.lt.f32.partialorder %v1601, -1.8
        %vm1606 = vcmp.lt.f32.partialorder %v1602, -1.8
        %vm1607 = vmand %vm1603, %vm1605
        %vm1608 = vmand %vm1604, %vm1606
        %v1609 = vsel %vm1607, 1, 0
        %v1610 = vsel %vm1608, 1, 0
        %v1611 = vcvt.s32.f32 %v1609
        %v1612 = vcvt.s32.f32 %v1610
        %vm1613 = vcmp.ge.f32.partialorder %v1601, -1.8
        %vm1614 = vcmp.ge.f32.partialorder %v1602, -1.8
        %vm1615 = vcmp.lt.f32.partialorder %v1601, -1.4
        %vm1616 = vcmp.lt.f32.partialorder %v1602, -1.4
        %vm1617 = vmand %vm1613, %vm1615
        %vm1618 = vmand %vm1614, %vm1616
        %v1619 = vsel %vm1617, 1, 0
        %v1620 = vsel %vm1618, 1, 0
        %v1621 = vcvt.s32.f32 %v1619
        %v1622 = vcvt.s32.f32 %v1620
        %vm1623 = vcmp.ge.f32.partialorder %v1601, -1.4
        %vm1624 = vcmp.ge.f32.partialorder %v1602, -1.4
        %vm1625 = vcmp.lt.f32.partialorder %v1601, -1.0
        %vm1626 = vcmp.lt.f32.partialorder %v1602, -1.0
        %vm1627 = vmand %vm1623, %vm1625
        %vm1628 = vmand %vm1624, %vm1626
        %v1629 = vsel %vm1627, 1, 0
        %v1630 = vsel %vm1628, 1, 0
        %v1631 = vcvt.s32.f32 %v1629
        %v1632 = vcvt.s32.f32 %v1630
        %vm1633 = vcmp.ge.f32.partialorder %v1601, -1.0
        %vm1634 = vcmp.ge.f32.partialorder %v1602, -1.0
        %vm1635 = vcmp.lt.f32.partialorder %v1601, -0.6
        %vm1636 = vcmp.lt.f32.partialorder %v1602, -0.6
        %vm1637 = vmand %vm1633, %vm1635
        %vm1638 = vmand %vm1634, %vm1636
        %v1639 = vsel %vm1637, 1, 0
        %v1640 = vsel %vm1638, 1, 0
        %v1641 = vcvt.s32.f32 %v1639
        %v1642 = vcvt.s32.f32 %v1640
        %vm1643 = vcmp.ge.f32.partialorder %v1601, -0.6
        %vm1644 = vcmp.ge.f32.partialorder %v1602, -0.6
        %vm1645 = vcmp.lt.f32.partialorder %v1601, -0.2
        %vm1646 = vcmp.lt.f32.partialorder %v1602, -0.2
        %vm1647 = vmand %vm1643, %vm1645
        %vm1648 = vmand %vm1644, %vm1646
        %v1649 = vsel %vm1647, 1, 0
        %v1650 = vsel %vm1648, 1, 0
        %v1651 = vcvt.s32.f32 %v1649
        %v1652 = vcvt.s32.f32 %v1650
        %vm1653 = vcmp.ge.f32.partialorder %v1601, -0.2
        %vm1654 = vcmp.ge.f32.partialorder %v1602, -0.2
        %vm1655 = vcmp.lt.f32.partialorder %v1601, 0.2
        %vm1656 = vcmp.lt.f32.partialorder %v1602, 0.2
        %vm1657 = vmand %vm1653, %vm1655
        %vm1658 = vmand %vm1654, %vm1656
        %v1659 = vsel %vm1657, 1, 0
        %v1660 = vsel %vm1658, 1, 0
        %v1661 = vcvt.s32.f32 %v1659
        %v1662 = vcvt.s32.f32 %v1660
        %vm1663 = vcmp.ge.f32.partialorder %v1601, 0.2
        %vm1664 = vcmp.ge.f32.partialorder %v1602, 0.2
        %vm1665 = vcmp.lt.f32.partialorder %v1601, 0.6
        %vm1666 = vcmp.lt.f32.partialorder %v1602, 0.6
        %vm1667 = vmand %vm1663, %vm1665
        %vm1668 = vmand %vm1664, %vm1666
        %v1669 = vsel %vm1667, 1, 0
        %v1670 = vsel %vm1668, 1, 0
        %v1671 = vcvt.s32.f32 %v1669
        %v1672 = vcvt.s32.f32 %v1670
        %vm1673 = vcmp.ge.f32.partialorder %v1601, 0.6
        %vm1674 = vcmp.ge.f32.partialorder %v1602, 0.6
        %vm1675 = vcmp.lt.f32.partialorder %v1601, 1.0
        %vm1676 = vcmp.lt.f32.partialorder %v1602, 1.0
        %vm1677 = vmand %vm1673, %vm1675
        %vm1678 = vmand %vm1674, %vm1676
        %v1679 = vsel %vm1677, 1, 0
        %v1680 = vsel %vm1678, 1, 0
        %v1681 = vcvt.s32.f32 %v1679
        %v1682 = vcvt.s32.f32 %v1680
        %vm1683 = vcmp.ge.f32.partialorder %v1601, 1.0
        %vm1684 = vcmp.ge.f32.partialorder %v1602, 1.0
        %vm1685 = vcmp.lt.f32.partialorder %v1601, 1.4
        %vm1686 = vcmp.lt.f32.partialorder %v1602, 1.4
        %vm1687 = vmand %vm1683, %vm1685
        %vm1688 = vmand %vm1684, %vm1686
        %v1689 = vsel %vm1687, 1, 0
        %v1690 = vsel %vm1688, 1, 0
        %v1691 = vcvt.s32.f32 %v1689
        %v1692 = vcvt.s32.f32 %v1690
        %vm1693 = vcmp.ge.f32.partialorder %v1601, 1.4
        %vm1694 = vcmp.ge.f32.partialorder %v1602, 1.4
        %vm1695 = vcmp.lt.f32.partialorder %v1601, 1.8
        %vm1696 = vcmp.lt.f32.partialorder %v1602, 1.8
        %vm1697 = vmand %vm1693, %vm1695
        %vm1698 = vmand %vm1694, %vm1696
        %v1699 = vsel %vm1697, 1, 0
        %v1700 = vsel %vm1698, 1, 0
        %v1701 = vcvt.s32.f32 %v1699
        %v1702 = vcvt.s32.f32 %v1700
        %vm1703 = vcmp.ge.f32.partialorder %v1601, 1.8
        %vm1704 = vcmp.ge.f32.partialorder %v1602, 1.8
        %vm1705 = vcmp.lt.f32.partialorder %v1601, 2.2
        %vm1706 = vcmp.lt.f32.partialorder %v1602, 2.2
        %vm1707 = vmand %vm1703, %vm1705
        %vm1708 = vmand %vm1704, %vm1706
        %v1709 = vsel %vm1707, 1, 0
        %v1710 = vsel %vm1708, 1, 0
        %v1711 = vcvt.s32.f32 %v1709
        %v1712 = vcvt.s32.f32 %v1710
        %v1713 = vmul.f32 %v1601, 2.5
        %v1714 = vmul.f32 %v1602, 2.5
        %v1715 = vsub.f32 %v1713, -5.5
        %v1716 = vsub.f32 %v1714, -5.5
        %v1717 = vsub.f32 %v1713, -4.5
        %v1718 = vsub.f32 %v1714, -4.5
        %v1719 = vsub.f32 %v1713, -3.5
        %v1720 = vsub.f32 %v1714, -3.5
        %v1721 = vsub.f32 %v1713, -2.5
        %v1722 = vsub.f32 %v1714, -2.5
        %v1723 = vsub.f32 %v1713, -1.5
        %v1724 = vsub.f32 %v1714, -1.5
        %v1725 = vsub.f32 %v1713, -0.5
        %v1726 = vsub.f32 %v1714, -0.5
        %v1727 = vsub.f32 %v1713, 0.5
        %v1728 = vsub.f32 %v1714, 0.5
        %v1729 = vsub.f32 %v1713, 1.5
        %v1730 = vsub.f32 %v1714, 1.5
        %v1731 = vsub.f32 %v1713, 2.5
        %v1732 = vsub.f32 %v1714, 2.5
        %v1733 = vsub.f32 %v1713, 3.5
        %v1734 = vsub.f32 %v1714, 3.5
        %v1735 = vsub.f32 %v1713, 4.5
        %v1736 = vsub.f32 %v1714, 4.5
        %v1737 = vmul.f32 %v1715, %v1611
        %v1738 = vmul.f32 %v1716, %v1612
        %v1739 = vsub.f32 1.0, %v1717
        %v1740 = vsub.f32 1.0, %v1718
        %v1741 = vmul.f32 %v1739, %v1621
        %v1742 = vmul.f32 %v1740, %v1622
        %v1743 = vadd.f32 %v1737, %v1741
        %v1744 = vadd.f32 %v1738, %v1742
        %v1745 = vmul.f32 %v1717, %v1621
        %v1746 = vmul.f32 %v1718, %v1622
        %v1747 = vsub.f32 1.0, %v1719
        %v1748 = vsub.f32 1.0, %v1720
        %v1749 = vmul.f32 %v1747, %v1631
        %v1750 = vmul.f32 %v1748, %v1632
        %v1751 = vadd.f32 %v1745, %v1749
        %v1752 = vadd.f32 %v1746, %v1750
        %v1753 = vmul.f32 %v1719, %v1631
        %v1754 = vmul.f32 %v1720, %v1632
        %v1755 = vsub.f32 1.0, %v1721
        %v1756 = vsub.f32 1.0, %v1722
        %v1757 = vmul.f32 %v1755, %v1641
        %v1758 = vmul.f32 %v1756, %v1642
        %v1759 = vadd.f32 %v1753, %v1757
        %v1760 = vadd.f32 %v1754, %v1758
        %v1761 = vmul.f32 %v1721, %v1641
        %v1762 = vmul.f32 %v1722, %v1642
        %v1763 = vsub.f32 1.0, %v1723
        %v1764 = vsub.f32 1.0, %v1724
        %v1765 = vmul.f32 %v1763, %v1651
        %v1766 = vmul.f32 %v1764, %v1652
        %v1767 = vadd.f32 %v1761, %v1765
        %v1768 = vadd.f32 %v1762, %v1766
        %v1769 = vmul.f32 %v1723, %v1651
        %v1770 = vmul.f32 %v1724, %v1652
        %v1771 = vsub.f32 1.0, %v1725
        %v1772 = vsub.f32 1.0, %v1726
        %v1773 = vmul.f32 %v1771, %v1661
        %v1774 = vmul.f32 %v1772, %v1662
        %v1775 = vadd.f32 %v1769, %v1773
        %v1776 = vadd.f32 %v1770, %v1774
        %v1777 = vmul.f32 %v1725, %v1661
        %v1778 = vmul.f32 %v1726, %v1662
        %v1779 = vsub.f32 1.0, %v1727
        %v1780 = vsub.f32 1.0, %v1728
        %v1781 = vmul.f32 %v1779, %v1671
        %v1782 = vmul.f32 %v1780, %v1672
        %v1783 = vadd.f32 %v1777, %v1781
        %v1784 = vadd.f32 %v1778, %v1782
        %v1785 = vmul.f32 %v1727, %v1671
        %v1786 = vmul.f32 %v1728, %v1672
        %v1787 = vsub.f32 1.0, %v1729
        %v1788 = vsub.f32 1.0, %v1730
        %v1789 = vmul.f32 %v1787, %v1681
        %v1790 = vmul.f32 %v1788, %v1682
        %v1791 = vadd.f32 %v1785, %v1789
        %v1792 = vadd.f32 %v1786, %v1790
        %v1793 = vmul.f32 %v1729, %v1681
        %v1794 = vmul.f32 %v1730, %v1682
        %v1795 = vsub.f32 1.0, %v1731
        %v1796 = vsub.f32 1.0, %v1732
        %v1797 = vmul.f32 %v1795, %v1691
        %v1798 = vmul.f32 %v1796, %v1692
        %v1799 = vadd.f32 %v1793, %v1797
        %v1800 = vadd.f32 %v1794, %v1798
        %v1801 = vmul.f32 %v1731, %v1691
        %v1802 = vmul.f32 %v1732, %v1692
        %v1803 = vsub.f32 1.0, %v1733
        %v1804 = vsub.f32 1.0, %v1734
        %v1805 = vmul.f32 %v1803, %v1701
        %v1806 = vmul.f32 %v1804, %v1702
        %v1807 = vadd.f32 %v1801, %v1805
        %v1808 = vadd.f32 %v1802, %v1806
        %v1809 = vmul.f32 %v1733, %v1701
        %v1810 = vmul.f32 %v1734, %v1702
        %v1811 = vsub.f32 1.0, %v1735
        %v1812 = vsub.f32 1.0, %v1736
        %v1813 = vmul.f32 %v1811, %v1711
        %v1814 = vmul.f32 %v1812, %v1712
        %v1815 = vadd.f32 %v1809, %v1813
        %v1816 = vadd.f32 %v1810, %v1814
        %v1817 = vmul.f32 %v1601, 1.25
        %v1818 = vmul.f32 %v1602, 1.25
        %v1819 = vsub.f32 %v1817, -2.75
        %v1820 = vsub.f32 %v1818, -2.75
        %v1821 = vsub.f32 %v1817, -2.25
        %v1822 = vsub.f32 %v1818, -2.25
        %v1823 = vsub.f32 %v1817, -1.75
        %v1824 = vsub.f32 %v1818, -1.75
        %v1825 = vsub.f32 %v1817, -1.25
        %v1826 = vsub.f32 %v1818, -1.25
        %v1827 = vsub.f32 %v1817, -0.75
        %v1828 = vsub.f32 %v1818, -0.75
        %v1829 = vsub.f32 %v1817, -0.25
        %v1830 = vsub.f32 %v1818, -0.25
        %v1831 = vsub.f32 %v1817, 0.25
        %v1832 = vsub.f32 %v1818, 0.25
        %v1833 = vsub.f32 %v1817, 0.75
        %v1834 = vsub.f32 %v1818, 0.75
        %v1835 = vsub.f32 %v1817, 1.25
        %v1836 = vsub.f32 %v1818, 1.25
        %v1837 = vsub.f32 %v1817, 1.75
        %v1838 = vsub.f32 %v1818, 1.75
        %v1839 = vmul.f32 %v1819, %v1743
        %v1840 = vmul.f32 %v1820, %v1744
        %v1841 = vsub.f32 1.0, %v1821
        %v1842 = vsub.f32 1.0, %v1822
        %v1843 = vmul.f32 %v1841, %v1751
        %v1844 = vmul.f32 %v1842, %v1752
        %v1845 = vadd.f32 %v1839, %v1843
        %v1846 = vadd.f32 %v1840, %v1844
        %v1847 = vmul.f32 %v1821, %v1751
        %v1848 = vmul.f32 %v1822, %v1752
        %v1849 = vsub.f32 1.0, %v1823
        %v1850 = vsub.f32 1.0, %v1824
        %v1851 = vmul.f32 %v1849, %v1759
        %v1852 = vmul.f32 %v1850, %v1760
        %v1853 = vadd.f32 %v1847, %v1851
        %v1854 = vadd.f32 %v1848, %v1852
        %v1855 = vmul.f32 %v1823, %v1759
        %v1856 = vmul.f32 %v1824, %v1760
        %v1857 = vsub.f32 1.0, %v1825
        %v1858 = vsub.f32 1.0, %v1826
        %v1859 = vmul.f32 %v1857, %v1767
        %v1860 = vmul.f32 %v1858, %v1768
        %v1861 = vadd.f32 %v1855, %v1859
        %v1862 = vadd.f32 %v1856, %v1860
        %v1863 = vmul.f32 %v1825, %v1767
        %v1864 = vmul.f32 %v1826, %v1768
        %v1865 = vsub.f32 1.0, %v1827
        %v1866 = vsub.f32 1.0, %v1828
        %v1867 = vmul.f32 %v1865, %v1775
        %v1868 = vmul.f32 %v1866, %v1776
        %v1869 = vadd.f32 %v1863, %v1867
        %v1870 = vadd.f32 %v1864, %v1868
        %v1871 = vmul.f32 %v1827, %v1775
        %v1872 = vmul.f32 %v1828, %v1776
        %v1873 = vsub.f32 1.0, %v1829
        %v1874 = vsub.f32 1.0, %v1830
        %v1875 = vmul.f32 %v1873, %v1783
        %v1876 = vmul.f32 %v1874, %v1784
        %v1877 = vadd.f32 %v1871, %v1875
        %v1878 = vadd.f32 %v1872, %v1876
        %v1879 = vmul.f32 %v1829, %v1783
        %v1880 = vmul.f32 %v1830, %v1784
        %v1881 = vsub.f32 1.0, %v1831
        %v1882 = vsub.f32 1.0, %v1832
        %v1883 = vmul.f32 %v1881, %v1791
        %v1884 = vmul.f32 %v1882, %v1792
        %v1885 = vadd.f32 %v1879, %v1883
        %v1886 = vadd.f32 %v1880, %v1884
        %v1887 = vmul.f32 %v1831, %v1791
        %v1888 = vmul.f32 %v1832, %v1792
        %v1889 = vsub.f32 1.0, %v1833
        %v1890 = vsub.f32 1.0, %v1834
        %v1891 = vmul.f32 %v1889, %v1799
        %v1892 = vmul.f32 %v1890, %v1800
        %v1893 = vadd.f32 %v1887, %v1891
        %v1894 = vadd.f32 %v1888, %v1892
        %v1895 = vmul.f32 %v1833, %v1799
        %v1896 = vmul.f32 %v1834, %v1800
        %v1897 = vsub.f32 1.0, %v1835
        %v1898 = vsub.f32 1.0, %v1836
        %v1899 = vmul.f32 %v1897, %v1807
        %v1900 = vmul.f32 %v1898, %v1808
        %v1901 = vadd.f32 %v1895, %v1899
        %v1902 = vadd.f32 %v1896, %v1900
        %v1903 = vmul.f32 %v1835, %v1807
        %v1904 = vmul.f32 %v1836, %v1808
        %v1905 = vsub.f32 1.0, %v1837
        %v1906 = vsub.f32 1.0, %v1838
        %v1907 = vmul.f32 %v1905, %v1815
        %v1908 = vmul.f32 %v1906, %v1816
        %v1909 = vadd.f32 %v1903, %v1907
        %v1910 = vadd.f32 %v1904, %v1908
        %v1911 = vmul.f32 %v1601, 0.8333333
        %v1912 = vmul.f32 %v1602, 0.8333333
        %v1913 = vsub.f32 %v1911, -1.8333334
        %v1914 = vsub.f32 %v1912, -1.8333334
        %v1915 = vsub.f32 %v1911, -1.5
        %v1916 = vsub.f32 %v1912, -1.5
        %v1917 = vsub.f32 %v1911, -1.1666666
        %v1918 = vsub.f32 %v1912, -1.1666666
        %v1919 = vsub.f32 %v1911, -0.8333333
        %v1920 = vsub.f32 %v1912, -0.8333333
        %v1921 = vsub.f32 %v1911, -0.5
        %v1922 = vsub.f32 %v1912, -0.5
        %v1923 = vsub.f32 %v1911, -0.16666667
        %v1924 = vsub.f32 %v1912, -0.16666667
        %v1925 = vsub.f32 %v1911, 0.16666667
        %v1926 = vsub.f32 %v1912, 0.16666667
        %v1927 = vsub.f32 %v1911, 0.5
        %v1928 = vsub.f32 %v1912, 0.5
        %v1929 = vsub.f32 %v1911, 0.8333333
        %v1930 = vsub.f32 %v1912, 0.8333333
        %v1931 = vmul.f32 %v1913, %v1845
        %v1932 = vmul.f32 %v1914, %v1846
        %v1933 = vsub.f32 1.0, %v1915
        %v1934 = vsub.f32 1.0, %v1916
        %v1935 = vmul.f32 %v1933, %v1853
        %v1936 = vmul.f32 %v1934, %v1854
        %v1937 = vadd.f32 %v1931, %v1935
        %v1938 = vadd.f32 %v1932, %v1936
        %v1939 = vmul.f32 %v1915, %v1853
        %v1940 = vmul.f32 %v1916, %v1854
        %v1941 = vsub.f32 1.0, %v1917
        %v1942 = vsub.f32 1.0, %v1918
        %v1943 = vmul.f32 %v1941, %v1861
        %v1944 = vmul.f32 %v1942, %v1862
        %v1945 = vadd.f32 %v1939, %v1943
        %v1946 = vadd.f32 %v1940, %v1944
        %v1947 = vmul.f32 %v1917, %v1861
        %v1948 = vmul.f32 %v1918, %v1862
        %v1949 = vsub.f32 1.0, %v1919
        %v1950 = vsub.f32 1.0, %v1920
        %v1951 = vmul.f32 %v1949, %v1869
        %v1952 = vmul.f32 %v1950, %v1870
        %v1953 = vadd.f32 %v1947, %v1951
        %v1954 = vadd.f32 %v1948, %v1952
        %v1955 = vmul.f32 %v1919, %v1869
        %v1956 = vmul.f32 %v1920, %v1870
        %v1957 = vsub.f32 1.0, %v1921
        %v1958 = vsub.f32 1.0, %v1922
        %v1959 = vmul.f32 %v1957, %v1877
        %v1960 = vmul.f32 %v1958, %v1878
        %v1961 = vadd.f32 %v1955, %v1959
        %v1962 = vadd.f32 %v1956, %v1960
        %v1963 = vmul.f32 %v1921, %v1877
        %v1964 = vmul.f32 %v1922, %v1878
        %v1965 = vsub.f32 1.0, %v1923
        %v1966 = vsub.f32 1.0, %v1924
        %v1967 = vmul.f32 %v1965, %v1885
        %v1968 = vmul.f32 %v1966, %v1886
        %v1969 = vadd.f32 %v1963, %v1967
        %v1970 = vadd.f32 %v1964, %v1968
        %v1971 = vmul.f32 %v1923, %v1885
        %v1972 = vmul.f32 %v1924, %v1886
        %v1973 = vsub.f32 1.0, %v1925
        %v1974 = vsub.f32 1.0, %v1926
        %v1975 = vmul.f32 %v1973, %v1893
        %v1976 = vmul.f32 %v1974, %v1894
        %v1977 = vadd.f32 %v1971, %v1975
        %v1978 = vadd.f32 %v1972, %v1976
        %v1979 = vmul.f32 %v1925, %v1893
        %v1980 = vmul.f32 %v1926, %v1894
        %v1981 = vsub.f32 1.0, %v1927
        %v1982 = vsub.f32 1.0, %v1928
        %v1983 = vmul.f32 %v1981, %v1901
        %v1984 = vmul.f32 %v1982, %v1902
        %v1985 = vadd.f32 %v1979, %v1983
        %v1986 = vadd.f32 %v1980, %v1984
        %v1987 = vmul.f32 %v1927, %v1901
        %v1988 = vmul.f32 %v1928, %v1902
        %v1989 = vsub.f32 1.0, %v1929
        %v1990 = vsub.f32 1.0, %v1930
        %v1991 = vmul.f32 %v1989, %v1909
        %v1992 = vmul.f32 %v1990, %v1910
        %v1993 = vadd.f32 %v1987, %v1991
        %v1994 = vadd.f32 %v1988, %v1992
        %v1995 = vxor.u32 %v1601, 2147483648
        %v1996 = vxor.u32 %v1602, 2147483648
        %v1997 = vmul.f32 %v1995, 1.442695
        %v1998 = vpow.pop %v1997
        %v1999 = vmul.f32 %v1996, 1.442695
        %v2000 = vpow.pop %v1999
        %v2001 = vadd.f32 %v1998, 1.0
        %v2002 = vadd.f32 %v2000, 1.0
        %v2003 = vrcp.pop %v2001
        %v2004 = vmul.f32 1.0, %v2003
        %v2005 = vrcp.pop %v2002
        %v2006 = vmul.f32 1.0, %v2005
        %v2007 = vmul.f32 %v1601, %v2004
        %v2008 = vmul.f32 %v1602, %v2006
        %s2009 = scalar_lea.vmem %s237, 1024
        %v2010 = vld [vmem:[%s2009] sm:$0xff]
        %v2011 = vld [vmem:[%s2009 + $0x8] sm:$0xff]
        %v2012 = vmul.f32 %v2010, %v1937
        %v2013 = vmul.f32 %v2011, %v1938
        %s2014 = scalar_lea.vmem %s237, 1040
        %v2015 = vld [vmem:[%s2014] sm:$0xff]
        %v2016 = vld [vmem:[%s2014 + $0x8] sm:$0xff]
        %v2017 = vmul.f32 %v2015, %v1945
        %v2018 = vmul.f32 %v2016, %v1946
        %v2019 = vadd.f32 %v2012, %v2017
        %v2020 = vadd.f32 %v2013, %v2018
        %s2021 = scalar_lea.vmem %s237, 1056
        %v2022 = vld [vmem:[%s2021] sm:$0xff]
        %v2023 = vld [vmem:[%s2021 + $0x8] sm:$0xff]
        %v2024 = vmul.f32 %v2022, %v1953
        %v2025 = vmul.f32 %v2023, %v1954
        %v2026 = vadd.f32 %v2019, %v2024
        %v2027 = vadd.f32 %v2020, %v2025
        %s2028 = scalar_lea.vmem %s237, 1072
        %v2029 = vld [vmem:[%s2028] sm:$0xff]
        %v2030 = vld [vmem:[%s2028 + $0x8] sm:$0xff]
        %v2031 = vmul.f32 %v2029, %v1961
        %v2032 = vmul.f32 %v2030, %v1962
        %v2033 = vadd.f32 %v2026, %v2031
        %v2034 = vadd.f32 %v2027, %v2032
        %s2035 = scalar_lea.vmem %s237, 1088
        %v2036 = vld [vmem:[%s2035] sm:$0xff]
        %v2037 = vld [vmem:[%s2035 + $0x8] sm:$0xff]
        %v2038 = vmul.f32 %v2036, %v1969
        %v2039 = vmul.f32 %v2037, %v1970
        %v2040 = vadd.f32 %v2033, %v2038
        %v2041 = vadd.f32 %v2034, %v2039
        %s2042 = scalar_lea.vmem %s237, 1104
        %v2043 = vld [vmem:[%s2042] sm:$0xff]
        %v2044 = vld [vmem:[%s2042 + $0x8] sm:$0xff]
        %v2045 = vmul.f32 %v2043, %v1977
        %v2046 = vmul.f32 %v2044, %v1978
        %v2047 = vadd.f32 %v2040, %v2045
        %v2048 = vadd.f32 %v2041, %v2046
        %s2049 = scalar_lea.vmem %s237, 1120
        %v2050 = vld [vmem:[%s2049] sm:$0xff]
        %v2051 = vld [vmem:[%s2049 + $0x8] sm:$0xff]
        %v2052 = vmul.f32 %v2050, %v1985
        %v2053 = vmul.f32 %v2051, %v1986
        %v2054 = vadd.f32 %v2047, %v2052
        %v2055 = vadd.f32 %v2048, %v2053
        %s2056 = scalar_lea.vmem %s237, 1136
        %v2057 = vld [vmem:[%s2056] sm:$0xff]
        %v2058 = vld [vmem:[%s2056 + $0x8] sm:$0xff]
        %v2059 = vmul.f32 %v2057, %v1993
        %v2060 = vmul.f32 %v2058, %v1994
        %v2061 = vadd.f32 %v2054, %v2059
        %v2062 = vadd.f32 %v2055, %v2060
        %s2063 = scalar_lea.vmem %s237, 2176
        %v2064 = vld [vmem:[%s2063] sm:$0xff]
        %v2065 = vld [vmem:[%s2063 + $0x8] sm:$0xff]
        %s2066 = scalar_lea.vmem %s237, 2432
        %v2067 = vld [vmem:[%s2066] sm:$0xff]
        %v2068 = vld [vmem:[%s2066 + $0x8] sm:$0xff]
        %v2069 = vmul.f32 %v2064, %v2061
        %v2070 = vmul.f32 %v2065, %v2062
        %v2071 = vadd.f32 %v1394, %v2069
        %v2072 = vadd.f32 %v1395, %v2070
        %v2073 = vmul.f32 %v2067, %v2007
        %v2074 = vmul.f32 %v2068, %v2008
        %v2075 = vadd.f32 %v2071, %v2073
        %v2076 = vadd.f32 %v2072, %v2074
        %s2077 = scalar_lea.vmem %s237, 1152
        %v2078 = vld [vmem:[%s2077] sm:$0xff]
        %v2079 = vld [vmem:[%s2077 + $0x8] sm:$0xff]
        %v2080 = vmul.f32 %v2078, %v1937
        %v2081 = vmul.f32 %v2079, %v1938
        %s2082 = scalar_lea.vmem %s237, 1168
        %v2083 = vld [vmem:[%s2082] sm:$0xff]
        %v2084 = vld [vmem:[%s2082 + $0x8] sm:$0xff]
        %v2085 = vmul.f32 %v2083, %v1945
        %v2086 = vmul.f32 %v2084, %v1946
        %v2087 = vadd.f32 %v2080, %v2085
        %v2088 = vadd.f32 %v2081, %v2086
        %s2089 = scalar_lea.vmem %s237, 1184
        %v2090 = vld [vmem:[%s2089] sm:$0xff]
        %v2091 = vld [vmem:[%s2089 + $0x8] sm:$0xff]
        %v2092 = vmul.f32 %v2090, %v1953
        %v2093 = vmul.f32 %v2091, %v1954
        %v2094 = vadd.f32 %v2087, %v2092
        %v2095 = vadd.f32 %v2088, %v2093
        %s2096 = scalar_lea.vmem %s237, 1200
        %v2097 = vld [vmem:[%s2096] sm:$0xff]
        %v2098 = vld [vmem:[%s2096 + $0x8] sm:$0xff]
        %v2099 = vmul.f32 %v2097, %v1961
        %v2100 = vmul.f32 %v2098, %v1962
        %v2101 = vadd.f32 %v2094, %v2099
        %v2102 = vadd.f32 %v2095, %v2100
        %s2103 = scalar_lea.vmem %s237, 1216
        %v2104 = vld [vmem:[%s2103] sm:$0xff]
        %v2105 = vld [vmem:[%s2103 + $0x8] sm:$0xff]
        %v2106 = vmul.f32 %v2104, %v1969
        %v2107 = vmul.f32 %v2105, %v1970
        %v2108 = vadd.f32 %v2101, %v2106
        %v2109 = vadd.f32 %v2102, %v2107
        %s2110 = scalar_lea.vmem %s237, 1232
        %v2111 = vld [vmem:[%s2110] sm:$0xff]
        %v2112 = vld [vmem:[%s2110 + $0x8] sm:$0xff]
        %v2113 = vmul.f32 %v2111, %v1977
        %v2114 = vmul.f32 %v2112, %v1978
        %v2115 = vadd.f32 %v2108, %v2113
        %v2116 = vadd.f32 %v2109, %v2114
        %s2117 = scalar_lea.vmem %s237, 1248
        %v2118 = vld [vmem:[%s2117] sm:$0xff]
        %v2119 = vld [vmem:[%s2117 + $0x8] sm:$0xff]
        %v2120 = vmul.f32 %v2118, %v1985
        %v2121 = vmul.f32 %v2119, %v1986
        %v2122 = vadd.f32 %v2115, %v2120
        %v2123 = vadd.f32 %v2116, %v2121
        %s2124 = scalar_lea.vmem %s237, 1264
        %v2125 = vld [vmem:[%s2124] sm:$0xff]
        %v2126 = vld [vmem:[%s2124 + $0x8] sm:$0xff]
        %v2127 = vmul.f32 %v2125, %v1993
        %v2128 = vmul.f32 %v2126, %v1994
        %v2129 = vadd.f32 %v2122, %v2127
        %v2130 = vadd.f32 %v2123, %v2128
        %s2131 = scalar_lea.vmem %s237, 2192
        %v2132 = vld [vmem:[%s2131] sm:$0xff]
        %v2133 = vld [vmem:[%s2131 + $0x8] sm:$0xff]
        %s2134 = scalar_lea.vmem %s237, 2448
        %v2135 = vld [vmem:[%s2134] sm:$0xff]
        %v2136 = vld [vmem:[%s2134 + $0x8] sm:$0xff]
        %v2137 = vmul.f32 %v2132, %v2129
        %v2138 = vmul.f32 %v2133, %v2130
        %v2139 = vadd.f32 %v1462, %v2137
        %v2140 = vadd.f32 %v1463, %v2138
        %v2141 = vmul.f32 %v2135, %v2007
        %v2142 = vmul.f32 %v2136, %v2008
        %v2143 = vadd.f32 %v2139, %v2141
        %v2144 = vadd.f32 %v2140, %v2142
        %s2145 = scalar_lea.vmem %s237, 1280
        %v2146 = vld [vmem:[%s2145] sm:$0xff]
        %v2147 = vld [vmem:[%s2145 + $0x8] sm:$0xff]
        %v2148 = vmul.f32 %v2146, %v1937
        %v2149 = vmul.f32 %v2147, %v1938
        %s2150 = scalar_lea.vmem %s237, 1296
        %v2151 = vld [vmem:[%s2150] sm:$0xff]
        %v2152 = vld [vmem:[%s2150 + $0x8] sm:$0xff]
        %v2153 = vmul.f32 %v2151, %v1945
        %v2154 = vmul.f32 %v2152, %v1946
        %v2155 = vadd.f32 %v2148, %v2153
        %v2156 = vadd.f32 %v2149, %v2154
        %s2157 = scalar_lea.vmem %s237, 1312
        %v2158 = vld [vmem:[%s2157] sm:$0xff]
        %v2159 = vld [vmem:[%s2157 + $0x8] sm:$0xff]
        %v2160 = vmul.f32 %v2158, %v1953
        %v2161 = vmul.f32 %v2159, %v1954
        %v2162 = vadd.f32 %v2155, %v2160
        %v2163 = vadd.f32 %v2156, %v2161
        %s2164 = scalar_lea.vmem %s237, 1328
        %v2165 = vld [vmem:[%s2164] sm:$0xff]
        %v2166 = vld [vmem:[%s2164 + $0x8] sm:$0xff]
        %v2167 = vmul.f32 %v2165, %v1961
        %v2168 = vmul.f32 %v2166, %v1962
        %v2169 = vadd.f32 %v2162, %v2167
        %v2170 = vadd.f32 %v2163, %v2168
        %s2171 = scalar_lea.vmem %s237, 1344
        %v2172 = vld [vmem:[%s2171] sm:$0xff]
        %v2173 = vld [vmem:[%s2171 + $0x8] sm:$0xff]
        %v2174 = vmul.f32 %v2172, %v1969
        %v2175 = vmul.f32 %v2173, %v1970
        %v2176 = vadd.f32 %v2169, %v2174
        %v2177 = vadd.f32 %v2170, %v2175
        %s2178 = scalar_lea.vmem %s237, 1360
        %v2179 = vld [vmem:[%s2178] sm:$0xff]
        %v2180 = vld [vmem:[%s2178 + $0x8] sm:$0xff]
        %v2181 = vmul.f32 %v2179, %v1977
        %v2182 = vmul.f32 %v2180, %v1978
        %v2183 = vadd.f32 %v2176, %v2181
        %v2184 = vadd.f32 %v2177, %v2182
        %s2185 = scalar_lea.vmem %s237, 1376
        %v2186 = vld [vmem:[%s2185] sm:$0xff]
        %v2187 = vld [vmem:[%s2185 + $0x8] sm:$0xff]
        %v2188 = vmul.f32 %v2186, %v1985
        %v2189 = vmul.f32 %v2187, %v1986
        %v2190 = vadd.f32 %v2183, %v2188
        %v2191 = vadd.f32 %v2184, %v2189
        %s2192 = scalar_lea.vmem %s237, 1392
        %v2193 = vld [vmem:[%s2192] sm:$0xff]
        %v2194 = vld [vmem:[%s2192 + $0x8] sm:$0xff]
        %v2195 = vmul.f32 %v2193, %v1993
        %v2196 = vmul.f32 %v2194, %v1994
        %v2197 = vadd.f32 %v2190, %v2195
        %v2198 = vadd.f32 %v2191, %v2196
        %s2199 = scalar_lea.vmem %s237, 2208
        %v2200 = vld [vmem:[%s2199] sm:$0xff]
        %v2201 = vld [vmem:[%s2199 + $0x8] sm:$0xff]
        %s2202 = scalar_lea.vmem %s237, 2464
        %v2203 = vld [vmem:[%s2202] sm:$0xff]
        %v2204 = vld [vmem:[%s2202 + $0x8] sm:$0xff]
        %v2205 = vmul.f32 %v2200, %v2197
        %v2206 = vmul.f32 %v2201, %v2198
        %v2207 = vadd.f32 %v1530, %v2205
        %v2208 = vadd.f32 %v1531, %v2206
        %v2209 = vmul.f32 %v2203, %v2007
        %v2210 = vmul.f32 %v2204, %v2008
        %v2211 = vadd.f32 %v2207, %v2209
        %v2212 = vadd.f32 %v2208, %v2210
        %s2213 = scalar_lea.vmem %s237, 1408
        %v2214 = vld [vmem:[%s2213] sm:$0xff]
        %v2215 = vld [vmem:[%s2213 + $0x8] sm:$0xff]
        %v2216 = vmul.f32 %v2214, %v1937
        %v2217 = vmul.f32 %v2215, %v1938
        %s2218 = scalar_lea.vmem %s237, 1424
        %v2219 = vld [vmem:[%s2218] sm:$0xff]
        %v2220 = vld [vmem:[%s2218 + $0x8] sm:$0xff]
        %v2221 = vmul.f32 %v2219, %v1945
        %v2222 = vmul.f32 %v2220, %v1946
        %v2223 = vadd.f32 %v2216, %v2221
        %v2224 = vadd.f32 %v2217, %v2222
        %s2225 = scalar_lea.vmem %s237, 1440
        %v2226 = vld [vmem:[%s2225] sm:$0xff]
        %v2227 = vld [vmem:[%s2225 + $0x8] sm:$0xff]
        %v2228 = vmul.f32 %v2226, %v1953
        %v2229 = vmul.f32 %v2227, %v1954
        %v2230 = vadd.f32 %v2223, %v2228
        %v2231 = vadd.f32 %v2224, %v2229
        %s2232 = scalar_lea.vmem %s237, 1456
        %v2233 = vld [vmem:[%s2232] sm:$0xff]
        %v2234 = vld [vmem:[%s2232 + $0x8] sm:$0xff]
        %v2235 = vmul.f32 %v2233, %v1961
        %v2236 = vmul.f32 %v2234, %v1962
        %v2237 = vadd.f32 %v2230, %v2235
        %v2238 = vadd.f32 %v2231, %v2236
        %s2239 = scalar_lea.vmem %s237, 1472
        %v2240 = vld [vmem:[%s2239] sm:$0xff]
        %v2241 = vld [vmem:[%s2239 + $0x8] sm:$0xff]
        %v2242 = vmul.f32 %v2240, %v1969
        %v2243 = vmul.f32 %v2241, %v1970
        %v2244 = vadd.f32 %v2237, %v2242
        %v2245 = vadd.f32 %v2238, %v2243
        %s2246 = scalar_lea.vmem %s237, 1488
        %v2247 = vld [vmem:[%s2246] sm:$0xff]
        %v2248 = vld [vmem:[%s2246 + $0x8] sm:$0xff]
        %v2249 = vmul.f32 %v2247, %v1977
        %v2250 = vmul.f32 %v2248, %v1978
        %v2251 = vadd.f32 %v2244, %v2249
        %v2252 = vadd.f32 %v2245, %v2250
        %s2253 = scalar_lea.vmem %s237, 1504
        %v2254 = vld [vmem:[%s2253] sm:$0xff]
        %v2255 = vld [vmem:[%s2253 + $0x8] sm:$0xff]
        %v2256 = vmul.f32 %v2254, %v1985
        %v2257 = vmul.f32 %v2255, %v1986
        %v2258 = vadd.f32 %v2251, %v2256
        %v2259 = vadd.f32 %v2252, %v2257
        %s2260 = scalar_lea.vmem %s237, 1520
        %v2261 = vld [vmem:[%s2260] sm:$0xff]
        %v2262 = vld [vmem:[%s2260 + $0x8] sm:$0xff]
        %v2263 = vmul.f32 %v2261, %v1993
        %v2264 = vmul.f32 %v2262, %v1994
        %v2265 = vadd.f32 %v2258, %v2263
        %v2266 = vadd.f32 %v2259, %v2264
        %s2267 = scalar_lea.vmem %s237, 2224
        %v2268 = vld [vmem:[%s2267] sm:$0xff]
        %v2269 = vld [vmem:[%s2267 + $0x8] sm:$0xff]
        %s2270 = scalar_lea.vmem %s237, 2480
        %v2271 = vld [vmem:[%s2270] sm:$0xff]
        %v2272 = vld [vmem:[%s2270 + $0x8] sm:$0xff]
        %v2273 = vmul.f32 %v2268, %v2265
        %v2274 = vmul.f32 %v2269, %v2266
        %v2275 = vadd.f32 %v1598, %v2273
        %v2276 = vadd.f32 %v1599, %v2274
        %v2277 = vmul.f32 %v2271, %v2007
        %v2278 = vmul.f32 %v2272, %v2008
        %v2279 = vadd.f32 %v2275, %v2277
        %v2280 = vadd.f32 %v2276, %v2278
        %s2281 = scalar_lea.vmem %s224, 48
        %v2282 = vld [vmem:[%s2281] sm:$0xff]
        %v2283 = vld [vmem:[%s2281 + $0x8] sm:$0xff]
        %vm2284 = vcmp.ge.f32.partialorder %v2282, -2.2
        %vm2285 = vcmp.ge.f32.partialorder %v2283, -2.2
        %vm2286 = vcmp.lt.f32.partialorder %v2282, -1.8
        %vm2287 = vcmp.lt.f32.partialorder %v2283, -1.8
        %vm2288 = vmand %vm2284, %vm2286
        %vm2289 = vmand %vm2285, %vm2287
        %v2290 = vsel %vm2288, 1, 0
        %v2291 = vsel %vm2289, 1, 0
        %v2292 = vcvt.s32.f32 %v2290
        %v2293 = vcvt.s32.f32 %v2291
        %vm2294 = vcmp.ge.f32.partialorder %v2282, -1.8
        %vm2295 = vcmp.ge.f32.partialorder %v2283, -1.8
        %vm2296 = vcmp.lt.f32.partialorder %v2282, -1.4
        %vm2297 = vcmp.lt.f32.partialorder %v2283, -1.4
        %vm2298 = vmand %vm2294, %vm2296
        %vm2299 = vmand %vm2295, %vm2297
        %v2300 = vsel %vm2298, 1, 0
        %v2301 = vsel %vm2299, 1, 0
        %v2302 = vcvt.s32.f32 %v2300
        %v2303 = vcvt.s32.f32 %v2301
        %vm2304 = vcmp.ge.f32.partialorder %v2282, -1.4
        %vm2305 = vcmp.ge.f32.partialorder %v2283, -1.4
        %vm2306 = vcmp.lt.f32.partialorder %v2282, -1.0
        %vm2307 = vcmp.lt.f32.partialorder %v2283, -1.0
        %vm2308 = vmand %vm2304, %vm2306
        %vm2309 = vmand %vm2305, %vm2307
        %v2310 = vsel %vm2308, 1, 0
        %v2311 = vsel %vm2309, 1, 0
        %v2312 = vcvt.s32.f32 %v2310
        %v2313 = vcvt.s32.f32 %v2311
        %vm2314 = vcmp.ge.f32.partialorder %v2282, -1.0
        %vm2315 = vcmp.ge.f32.partialorder %v2283, -1.0
        %vm2316 = vcmp.lt.f32.partialorder %v2282, -0.6
        %vm2317 = vcmp.lt.f32.partialorder %v2283, -0.6
        %vm2318 = vmand %vm2314, %vm2316
        %vm2319 = vmand %vm2315, %vm2317
        %v2320 = vsel %vm2318, 1, 0
        %v2321 = vsel %vm2319, 1, 0
        %v2322 = vcvt.s32.f32 %v2320
        %v2323 = vcvt.s32.f32 %v2321
        %vm2324 = vcmp.ge.f32.partialorder %v2282, -0.6
        %vm2325 = vcmp.ge.f32.partialorder %v2283, -0.6
        %vm2326 = vcmp.lt.f32.partialorder %v2282, -0.2
        %vm2327 = vcmp.lt.f32.partialorder %v2283, -0.2
        %vm2328 = vmand %vm2324, %vm2326
        %vm2329 = vmand %vm2325, %vm2327
        %v2330 = vsel %vm2328, 1, 0
        %v2331 = vsel %vm2329, 1, 0
        %v2332 = vcvt.s32.f32 %v2330
        %v2333 = vcvt.s32.f32 %v2331
        %vm2334 = vcmp.ge.f32.partialorder %v2282, -0.2
        %vm2335 = vcmp.ge.f32.partialorder %v2283, -0.2
        %vm2336 = vcmp.lt.f32.partialorder %v2282, 0.2
        %vm2337 = vcmp.lt.f32.partialorder %v2283, 0.2
        %vm2338 = vmand %vm2334, %vm2336
        %vm2339 = vmand %vm2335, %vm2337
        %v2340 = vsel %vm2338, 1, 0
        %v2341 = vsel %vm2339, 1, 0
        %v2342 = vcvt.s32.f32 %v2340
        %v2343 = vcvt.s32.f32 %v2341
        %vm2344 = vcmp.ge.f32.partialorder %v2282, 0.2
        %vm2345 = vcmp.ge.f32.partialorder %v2283, 0.2
        %vm2346 = vcmp.lt.f32.partialorder %v2282, 0.6
        %vm2347 = vcmp.lt.f32.partialorder %v2283, 0.6
        %vm2348 = vmand %vm2344, %vm2346
        %vm2349 = vmand %vm2345, %vm2347
        %v2350 = vsel %vm2348, 1, 0
        %v2351 = vsel %vm2349, 1, 0
        %v2352 = vcvt.s32.f32 %v2350
        %v2353 = vcvt.s32.f32 %v2351
        %vm2354 = vcmp.ge.f32.partialorder %v2282, 0.6
        %vm2355 = vcmp.ge.f32.partialorder %v2283, 0.6
        %vm2356 = vcmp.lt.f32.partialorder %v2282, 1.0
        %vm2357 = vcmp.lt.f32.partialorder %v2283, 1.0
        %vm2358 = vmand %vm2354, %vm2356
        %vm2359 = vmand %vm2355, %vm2357
        %v2360 = vsel %vm2358, 1, 0
        %v2361 = vsel %vm2359, 1, 0
        %v2362 = vcvt.s32.f32 %v2360
        %v2363 = vcvt.s32.f32 %v2361
        %vm2364 = vcmp.ge.f32.partialorder %v2282, 1.0
        %vm2365 = vcmp.ge.f32.partialorder %v2283, 1.0
        %vm2366 = vcmp.lt.f32.partialorder %v2282, 1.4
        %vm2367 = vcmp.lt.f32.partialorder %v2283, 1.4
        %vm2368 = vmand %vm2364, %vm2366
        %vm2369 = vmand %vm2365, %vm2367
        %v2370 = vsel %vm2368, 1, 0
        %v2371 = vsel %vm2369, 1, 0
        %v2372 = vcvt.s32.f32 %v2370
        %v2373 = vcvt.s32.f32 %v2371
        %vm2374 = vcmp.ge.f32.partialorder %v2282, 1.4
        %vm2375 = vcmp.ge.f32.partialorder %v2283, 1.4
        %vm2376 = vcmp.lt.f32.partialorder %v2282, 1.8
        %vm2377 = vcmp.lt.f32.partialorder %v2283, 1.8
        %vm2378 = vmand %vm2374, %vm2376
        %vm2379 = vmand %vm2375, %vm2377
        %v2380 = vsel %vm2378, 1, 0
        %v2381 = vsel %vm2379, 1, 0
        %v2382 = vcvt.s32.f32 %v2380
        %v2383 = vcvt.s32.f32 %v2381
        %vm2384 = vcmp.ge.f32.partialorder %v2282, 1.8
        %vm2385 = vcmp.ge.f32.partialorder %v2283, 1.8
        %vm2386 = vcmp.lt.f32.partialorder %v2282, 2.2
        %vm2387 = vcmp.lt.f32.partialorder %v2283, 2.2
        %vm2388 = vmand %vm2384, %vm2386
        %vm2389 = vmand %vm2385, %vm2387
        %v2390 = vsel %vm2388, 1, 0
        %v2391 = vsel %vm2389, 1, 0
        %v2392 = vcvt.s32.f32 %v2390
        %v2393 = vcvt.s32.f32 %v2391
        %v2394 = vmul.f32 %v2282, 2.5
        %v2395 = vmul.f32 %v2283, 2.5
        %v2396 = vsub.f32 %v2394, -5.5
        %v2397 = vsub.f32 %v2395, -5.5
        %v2398 = vsub.f32 %v2394, -4.5
        %v2399 = vsub.f32 %v2395, -4.5
        %v2400 = vsub.f32 %v2394, -3.5
        %v2401 = vsub.f32 %v2395, -3.5
        %v2402 = vsub.f32 %v2394, -2.5
        %v2403 = vsub.f32 %v2395, -2.5
        %v2404 = vsub.f32 %v2394, -1.5
        %v2405 = vsub.f32 %v2395, -1.5
        %v2406 = vsub.f32 %v2394, -0.5
        %v2407 = vsub.f32 %v2395, -0.5
        %v2408 = vsub.f32 %v2394, 0.5
        %v2409 = vsub.f32 %v2395, 0.5
        %v2410 = vsub.f32 %v2394, 1.5
        %v2411 = vsub.f32 %v2395, 1.5
        %v2412 = vsub.f32 %v2394, 2.5
        %v2413 = vsub.f32 %v2395, 2.5
        %v2414 = vsub.f32 %v2394, 3.5
        %v2415 = vsub.f32 %v2395, 3.5
        %v2416 = vsub.f32 %v2394, 4.5
        %v2417 = vsub.f32 %v2395, 4.5
        %v2418 = vmul.f32 %v2396, %v2292
        %v2419 = vmul.f32 %v2397, %v2293
        %v2420 = vsub.f32 1.0, %v2398
        %v2421 = vsub.f32 1.0, %v2399
        %v2422 = vmul.f32 %v2420, %v2302
        %v2423 = vmul.f32 %v2421, %v2303
        %v2424 = vadd.f32 %v2418, %v2422
        %v2425 = vadd.f32 %v2419, %v2423
        %v2426 = vmul.f32 %v2398, %v2302
        %v2427 = vmul.f32 %v2399, %v2303
        %v2428 = vsub.f32 1.0, %v2400
        %v2429 = vsub.f32 1.0, %v2401
        %v2430 = vmul.f32 %v2428, %v2312
        %v2431 = vmul.f32 %v2429, %v2313
        %v2432 = vadd.f32 %v2426, %v2430
        %v2433 = vadd.f32 %v2427, %v2431
        %v2434 = vmul.f32 %v2400, %v2312
        %v2435 = vmul.f32 %v2401, %v2313
        %v2436 = vsub.f32 1.0, %v2402
        %v2437 = vsub.f32 1.0, %v2403
        %v2438 = vmul.f32 %v2436, %v2322
        %v2439 = vmul.f32 %v2437, %v2323
        %v2440 = vadd.f32 %v2434, %v2438
        %v2441 = vadd.f32 %v2435, %v2439
        %v2442 = vmul.f32 %v2402, %v2322
        %v2443 = vmul.f32 %v2403, %v2323
        %v2444 = vsub.f32 1.0, %v2404
        %v2445 = vsub.f32 1.0, %v2405
        %v2446 = vmul.f32 %v2444, %v2332
        %v2447 = vmul.f32 %v2445, %v2333
        %v2448 = vadd.f32 %v2442, %v2446
        %v2449 = vadd.f32 %v2443, %v2447
        %v2450 = vmul.f32 %v2404, %v2332
        %v2451 = vmul.f32 %v2405, %v2333
        %v2452 = vsub.f32 1.0, %v2406
        %v2453 = vsub.f32 1.0, %v2407
        %v2454 = vmul.f32 %v2452, %v2342
        %v2455 = vmul.f32 %v2453, %v2343
        %v2456 = vadd.f32 %v2450, %v2454
        %v2457 = vadd.f32 %v2451, %v2455
        %v2458 = vmul.f32 %v2406, %v2342
        %v2459 = vmul.f32 %v2407, %v2343
        %v2460 = vsub.f32 1.0, %v2408
        %v2461 = vsub.f32 1.0, %v2409
        %v2462 = vmul.f32 %v2460, %v2352
        %v2463 = vmul.f32 %v2461, %v2353
        %v2464 = vadd.f32 %v2458, %v2462
        %v2465 = vadd.f32 %v2459, %v2463
        %v2466 = vmul.f32 %v2408, %v2352
        %v2467 = vmul.f32 %v2409, %v2353
        %v2468 = vsub.f32 1.0, %v2410
        %v2469 = vsub.f32 1.0, %v2411
        %v2470 = vmul.f32 %v2468, %v2362
        %v2471 = vmul.f32 %v2469, %v2363
        %v2472 = vadd.f32 %v2466, %v2470
        %v2473 = vadd.f32 %v2467, %v2471
        %v2474 = vmul.f32 %v2410, %v2362
        %v2475 = vmul.f32 %v2411, %v2363
        %v2476 = vsub.f32 1.0, %v2412
        %v2477 = vsub.f32 1.0, %v2413
        %v2478 = vmul.f32 %v2476, %v2372
        %v2479 = vmul.f32 %v2477, %v2373
        %v2480 = vadd.f32 %v2474, %v2478
        %v2481 = vadd.f32 %v2475, %v2479
        %v2482 = vmul.f32 %v2412, %v2372
        %v2483 = vmul.f32 %v2413, %v2373
        %v2484 = vsub.f32 1.0, %v2414
        %v2485 = vsub.f32 1.0, %v2415
        %v2486 = vmul.f32 %v2484, %v2382
        %v2487 = vmul.f32 %v2485, %v2383
        %v2488 = vadd.f32 %v2482, %v2486
        %v2489 = vadd.f32 %v2483, %v2487
        %v2490 = vmul.f32 %v2414, %v2382
        %v2491 = vmul.f32 %v2415, %v2383
        %v2492 = vsub.f32 1.0, %v2416
        %v2493 = vsub.f32 1.0, %v2417
        %v2494 = vmul.f32 %v2492, %v2392
        %v2495 = vmul.f32 %v2493, %v2393
        %v2496 = vadd.f32 %v2490, %v2494
        %v2497 = vadd.f32 %v2491, %v2495
        %v2498 = vmul.f32 %v2282, 1.25
        %v2499 = vmul.f32 %v2283, 1.25
        %v2500 = vsub.f32 %v2498, -2.75
        %v2501 = vsub.f32 %v2499, -2.75
        %v2502 = vsub.f32 %v2498, -2.25
        %v2503 = vsub.f32 %v2499, -2.25
        %v2504 = vsub.f32 %v2498, -1.75
        %v2505 = vsub.f32 %v2499, -1.75
        %v2506 = vsub.f32 %v2498, -1.25
        %v2507 = vsub.f32 %v2499, -1.25
        %v2508 = vsub.f32 %v2498, -0.75
        %v2509 = vsub.f32 %v2499, -0.75
        %v2510 = vsub.f32 %v2498, -0.25
        %v2511 = vsub.f32 %v2499, -0.25
        %v2512 = vsub.f32 %v2498, 0.25
        %v2513 = vsub.f32 %v2499, 0.25
        %v2514 = vsub.f32 %v2498, 0.75
        %v2515 = vsub.f32 %v2499, 0.75
        %v2516 = vsub.f32 %v2498, 1.25
        %v2517 = vsub.f32 %v2499, 1.25
        %v2518 = vsub.f32 %v2498, 1.75
        %v2519 = vsub.f32 %v2499, 1.75
        %v2520 = vmul.f32 %v2500, %v2424
        %v2521 = vmul.f32 %v2501, %v2425
        %v2522 = vsub.f32 1.0, %v2502
        %v2523 = vsub.f32 1.0, %v2503
        %v2524 = vmul.f32 %v2522, %v2432
        %v2525 = vmul.f32 %v2523, %v2433
        %v2526 = vadd.f32 %v2520, %v2524
        %v2527 = vadd.f32 %v2521, %v2525
        %v2528 = vmul.f32 %v2502, %v2432
        %v2529 = vmul.f32 %v2503, %v2433
        %v2530 = vsub.f32 1.0, %v2504
        %v2531 = vsub.f32 1.0, %v2505
        %v2532 = vmul.f32 %v2530, %v2440
        %v2533 = vmul.f32 %v2531, %v2441
        %v2534 = vadd.f32 %v2528, %v2532
        %v2535 = vadd.f32 %v2529, %v2533
        %v2536 = vmul.f32 %v2504, %v2440
        %v2537 = vmul.f32 %v2505, %v2441
        %v2538 = vsub.f32 1.0, %v2506
        %v2539 = vsub.f32 1.0, %v2507
        %v2540 = vmul.f32 %v2538, %v2448
        %v2541 = vmul.f32 %v2539, %v2449
        %v2542 = vadd.f32 %v2536, %v2540
        %v2543 = vadd.f32 %v2537, %v2541
        %v2544 = vmul.f32 %v2506, %v2448
        %v2545 = vmul.f32 %v2507, %v2449
        %v2546 = vsub.f32 1.0, %v2508
        %v2547 = vsub.f32 1.0, %v2509
        %v2548 = vmul.f32 %v2546, %v2456
        %v2549 = vmul.f32 %v2547, %v2457
        %v2550 = vadd.f32 %v2544, %v2548
        %v2551 = vadd.f32 %v2545, %v2549
        %v2552 = vmul.f32 %v2508, %v2456
        %v2553 = vmul.f32 %v2509, %v2457
        %v2554 = vsub.f32 1.0, %v2510
        %v2555 = vsub.f32 1.0, %v2511
        %v2556 = vmul.f32 %v2554, %v2464
        %v2557 = vmul.f32 %v2555, %v2465
        %v2558 = vadd.f32 %v2552, %v2556
        %v2559 = vadd.f32 %v2553, %v2557
        %v2560 = vmul.f32 %v2510, %v2464
        %v2561 = vmul.f32 %v2511, %v2465
        %v2562 = vsub.f32 1.0, %v2512
        %v2563 = vsub.f32 1.0, %v2513
        %v2564 = vmul.f32 %v2562, %v2472
        %v2565 = vmul.f32 %v2563, %v2473
        %v2566 = vadd.f32 %v2560, %v2564
        %v2567 = vadd.f32 %v2561, %v2565
        %v2568 = vmul.f32 %v2512, %v2472
        %v2569 = vmul.f32 %v2513, %v2473
        %v2570 = vsub.f32 1.0, %v2514
        %v2571 = vsub.f32 1.0, %v2515
        %v2572 = vmul.f32 %v2570, %v2480
        %v2573 = vmul.f32 %v2571, %v2481
        %v2574 = vadd.f32 %v2568, %v2572
        %v2575 = vadd.f32 %v2569, %v2573
        %v2576 = vmul.f32 %v2514, %v2480
        %v2577 = vmul.f32 %v2515, %v2481
        %v2578 = vsub.f32 1.0, %v2516
        %v2579 = vsub.f32 1.0, %v2517
        %v2580 = vmul.f32 %v2578, %v2488
        %v2581 = vmul.f32 %v2579, %v2489
        %v2582 = vadd.f32 %v2576, %v2580
        %v2583 = vadd.f32 %v2577, %v2581
        %v2584 = vmul.f32 %v2516, %v2488
        %v2585 = vmul.f32 %v2517, %v2489
        %v2586 = vsub.f32 1.0, %v2518
        %v2587 = vsub.f32 1.0, %v2519
        %v2588 = vmul.f32 %v2586, %v2496
        %v2589 = vmul.f32 %v2587, %v2497
        %v2590 = vadd.f32 %v2584, %v2588
        %v2591 = vadd.f32 %v2585, %v2589
        %v2592 = vmul.f32 %v2282, 0.8333333
        %v2593 = vmul.f32 %v2283, 0.8333333
        %v2594 = vsub.f32 %v2592, -1.8333334
        %v2595 = vsub.f32 %v2593, -1.8333334
        %v2596 = vsub.f32 %v2592, -1.5
        %v2597 = vsub.f32 %v2593, -1.5
        %v2598 = vsub.f32 %v2592, -1.1666666
        %v2599 = vsub.f32 %v2593, -1.1666666
        %v2600 = vsub.f32 %v2592, -0.8333333
        %v2601 = vsub.f32 %v2593, -0.8333333
        %v2602 = vsub.f32 %v2592, -0.5
        %v2603 = vsub.f32 %v2593, -0.5
        %v2604 = vsub.f32 %v2592, -0.16666667
        %v2605 = vsub.f32 %v2593, -0.16666667
        %v2606 = vsub.f32 %v2592, 0.16666667
        %v2607 = vsub.f32 %v2593, 0.16666667
        %v2608 = vsub.f32 %v2592, 0.5
        %v2609 = vsub.f32 %v2593, 0.5
        %v2610 = vsub.f32 %v2592, 0.8333333
        %v2611 = vsub.f32 %v2593, 0.8333333
        %v2612 = vmul.f32 %v2594, %v2526
        %v2613 = vmul.f32 %v2595, %v2527
        %v2614 = vsub.f32 1.0, %v2596
        %v2615 = vsub.f32 1.0, %v2597
        %v2616 = vmul.f32 %v2614, %v2534
        %v2617 = vmul.f32 %v2615, %v2535
        %v2618 = vadd.f32 %v2612, %v2616
        %v2619 = vadd.f32 %v2613, %v2617
        %v2620 = vmul.f32 %v2596, %v2534
        %v2621 = vmul.f32 %v2597, %v2535
        %v2622 = vsub.f32 1.0, %v2598
        %v2623 = vsub.f32 1.0, %v2599
        %v2624 = vmul.f32 %v2622, %v2542
        %v2625 = vmul.f32 %v2623, %v2543
        %v2626 = vadd.f32 %v2620, %v2624
        %v2627 = vadd.f32 %v2621, %v2625
        %v2628 = vmul.f32 %v2598, %v2542
        %v2629 = vmul.f32 %v2599, %v2543
        %v2630 = vsub.f32 1.0, %v2600
        %v2631 = vsub.f32 1.0, %v2601
        %v2632 = vmul.f32 %v2630, %v2550
        %v2633 = vmul.f32 %v2631, %v2551
        %v2634 = vadd.f32 %v2628, %v2632
        %v2635 = vadd.f32 %v2629, %v2633
        %v2636 = vmul.f32 %v2600, %v2550
        %v2637 = vmul.f32 %v2601, %v2551
        %v2638 = vsub.f32 1.0, %v2602
        %v2639 = vsub.f32 1.0, %v2603
        %v2640 = vmul.f32 %v2638, %v2558
        %v2641 = vmul.f32 %v2639, %v2559
        %v2642 = vadd.f32 %v2636, %v2640
        %v2643 = vadd.f32 %v2637, %v2641
        %v2644 = vmul.f32 %v2602, %v2558
        %v2645 = vmul.f32 %v2603, %v2559
        %v2646 = vsub.f32 1.0, %v2604
        %v2647 = vsub.f32 1.0, %v2605
        %v2648 = vmul.f32 %v2646, %v2566
        %v2649 = vmul.f32 %v2647, %v2567
        %v2650 = vadd.f32 %v2644, %v2648
        %v2651 = vadd.f32 %v2645, %v2649
        %v2652 = vmul.f32 %v2604, %v2566
        %v2653 = vmul.f32 %v2605, %v2567
        %v2654 = vsub.f32 1.0, %v2606
        %v2655 = vsub.f32 1.0, %v2607
        %v2656 = vmul.f32 %v2654, %v2574
        %v2657 = vmul.f32 %v2655, %v2575
        %v2658 = vadd.f32 %v2652, %v2656
        %v2659 = vadd.f32 %v2653, %v2657
        %v2660 = vmul.f32 %v2606, %v2574
        %v2661 = vmul.f32 %v2607, %v2575
        %v2662 = vsub.f32 1.0, %v2608
        %v2663 = vsub.f32 1.0, %v2609
        %v2664 = vmul.f32 %v2662, %v2582
        %v2665 = vmul.f32 %v2663, %v2583
        %v2666 = vadd.f32 %v2660, %v2664
        %v2667 = vadd.f32 %v2661, %v2665
        %v2668 = vmul.f32 %v2608, %v2582
        %v2669 = vmul.f32 %v2609, %v2583
        %v2670 = vsub.f32 1.0, %v2610
        %v2671 = vsub.f32 1.0, %v2611
        %v2672 = vmul.f32 %v2670, %v2590
        %v2673 = vmul.f32 %v2671, %v2591
        %v2674 = vadd.f32 %v2668, %v2672
        %v2675 = vadd.f32 %v2669, %v2673
        %v2676 = vxor.u32 %v2282, 2147483648
        %v2677 = vxor.u32 %v2283, 2147483648
        %v2678 = vmul.f32 %v2676, 1.442695
        %v2679 = vpow.pop %v2678
        %v2680 = vmul.f32 %v2677, 1.442695
        %v2681 = vpow.pop %v2680
        %v2682 = vadd.f32 %v2679, 1.0
        %v2683 = vadd.f32 %v2681, 1.0
        %v2684 = vrcp.pop %v2682
        %v2685 = vmul.f32 1.0, %v2684
        %v2686 = vrcp.pop %v2683
        %v2687 = vmul.f32 1.0, %v2686
        %v2688 = vmul.f32 %v2282, %v2685
        %v2689 = vmul.f32 %v2283, %v2687
        %s2690 = scalar_lea.vmem %s237, 1536
        %v2691 = vld [vmem:[%s2690] sm:$0xff]
        %v2692 = vld [vmem:[%s2690 + $0x8] sm:$0xff]
        %v2693 = vmul.f32 %v2691, %v2618
        %v2694 = vmul.f32 %v2692, %v2619
        %s2695 = scalar_lea.vmem %s237, 1552
        %v2696 = vld [vmem:[%s2695] sm:$0xff]
        %v2697 = vld [vmem:[%s2695 + $0x8] sm:$0xff]
        %v2698 = vmul.f32 %v2696, %v2626
        %v2699 = vmul.f32 %v2697, %v2627
        %v2700 = vadd.f32 %v2693, %v2698
        %v2701 = vadd.f32 %v2694, %v2699
        %s2702 = scalar_lea.vmem %s237, 1568
        %v2703 = vld [vmem:[%s2702] sm:$0xff]
        %v2704 = vld [vmem:[%s2702 + $0x8] sm:$0xff]
        %v2705 = vmul.f32 %v2703, %v2634
        %v2706 = vmul.f32 %v2704, %v2635
        %v2707 = vadd.f32 %v2700, %v2705
        %v2708 = vadd.f32 %v2701, %v2706
        %s2709 = scalar_lea.vmem %s237, 1584
        %v2710 = vld [vmem:[%s2709] sm:$0xff]
        %v2711 = vld [vmem:[%s2709 + $0x8] sm:$0xff]
        %v2712 = vmul.f32 %v2710, %v2642
        %v2713 = vmul.f32 %v2711, %v2643
        %v2714 = vadd.f32 %v2707, %v2712
        %v2715 = vadd.f32 %v2708, %v2713
        %s2716 = scalar_lea.vmem %s237, 1600
        %v2717 = vld [vmem:[%s2716] sm:$0xff]
        %v2718 = vld [vmem:[%s2716 + $0x8] sm:$0xff]
        %v2719 = vmul.f32 %v2717, %v2650
        %v2720 = vmul.f32 %v2718, %v2651
        %v2721 = vadd.f32 %v2714, %v2719
        %v2722 = vadd.f32 %v2715, %v2720
        %s2723 = scalar_lea.vmem %s237, 1616
        %v2724 = vld [vmem:[%s2723] sm:$0xff]
        %v2725 = vld [vmem:[%s2723 + $0x8] sm:$0xff]
        %v2726 = vmul.f32 %v2724, %v2658
        %v2727 = vmul.f32 %v2725, %v2659
        %v2728 = vadd.f32 %v2721, %v2726
        %v2729 = vadd.f32 %v2722, %v2727
        %s2730 = scalar_lea.vmem %s237, 1632
        %v2731 = vld [vmem:[%s2730] sm:$0xff]
        %v2732 = vld [vmem:[%s2730 + $0x8] sm:$0xff]
        %v2733 = vmul.f32 %v2731, %v2666
        %v2734 = vmul.f32 %v2732, %v2667
        %v2735 = vadd.f32 %v2728, %v2733
        %v2736 = vadd.f32 %v2729, %v2734
        %s2737 = scalar_lea.vmem %s237, 1648
        %v2738 = vld [vmem:[%s2737] sm:$0xff]
        %v2739 = vld [vmem:[%s2737 + $0x8] sm:$0xff]
        %v2740 = vmul.f32 %v2738, %v2674
        %v2741 = vmul.f32 %v2739, %v2675
        %v2742 = vadd.f32 %v2735, %v2740
        %v2743 = vadd.f32 %v2736, %v2741
        %s2744 = scalar_lea.vmem %s237, 2240
        %v2745 = vld [vmem:[%s2744] sm:$0xff]
        %v2746 = vld [vmem:[%s2744 + $0x8] sm:$0xff]
        %s2747 = scalar_lea.vmem %s237, 2496
        %v2748 = vld [vmem:[%s2747] sm:$0xff]
        %v2749 = vld [vmem:[%s2747 + $0x8] sm:$0xff]
        %v2750 = vmul.f32 %v2745, %v2742
        %v2751 = vmul.f32 %v2746, %v2743
        %v2752 = vadd.f32 %v2075, %v2750
        %v2753 = vadd.f32 %v2076, %v2751
        %v2754 = vmul.f32 %v2748, %v2688
        %v2755 = vmul.f32 %v2749, %v2689
        %v2756 = vadd.f32 %v2752, %v2754
        %v2757 = vadd.f32 %v2753, %v2755
        %s2758 = scalar_lea.vmem %s237, 1664
        %v2759 = vld [vmem:[%s2758] sm:$0xff]
        %v2760 = vld [vmem:[%s2758 + $0x8] sm:$0xff]
        %v2761 = vmul.f32 %v2759, %v2618
        %v2762 = vmul.f32 %v2760, %v2619
        %s2763 = scalar_lea.vmem %s237, 1680
        %v2764 = vld [vmem:[%s2763] sm:$0xff]
        %v2765 = vld [vmem:[%s2763 + $0x8] sm:$0xff]
        %v2766 = vmul.f32 %v2764, %v2626
        %v2767 = vmul.f32 %v2765, %v2627
        %v2768 = vadd.f32 %v2761, %v2766
        %v2769 = vadd.f32 %v2762, %v2767
        %s2770 = scalar_lea.vmem %s237, 1696
        %v2771 = vld [vmem:[%s2770] sm:$0xff]
        %v2772 = vld [vmem:[%s2770 + $0x8] sm:$0xff]
        %v2773 = vmul.f32 %v2771, %v2634
        %v2774 = vmul.f32 %v2772, %v2635
        %v2775 = vadd.f32 %v2768, %v2773
        %v2776 = vadd.f32 %v2769, %v2774
        %s2777 = scalar_lea.vmem %s237, 1712
        %v2778 = vld [vmem:[%s2777] sm:$0xff]
        %v2779 = vld [vmem:[%s2777 + $0x8] sm:$0xff]
        %v2780 = vmul.f32 %v2778, %v2642
        %v2781 = vmul.f32 %v2779, %v2643
        %v2782 = vadd.f32 %v2775, %v2780
        %v2783 = vadd.f32 %v2776, %v2781
        %s2784 = scalar_lea.vmem %s237, 1728
        %v2785 = vld [vmem:[%s2784] sm:$0xff]
        %v2786 = vld [vmem:[%s2784 + $0x8] sm:$0xff]
        %v2787 = vmul.f32 %v2785, %v2650
        %v2788 = vmul.f32 %v2786, %v2651
        %v2789 = vadd.f32 %v2782, %v2787
        %v2790 = vadd.f32 %v2783, %v2788
        %s2791 = scalar_lea.vmem %s237, 1744
        %v2792 = vld [vmem:[%s2791] sm:$0xff]
        %v2793 = vld [vmem:[%s2791 + $0x8] sm:$0xff]
        %v2794 = vmul.f32 %v2792, %v2658
        %v2795 = vmul.f32 %v2793, %v2659
        %v2796 = vadd.f32 %v2789, %v2794
        %v2797 = vadd.f32 %v2790, %v2795
        %s2798 = scalar_lea.vmem %s237, 1760
        %v2799 = vld [vmem:[%s2798] sm:$0xff]
        %v2800 = vld [vmem:[%s2798 + $0x8] sm:$0xff]
        %v2801 = vmul.f32 %v2799, %v2666
        %v2802 = vmul.f32 %v2800, %v2667
        %v2803 = vadd.f32 %v2796, %v2801
        %v2804 = vadd.f32 %v2797, %v2802
        %s2805 = scalar_lea.vmem %s237, 1776
        %v2806 = vld [vmem:[%s2805] sm:$0xff]
        %v2807 = vld [vmem:[%s2805 + $0x8] sm:$0xff]
        %v2808 = vmul.f32 %v2806, %v2674
        %v2809 = vmul.f32 %v2807, %v2675
        %v2810 = vadd.f32 %v2803, %v2808
        %v2811 = vadd.f32 %v2804, %v2809
        %s2812 = scalar_lea.vmem %s237, 2256
        %v2813 = vld [vmem:[%s2812] sm:$0xff]
        %v2814 = vld [vmem:[%s2812 + $0x8] sm:$0xff]
        %s2815 = scalar_lea.vmem %s237, 2512
        %v2816 = vld [vmem:[%s2815] sm:$0xff]
        %v2817 = vld [vmem:[%s2815 + $0x8] sm:$0xff]
        %v2818 = vmul.f32 %v2813, %v2810
        %v2819 = vmul.f32 %v2814, %v2811
        %v2820 = vadd.f32 %v2143, %v2818
        %v2821 = vadd.f32 %v2144, %v2819
        %v2822 = vmul.f32 %v2816, %v2688
        %v2823 = vmul.f32 %v2817, %v2689
        %v2824 = vadd.f32 %v2820, %v2822
        %v2825 = vadd.f32 %v2821, %v2823
        %s2826 = scalar_lea.vmem %s237, 1792
        %v2827 = vld [vmem:[%s2826] sm:$0xff]
        %v2828 = vld [vmem:[%s2826 + $0x8] sm:$0xff]
        %v2829 = vmul.f32 %v2827, %v2618
        %v2830 = vmul.f32 %v2828, %v2619
        %s2831 = scalar_lea.vmem %s237, 1808
        %v2832 = vld [vmem:[%s2831] sm:$0xff]
        %v2833 = vld [vmem:[%s2831 + $0x8] sm:$0xff]
        %v2834 = vmul.f32 %v2832, %v2626
        %v2835 = vmul.f32 %v2833, %v2627
        %v2836 = vadd.f32 %v2829, %v2834
        %v2837 = vadd.f32 %v2830, %v2835
        %s2838 = scalar_lea.vmem %s237, 1824
        %v2839 = vld [vmem:[%s2838] sm:$0xff]
        %v2840 = vld [vmem:[%s2838 + $0x8] sm:$0xff]
        %v2841 = vmul.f32 %v2839, %v2634
        %v2842 = vmul.f32 %v2840, %v2635
        %v2843 = vadd.f32 %v2836, %v2841
        %v2844 = vadd.f32 %v2837, %v2842
        %s2845 = scalar_lea.vmem %s237, 1840
        %v2846 = vld [vmem:[%s2845] sm:$0xff]
        %v2847 = vld [vmem:[%s2845 + $0x8] sm:$0xff]
        %v2848 = vmul.f32 %v2846, %v2642
        %v2849 = vmul.f32 %v2847, %v2643
        %v2850 = vadd.f32 %v2843, %v2848
        %v2851 = vadd.f32 %v2844, %v2849
        %s2852 = scalar_lea.vmem %s237, 1856
        %v2853 = vld [vmem:[%s2852] sm:$0xff]
        %v2854 = vld [vmem:[%s2852 + $0x8] sm:$0xff]
        %v2855 = vmul.f32 %v2853, %v2650
        %v2856 = vmul.f32 %v2854, %v2651
        %v2857 = vadd.f32 %v2850, %v2855
        %v2858 = vadd.f32 %v2851, %v2856
        %s2859 = scalar_lea.vmem %s237, 1872
        %v2860 = vld [vmem:[%s2859] sm:$0xff]
        %v2861 = vld [vmem:[%s2859 + $0x8] sm:$0xff]
        %v2862 = vmul.f32 %v2860, %v2658
        %v2863 = vmul.f32 %v2861, %v2659
        %v2864 = vadd.f32 %v2857, %v2862
        %v2865 = vadd.f32 %v2858, %v2863
        %s2866 = scalar_lea.vmem %s237, 1888
        %v2867 = vld [vmem:[%s2866] sm:$0xff]
        %v2868 = vld [vmem:[%s2866 + $0x8] sm:$0xff]
        %v2869 = vmul.f32 %v2867, %v2666
        %v2870 = vmul.f32 %v2868, %v2667
        %v2871 = vadd.f32 %v2864, %v2869
        %v2872 = vadd.f32 %v2865, %v2870
        %s2873 = scalar_lea.vmem %s237, 1904
        %v2874 = vld [vmem:[%s2873] sm:$0xff]
        %v2875 = vld [vmem:[%s2873 + $0x8] sm:$0xff]
        %v2876 = vmul.f32 %v2874, %v2674
        %v2877 = vmul.f32 %v2875, %v2675
        %v2878 = vadd.f32 %v2871, %v2876
        %v2879 = vadd.f32 %v2872, %v2877
        %s2880 = scalar_lea.vmem %s237, 2272
        %v2881 = vld [vmem:[%s2880] sm:$0xff]
        %v2882 = vld [vmem:[%s2880 + $0x8] sm:$0xff]
        %s2883 = scalar_lea.vmem %s237, 2528
        %v2884 = vld [vmem:[%s2883] sm:$0xff]
        %v2885 = vld [vmem:[%s2883 + $0x8] sm:$0xff]
        %v2886 = vmul.f32 %v2881, %v2878
        %v2887 = vmul.f32 %v2882, %v2879
        %v2888 = vadd.f32 %v2211, %v2886
        %v2889 = vadd.f32 %v2212, %v2887
        %v2890 = vmul.f32 %v2884, %v2688
        %v2891 = vmul.f32 %v2885, %v2689
        %v2892 = vadd.f32 %v2888, %v2890
        %v2893 = vadd.f32 %v2889, %v2891
        %s2894 = scalar_lea.vmem %s237, 1920
        %v2895 = vld [vmem:[%s2894] sm:$0xff]
        %v2896 = vld [vmem:[%s2894 + $0x8] sm:$0xff]
        %v2897 = vmul.f32 %v2895, %v2618
        %v2898 = vmul.f32 %v2896, %v2619
        %s2899 = scalar_lea.vmem %s237, 1936
        %v2900 = vld [vmem:[%s2899] sm:$0xff]
        %v2901 = vld [vmem:[%s2899 + $0x8] sm:$0xff]
        %v2902 = vmul.f32 %v2900, %v2626
        %v2903 = vmul.f32 %v2901, %v2627
        %v2904 = vadd.f32 %v2897, %v2902
        %v2905 = vadd.f32 %v2898, %v2903
        %s2906 = scalar_lea.vmem %s237, 1952
        %v2907 = vld [vmem:[%s2906] sm:$0xff]
        %v2908 = vld [vmem:[%s2906 + $0x8] sm:$0xff]
        %v2909 = vmul.f32 %v2907, %v2634
        %v2910 = vmul.f32 %v2908, %v2635
        %v2911 = vadd.f32 %v2904, %v2909
        %v2912 = vadd.f32 %v2905, %v2910
        %s2913 = scalar_lea.vmem %s237, 1968
        %v2914 = vld [vmem:[%s2913] sm:$0xff]
        %v2915 = vld [vmem:[%s2913 + $0x8] sm:$0xff]
        %v2916 = vmul.f32 %v2914, %v2642
        %v2917 = vmul.f32 %v2915, %v2643
        %v2918 = vadd.f32 %v2911, %v2916
        %v2919 = vadd.f32 %v2912, %v2917
        %s2920 = scalar_lea.vmem %s237, 1984
        %v2921 = vld [vmem:[%s2920] sm:$0xff]
        %v2922 = vld [vmem:[%s2920 + $0x8] sm:$0xff]
        %v2923 = vmul.f32 %v2921, %v2650
        %v2924 = vmul.f32 %v2922, %v2651
        %v2925 = vadd.f32 %v2918, %v2923
        %v2926 = vadd.f32 %v2919, %v2924
        %s2927 = scalar_lea.vmem %s237, 2000
        %v2928 = vld [vmem:[%s2927] sm:$0xff]
        %v2929 = vld [vmem:[%s2927 + $0x8] sm:$0xff]
        %v2930 = vmul.f32 %v2928, %v2658
        %v2931 = vmul.f32 %v2929, %v2659
        %v2932 = vadd.f32 %v2925, %v2930
        %v2933 = vadd.f32 %v2926, %v2931
        %s2934 = scalar_lea.vmem %s237, 2016
        %v2935 = vld [vmem:[%s2934] sm:$0xff]
        %v2936 = vld [vmem:[%s2934 + $0x8] sm:$0xff]
        %v2937 = vmul.f32 %v2935, %v2666
        %v2938 = vmul.f32 %v2936, %v2667
        %v2939 = vadd.f32 %v2932, %v2937
        %v2940 = vadd.f32 %v2933, %v2938
        %s2941 = scalar_lea.vmem %s237, 2032
        %v2942 = vld [vmem:[%s2941] sm:$0xff]
        %v2943 = vld [vmem:[%s2941 + $0x8] sm:$0xff]
        %v2944 = vmul.f32 %v2942, %v2674
        %v2945 = vmul.f32 %v2943, %v2675
        %v2946 = vadd.f32 %v2939, %v2944
        %v2947 = vadd.f32 %v2940, %v2945
        %s2948 = scalar_lea.vmem %s237, 2288
        %v2949 = vld [vmem:[%s2948] sm:$0xff]
        %v2950 = vld [vmem:[%s2948 + $0x8] sm:$0xff]
        %s2951 = scalar_lea.vmem %s237, 2544
        %v2952 = vld [vmem:[%s2951] sm:$0xff]
        %v2953 = vld [vmem:[%s2951 + $0x8] sm:$0xff]
        %v2954 = vmul.f32 %v2949, %v2946
        %v2955 = vmul.f32 %v2950, %v2947
        %v2956 = vadd.f32 %v2279, %v2954
        %v2957 = vadd.f32 %v2280, %v2955
        %v2958 = vmul.f32 %v2952, %v2688
        %v2959 = vmul.f32 %v2953, %v2689
        %v2960 = vadd.f32 %v2956, %v2958
        %v2961 = vadd.f32 %v2957, %v2959
        %vm2962 = vcmask 130048
        %2963 = vst.msk [vmem:[%s212] sm:$0xff] %vm2962, %v2756
        %2964 = vst.msk [vmem:[%s212 + $0x8] sm:$0xff] %vm2962, %v2757
        %s2965 = scalar_lea.vmem %s212, 16 [#allocation2]
        %2966 = vst.msk [vmem:[%s2965] sm:$0xff] %vm2962, %v2824
        %2967 = vst.msk [vmem:[%s2965 + $0x8] sm:$0xff] %vm2962, %v2825
        %s2968 = scalar_lea.vmem %s212, 32 [#allocation2]
        %2969 = vst.msk [vmem:[%s2968] sm:$0xff] %vm2962, %v2892
        %2970 = vst.msk [vmem:[%s2968 + $0x8] sm:$0xff] %vm2962, %v2893
        %s2971 = scalar_lea.vmem %s212, 48 [#allocation2]
        %2972 = vst.msk [vmem:[%s2971] sm:$0xff] %vm2962, %v2960
        %2973 = vst.msk [vmem:[%s2971 + $0x8] sm:$0xff] %vm2962, %v2961
        %s2974 = sand.u32 %s107, 1
        %s2975 = scalar_lea.sflag [#allocation3], %s2974
        %s2976 = sand.u32 %s107, 1
        %s2977 = smul.addr %s2976, 64
        %s2978 = scalar_lea.vmem [#allocation2], %s2977
        // Predicated region
        $region29: #{tpu_custom_call.1} parent=27 // pred_check
          %p2979 = pneg %p117
        $region30: #{tpu_custom_call.1} parent=27 // pred_check_branch
          %2981 = sbr.rel (%p2979) target = $region32
        $region31: #{tpu_custom_call.1} parent=27 // pred_region
          %s2982 = smul.u32 2, %s22
          %s2984 = ssub.s32 1024, 1024
          %2985 = vsyncadd %s2975, %s2984
          %s2986 = sadd.s32 %s23, %s2982
          %s2987 = smul.addr %s21, 8
          %s2988 = sadd.s32 %s2986, %s2987
          %s2989 = smul.addr %s2988, 128
          %s2990 = scalar_lea.hbm %s2, %s2989
          %s2991 = sshll.u32 %s2978, 4
          %s2992 = int_to_ptr.vmem [resolvable:$true] %s2991
          %2997 = dma.vmem_to_hbm [thread:$0]  %s2992, 1024, %s2990, %s2975, 128, 128, 8
        $region32: #{tpu_custom_call.1} parent=27 // pred_fallthru
          _
      $region28: #{tpu_custom_call.1} parent=5 // pred_fallthru
        _
      %p2998 = scmp.le.s32.totalorder 2, %s11
      // Predicated region
      $region33: #{tpu_custom_call.1} parent=5 // pred_check
        %p2999 = pneg %p2998
      $region34: #{tpu_custom_call.1} parent=5 // pred_check_branch
        %3001 = sbr.rel (%p2999) target = $region36
      $region35: #{tpu_custom_call.1} parent=5 // pred_region
        %s3002 = ssub.s32 %s11, 2
        // Predicated region
        $region37: #{tpu_custom_call.1} parent=35 // pred_check
          %p3003 = pneg %p123
        $region38: #{tpu_custom_call.1} parent=35 // pred_check_branch
          %3005 = sbr.rel (%p3003) target = $region40
        $region39: #{tpu_custom_call.1} parent=35 // pred_region
          %s3006 = sand.u32 %s108, 1
          %s3007 = scalar_lea.sflag [#allocation3], %s3006
          %s3008 = sand.u32 %s108, 1
          %s3009 = smul.addr %s3008, 64
          %s3010 = scalar_lea.vmem [#allocation2], %s3009
          %3011 = dma.done %s3007, 1024
        $region40: #{tpu_custom_call.1} parent=35 // pred_fallthru
          _
      $region36: #{tpu_custom_call.1} parent=5 // pred_fallthru
        _
    $region6: #{tpu_custom_call.1} parent=1 // loop_footer
      %s15 = sadd.s32 1, %s11
    $region7: #{tpu_custom_call.1} parent=1 // loop_footer_branch
      %10 = sbr.rel target = $region3
    $region8: #{tpu_custom_call.1} parent=1 // loop_exit
      _
    %3012 = vsyncpa [#allocation3], 1
    %s3013 = scalar_lea.sflag [#allocation3], 1
    %3014 = vsyncpa %s3013, 1

</llo_original>
